<compile_context>
chip_gen: v7x
topology: tpu7x:2x2x1
jax: 0.10.0
libtpu: 0.0.40
codegen_flags: <defaults>
</compile_context>

<pallas_src>
import functools

import jax
import jax.numpy as jnp
from jax.experimental import pallas as pl
from jax.experimental.pallas import tpu as pltpu

BN_EPS = 1e-5


# ----------------------------------------------------------------------------
# Fused kernel: whole decoder stack for one batch tile.
# Activations are kept as (batch_block, L, C) with channels on the lane dim;
# for the matmuls they are viewed as (batch_block*L, C).
# ----------------------------------------------------------------------------
def fused_decoder_kernel(x_ref, *refs, seqlen, relu_flags):
    n_layers = len(relu_flags)
    w_refs = refs[:n_layers]                    # each (3, Cin_i, Cout_i), BN scale folded in
    s_refs = refs[n_layers:2 * n_layers]        # each (1, Cout_i), conv bias + BN shift folded in
    o_ref = refs[2 * n_layers]                  # (batch_block, L, Cout_last)

    x = x_ref[...]                              # (bb, C_latent)
    bb, c0 = x.shape
    L = seqlen
    NL = bb * L

    # Broadcast the latent across the sequence in-kernel (never materialized in HBM).
    h = jnp.broadcast_to(x[:, None, :], (bb, L, c0)).astype(jnp.float32)

    for li in range(n_layers):
        w = w_refs[li][...]                     # (3, Cin, Cout)
        shift = s_refs[li][...]                 # (1, Cout)
        cin = h.shape[2]
        cout = w.shape[2]

        # Shifted views along the sequence axis with exact zero padding at the edges.
        zero = jnp.zeros((bb, 1, cin), jnp.float32)
        x_prev = jnp.concatenate([zero, h[:, :L - 1, :]], axis=1)   # h[:, t-1, :]
        x_next = jnp.concatenate([h[:, 1:, :], zero], axis=1)       # h[:, t+1, :]

        # Collapse (batch, seq) into matmul rows: (bb*L, Cin) @ (Cin, Cout) per tap.
        a_prev = x_prev.reshape(NL, cin)
        a_mid = h.reshape(NL, cin)
        a_next = x_next.reshape(NL, cin)

        y = (jnp.dot(a_prev, w[0], preferred_element_type=jnp.float32)
             + jnp.dot(a_mid, w[1], preferred_element_type=jnp.float32)
             + jnp.dot(a_next, w[2], preferred_element_type=jnp.float32))
        y = y + shift                           # folded conv bias + BatchNorm (eval mode)
        if relu_flags[li]:
            y = jnp.maximum(y, 0.0)             # Dropout(p=0.5) is identity in eval mode
        h = y.reshape(bb, L, cout)

    o_ref[...] = h.astype(o_ref.dtype)


# ----------------------------------------------------------------------------
# Wrapper: single pallas_call over batch tiles.
# ----------------------------------------------------------------------------
def conv_decoder_forward(x, seqlen, layers, *, batch_block=None):
    """x: (N, C4) latent code -> (N, seqlen, n_channel_out)."""
    N, c_in = x.shape
    n_layers = len(layers)
    relu_flags = tuple(layer["relu"] for layer in layers)
    c_out = int(layers[-1]["w"].shape[2])

    if batch_block is None:
        batch_block = N if N <= 8 else 8        # 8*L rows per step is MXU-friendly
    if N % batch_block != 0:
        batch_block = N
    grid = (N // batch_block,)

    ws = [layer["w"] for layer in layers]
    shifts = [layer["shift"] for layer in layers]

    in_specs = [pl.BlockSpec((batch_block, c_in), lambda b: (b, 0))]
    for w in ws:
        in_specs.append(pl.BlockSpec(tuple(w.shape), lambda b: (0, 0, 0)))
    for s in shifts:
        in_specs.append(pl.BlockSpec(tuple(s.shape), lambda b: (0, 0)))

    kernel = functools.partial(fused_decoder_kernel, seqlen=seqlen, relu_flags=relu_flags)
    return pl.pallas_call(
        kernel,
        out_shape=jax.ShapeDtypeStruct((N, seqlen, c_out), jnp.float32),
        grid_spec=pltpu.PrefetchScalarGridSpec(
            num_scalar_prefetch=0,
            grid=grid,
            in_specs=in_specs,
            out_specs=pl.BlockSpec((batch_block, seqlen, c_out), lambda b: (b, 0, 0)),
        ),
        compiler_params=pltpu.CompilerParams(dimension_semantics=("parallel",)),
    )(x, *ws, *shifts)


# ----------------------------------------------------------------------------
# Parameter construction (deterministic, PyTorch-default-like ranges).
# Each conv_block(cin, cout) contributes two fused layers:
#   layer A: Conv1d(cin->cout) + BN + ReLU   (Dropout identity in eval)
#   layer B: Conv1d(cout->cout) + BN
# Bias + BN are folded into (w, shift) for the kernel; raw params kept for the reference.
# ----------------------------------------------------------------------------
def make_layer_params(key, cin, cout, relu):
    kw, kb, kg, kbe, km, kv = jax.random.split(key, 6)
    bound = 1.0 / jnp.sqrt(jnp.float32(cin * 3))
    # PyTorch Conv1d weight is (Cout, Cin, 3); store as (3, Cin, Cout) for channel-contraction matmuls.
    w_torch = jax.random.uniform(kw, (cout, cin, 3), jnp.float32, -bound, bound)
    w = jnp.transpose(w_torch, (2, 1, 0))
    b = jax.random.uniform(kb, (1, cout), jnp.float32, -bound, bound)
    gamma = jax.random.uniform(kg, (1, cout), jnp.float32, 0.5, 1.5)
    beta = jax.random.uniform(kbe, (1, cout), jnp.float32, -0.5, 0.5)
    mean = jax.random.uniform(km, (1, cout), jnp.float32, -0.5, 0.5)
    var = jax.random.uniform(kv, (1, cout), jnp.float32, 0.5, 1.5)
    scale = gamma / jnp.sqrt(var + BN_EPS)      # eval-mode BN scale
    shift_bn = beta - mean * scale              # eval-mode BN shift
    # Fold conv bias + BN into the weights: y = conv_{w'}(x) + shift'
    w_folded = w * scale.reshape(1, 1, cout)
    shift_folded = b * scale + shift_bn
    return {
        "w": w_folded, "shift": shift_folded, "relu": relu,          # kernel params
        "w_raw": w, "b": b, "scale": scale, "shift_bn": shift_bn,    # reference params
    }


def make_decoder_params(key, n_channel_out, c1, c2, c3, c4):
    widths = [(c4, c3), (c3, c2), (c2, c1), (c1, n_channel_out)]
    layers = []
    for i, (cin, cout) in enumerate(widths):
        k1, k2 = jax.random.split(jax.random.fold_in(key, i))
        layers.append(make_layer_params(k1, cin, cout, relu=True))
        layers.append(make_layer_params(k2, cout, cout, relu=False))
    return layers


# ----------------------------------------------------------------------------
# Pure-JAX reference (un-folded bias/BN path) for correctness checking.
# ----------------------------------------------------------------------------
def conv_decoder_reference(x, seqlen, layers):
    N, c4 = x.shape
    h = jnp.broadcast_to(x[:, None, :], (N, seqlen, c4)).astype(jnp.float32)
    for layer in layers:
        L = h.shape[1]
        xp = jnp.pad(h, ((0, 0), (1, 1), (0, 0)))
        y = sum(jnp.einsum("nlc,cd->nld", xp[:, k:k + L, :], layer["w_raw"][k]) for k in range(3))
        y = y + layer["b"]                               # conv bias
        y = y * layer["scale"] + layer["shift_bn"]       # BatchNorm1d (running stats)
        if layer["relu"]:
            y = jnp.maximum(y, 0.0)                      # Dropout identity in eval
        h = y
    return h


if __name__ == "__main__":
    key = jax.random.PRNGKey(0)

    # Small, module-consistent sizes.
    n_channel_out, c1, c2, c3, c4 = 4, 8, 16, 32, 64
    batch, seqlen = 2, 16

    k_params, k_x = jax.random.split(key)
    layers = make_decoder_params(k_params, n_channel_out, c1, c2, c3, c4)
    x = jax.random.normal(k_x, (batch, c4), jnp.float32)   # latent code fed to the decoder

    out = jax.block_until_ready(conv_decoder_forward(x, seqlen, layers))
    ref = conv_decoder_reference(x, seqlen, layers)

    assert out.shape == (batch, seqlen, n_channel_out), out.shape
    max_err = float(jnp.max(jnp.abs(out - ref)))
    assert jnp.allclose(out, ref, rtol=1e-4, atol=1e-4), max_err

    print("KERNEL_OK")
</pallas_src>

<mosaic_0001>
module attributes {stable_mosaic.version = 11 : i64} {
  func.func @fused_decoder_kernel(%arg0: i32, %arg1: memref<2x64xf32, #tpu.memory_space<vmem>>, %arg2: memref<3x64x32xf32, #tpu.memory_space<vmem>>, %arg3: memref<3x32x32xf32, #tpu.memory_space<vmem>>, %arg4: memref<3x32x16xf32, #tpu.memory_space<vmem>>, %arg5: memref<3x16x16xf32, #tpu.memory_space<vmem>>, %arg6: memref<3x16x8xf32, #tpu.memory_space<vmem>>, %arg7: memref<3x8x8xf32, #tpu.memory_space<vmem>>, %arg8: memref<3x8x4xf32, #tpu.memory_space<vmem>>, %arg9: memref<3x4x4xf32, #tpu.memory_space<vmem>>, %arg10: memref<1x32xf32, #tpu.memory_space<vmem>>, %arg11: memref<1x32xf32, #tpu.memory_space<vmem>>, %arg12: memref<1x16xf32, #tpu.memory_space<vmem>>, %arg13: memref<1x16xf32, #tpu.memory_space<vmem>>, %arg14: memref<1x8xf32, #tpu.memory_space<vmem>>, %arg15: memref<1x8xf32, #tpu.memory_space<vmem>>, %arg16: memref<1x4xf32, #tpu.memory_space<vmem>>, %arg17: memref<1x4xf32, #tpu.memory_space<vmem>>, %arg18: memref<2x16x4xf32, #tpu.memory_space<vmem>>) attributes {dimension_semantics = [#tpu.dimension_semantics<parallel>], iteration_bounds = array<i64: 1>, scalar_prefetch = 0 : i64, scratch_operands = 0 : i64, tpu.core_type = #tpu.core_type<tc>, window_params = [{transform_indices = @transform_0, window_bounds = array<i64: 2, 64>}, {pipeline_mode = #tpu.pipeline_mode<synchronous>, transform_indices = @transform_1, window_bounds = array<i64: 3, 64, 32>}, {pipeline_mode = #tpu.pipeline_mode<synchronous>, transform_indices = @transform_2, window_bounds = array<i64: 3, 32, 32>}, {pipeline_mode = #tpu.pipeline_mode<synchronous>, transform_indices = @transform_3, window_bounds = array<i64: 3, 32, 16>}, {pipeline_mode = #tpu.pipeline_mode<synchronous>, transform_indices = @transform_4, window_bounds = array<i64: 3, 16, 16>}, {pipeline_mode = #tpu.pipeline_mode<synchronous>, transform_indices = @transform_5, window_bounds = array<i64: 3, 16, 8>}, {pipeline_mode = #tpu.pipeline_mode<synchronous>, transform_indices = @transform_6, window_bounds = array<i64: 3, 8, 8>}, {pipeline_mode = #tpu.pipeline_mode<synchronous>, transform_indices = @transform_7, window_bounds = array<i64: 3, 8, 4>}, {pipeline_mode = #tpu.pipeline_mode<synchronous>, transform_indices = @transform_8, window_bounds = array<i64: 3, 4, 4>}, {pipeline_mode = #tpu.pipeline_mode<synchronous>, transform_indices = @transform_9, window_bounds = array<i64: 1, 32>}, {pipeline_mode = #tpu.pipeline_mode<synchronous>, transform_indices = @transform_10, window_bounds = array<i64: 1, 32>}, {pipeline_mode = #tpu.pipeline_mode<synchronous>, transform_indices = @transform_11, window_bounds = array<i64: 1, 16>}, {pipeline_mode = #tpu.pipeline_mode<synchronous>, transform_indices = @transform_12, window_bounds = array<i64: 1, 16>}, {pipeline_mode = #tpu.pipeline_mode<synchronous>, transform_indices = @transform_13, window_bounds = array<i64: 1, 8>}, {pipeline_mode = #tpu.pipeline_mode<synchronous>, transform_indices = @transform_14, window_bounds = array<i64: 1, 8>}, {pipeline_mode = #tpu.pipeline_mode<synchronous>, transform_indices = @transform_15, window_bounds = array<i64: 1, 4>}, {pipeline_mode = #tpu.pipeline_mode<synchronous>, transform_indices = @transform_16, window_bounds = array<i64: 1, 4>}, {transform_indices = @transform_17, window_bounds = array<i64: 2, 16, 4>}]} {
    %c0 = arith.constant 0 : index
    %c0_0 = arith.constant 0 : index
    %0 = vector.load %arg1[%c0, %c0_0] : memref<2x64xf32, #tpu.memory_space<vmem>>, vector<2x64xf32>
    %1 = vector.shape_cast %0 : vector<2x64xf32> to vector<2x1x64xf32>
    %2 = vector.shape_cast %1 : vector<2x1x64xf32> to vector<2x1x64xf32>
    %3 = vector.broadcast %2 : vector<2x1x64xf32> to vector<2x16x64xf32>
    %c0_1 = arith.constant 0 : index
    %c0_2 = arith.constant 0 : index
    %c0_3 = arith.constant 0 : index
    %4 = vector.load %arg2[%c0_1, %c0_2, %c0_3] : memref<3x64x32xf32, #tpu.memory_space<vmem>>, vector<3x64x32xf32>
    %c0_4 = arith.constant 0 : index
    %c0_5 = arith.constant 0 : index
    %5 = vector.load %arg10[%c0_4, %c0_5] : memref<1x32xf32, #tpu.memory_space<vmem>>, vector<1x32xf32>
    %cst = arith.constant 0.000000e+00 : f32
    %6 = vector.broadcast %cst : f32 to vector<2x1x64xf32>
    %7 = vector.extract_strided_slice %3 {offsets = [0, 0, 0], sizes = [2, 15, 64], strides = [1, 1, 1]} : vector<2x16x64xf32> to vector<2x15x64xf32>
    %8 = tpu.concatenate %6, %7 in 1 : vector<2x1x64xf32>, vector<2x15x64xf32> -> vector<2x16x64xf32>
    %9 = vector.extract_strided_slice %3 {offsets = [0, 1, 0], sizes = [2, 15, 64], strides = [1, 1, 1]} : vector<2x16x64xf32> to vector<2x15x64xf32>
    %10 = tpu.concatenate %9, %6 in 1 : vector<2x15x64xf32>, vector<2x1x64xf32> -> vector<2x16x64xf32>
    %11 = vector.shape_cast %8 : vector<2x16x64xf32> to vector<32x64xf32>
    %12 = vector.shape_cast %3 : vector<2x16x64xf32> to vector<32x64xf32>
    %13 = vector.shape_cast %10 : vector<2x16x64xf32> to vector<32x64xf32>
    %14 = vector.extract_strided_slice %4 {offsets = [0, 0, 0], sizes = [1, 64, 32], strides = [1, 1, 1]} : vector<3x64x32xf32> to vector<1x64x32xf32>
    %15 = vector.shape_cast %14 : vector<1x64x32xf32> to vector<64x32xf32>
    %cst_6 = arith.constant dense<0.000000e+00> : vector<32x32xf32>
    %16 = tpu.matmul %11, %15, %cst_6 {dimension_numbers = #tpu.dot_dimension_numbers<[1], [0], [0], [1], [0, 0, 1, 1], [], []>} : vector<32x64xf32>, vector<64x32xf32>, vector<32x32xf32> -> vector<32x32xf32>
    %17 = vector.extract_strided_slice %4 {offsets = [1, 0, 0], sizes = [1, 64, 32], strides = [1, 1, 1]} : vector<3x64x32xf32> to vector<1x64x32xf32>
    %18 = vector.shape_cast %17 : vector<1x64x32xf32> to vector<64x32xf32>
    %cst_7 = arith.constant dense<0.000000e+00> : vector<32x32xf32>
    %19 = tpu.matmul %12, %18, %cst_7 {dimension_numbers = #tpu.dot_dimension_numbers<[1], [0], [0], [1], [0, 0, 1, 1], [], []>} : vector<32x64xf32>, vector<64x32xf32>, vector<32x32xf32> -> vector<32x32xf32>
    %20 = arith.addf %16, %19 : vector<32x32xf32>
    %21 = vector.extract_strided_slice %4 {offsets = [2, 0, 0], sizes = [1, 64, 32], strides = [1, 1, 1]} : vector<3x64x32xf32> to vector<1x64x32xf32>
    %22 = vector.shape_cast %21 : vector<1x64x32xf32> to vector<64x32xf32>
    %cst_8 = arith.constant dense<0.000000e+00> : vector<32x32xf32>
    %23 = tpu.matmul %13, %22, %cst_8 {dimension_numbers = #tpu.dot_dimension_numbers<[1], [0], [0], [1], [0, 0, 1, 1], [], []>} : vector<32x64xf32>, vector<64x32xf32>, vector<32x32xf32> -> vector<32x32xf32>
    %24 = arith.addf %20, %23 : vector<32x32xf32>
    %25 = vector.broadcast %5 : vector<1x32xf32> to vector<32x32xf32>
    %26 = arith.addf %24, %25 : vector<32x32xf32>
    %cst_9 = arith.constant 0.000000e+00 : f32
    %27 = vector.broadcast %cst_9 : f32 to vector<32x32xf32>
    %28 = arith.maximumf %26, %27 : vector<32x32xf32>
    %29 = vector.shape_cast %28 : vector<32x32xf32> to vector<2x16x32xf32>
    %c0_10 = arith.constant 0 : index
    %c0_11 = arith.constant 0 : index
    %c0_12 = arith.constant 0 : index
    %30 = vector.load %arg3[%c0_10, %c0_11, %c0_12] : memref<3x32x32xf32, #tpu.memory_space<vmem>>, vector<3x32x32xf32>
    %c0_13 = arith.constant 0 : index
    %c0_14 = arith.constant 0 : index
    %31 = vector.load %arg11[%c0_13, %c0_14] : memref<1x32xf32, #tpu.memory_space<vmem>>, vector<1x32xf32>
    %cst_15 = arith.constant 0.000000e+00 : f32
    %32 = vector.broadcast %cst_15 : f32 to vector<2x1x32xf32>
    %33 = vector.extract_strided_slice %29 {offsets = [0, 0, 0], sizes = [2, 15, 32], strides = [1, 1, 1]} : vector<2x16x32xf32> to vector<2x15x32xf32>
    %34 = tpu.concatenate %32, %33 in 1 : vector<2x1x32xf32>, vector<2x15x32xf32> -> vector<2x16x32xf32>
    %35 = vector.extract_strided_slice %29 {offsets = [0, 1, 0], sizes = [2, 15, 32], strides = [1, 1, 1]} : vector<2x16x32xf32> to vector<2x15x32xf32>
    %36 = tpu.concatenate %35, %32 in 1 : vector<2x15x32xf32>, vector<2x1x32xf32> -> vector<2x16x32xf32>
    %37 = vector.shape_cast %34 : vector<2x16x32xf32> to vector<32x32xf32>
    %38 = vector.shape_cast %29 : vector<2x16x32xf32> to vector<32x32xf32>
    %39 = vector.shape_cast %36 : vector<2x16x32xf32> to vector<32x32xf32>
    %40 = vector.extract_strided_slice %30 {offsets = [0, 0, 0], sizes = [1, 32, 32], strides = [1, 1, 1]} : vector<3x32x32xf32> to vector<1x32x32xf32>
    %41 = vector.shape_cast %40 : vector<1x32x32xf32> to vector<32x32xf32>
    %cst_16 = arith.constant dense<0.000000e+00> : vector<32x32xf32>
    %42 = tpu.matmul %37, %41, %cst_16 {dimension_numbers = #tpu.dot_dimension_numbers<[1], [0], [0], [1], [0, 0, 1, 1], [], []>} : vector<32x32xf32>, vector<32x32xf32>, vector<32x32xf32> -> vector<32x32xf32>
    %43 = vector.extract_strided_slice %30 {offsets = [1, 0, 0], sizes = [1, 32, 32], strides = [1, 1, 1]} : vector<3x32x32xf32> to vector<1x32x32xf32>
    %44 = vector.shape_cast %43 : vector<1x32x32xf32> to vector<32x32xf32>
    %cst_17 = arith.constant dense<0.000000e+00> : vector<32x32xf32>
    %45 = tpu.matmul %38, %44, %cst_17 {dimension_numbers = #tpu.dot_dimension_numbers<[1], [0], [0], [1], [0, 0, 1, 1], [], []>} : vector<32x32xf32>, vector<32x32xf32>, vector<32x32xf32> -> vector<32x32xf32>
    %46 = arith.addf %42, %45 : vector<32x32xf32>
    %47 = vector.extract_strided_slice %30 {offsets = [2, 0, 0], sizes = [1, 32, 32], strides = [1, 1, 1]} : vector<3x32x32xf32> to vector<1x32x32xf32>
    %48 = vector.shape_cast %47 : vector<1x32x32xf32> to vector<32x32xf32>
    %cst_18 = arith.constant dense<0.000000e+00> : vector<32x32xf32>
    %49 = tpu.matmul %39, %48, %cst_18 {dimension_numbers = #tpu.dot_dimension_numbers<[1], [0], [0], [1], [0, 0, 1, 1], [], []>} : vector<32x32xf32>, vector<32x32xf32>, vector<32x32xf32> -> vector<32x32xf32>
    %50 = arith.addf %46, %49 : vector<32x32xf32>
    %51 = vector.broadcast %31 : vector<1x32xf32> to vector<32x32xf32>
    %52 = arith.addf %50, %51 : vector<32x32xf32>
    %53 = vector.shape_cast %52 : vector<32x32xf32> to vector<2x16x32xf32>
    %c0_19 = arith.constant 0 : index
    %c0_20 = arith.constant 0 : index
    %c0_21 = arith.constant 0 : index
    %54 = vector.load %arg4[%c0_19, %c0_20, %c0_21] : memref<3x32x16xf32, #tpu.memory_space<vmem>>, vector<3x32x16xf32>
    %c0_22 = arith.constant 0 : index
    %c0_23 = arith.constant 0 : index
    %55 = vector.load %arg12[%c0_22, %c0_23] : memref<1x16xf32, #tpu.memory_space<vmem>>, vector<1x16xf32>
    %cst_24 = arith.constant 0.000000e+00 : f32
    %56 = vector.broadcast %cst_24 : f32 to vector<2x1x32xf32>
    %57 = vector.extract_strided_slice %53 {offsets = [0, 0, 0], sizes = [2, 15, 32], strides = [1, 1, 1]} : vector<2x16x32xf32> to vector<2x15x32xf32>
    %58 = tpu.concatenate %56, %57 in 1 : vector<2x1x32xf32>, vector<2x15x32xf32> -> vector<2x16x32xf32>
    %59 = vector.extract_strided_slice %53 {offsets = [0, 1, 0], sizes = [2, 15, 32], strides = [1, 1, 1]} : vector<2x16x32xf32> to vector<2x15x32xf32>
    %60 = tpu.concatenate %59, %56 in 1 : vector<2x15x32xf32>, vector<2x1x32xf32> -> vector<2x16x32xf32>
    %61 = vector.shape_cast %58 : vector<2x16x32xf32> to vector<32x32xf32>
    %62 = vector.shape_cast %53 : vector<2x16x32xf32> to vector<32x32xf32>
    %63 = vector.shape_cast %60 : vector<2x16x32xf32> to vector<32x32xf32>
    %64 = vector.extract_strided_slice %54 {offsets = [0, 0, 0], sizes = [1, 32, 16], strides = [1, 1, 1]} : vector<3x32x16xf32> to vector<1x32x16xf32>
    %65 = vector.shape_cast %64 : vector<1x32x16xf32> to vector<32x16xf32>
    %cst_25 = arith.constant dense<0.000000e+00> : vector<32x16xf32>
    %66 = tpu.matmul %61, %65, %cst_25 {dimension_numbers = #tpu.dot_dimension_numbers<[1], [0], [0], [1], [0, 0, 1, 1], [], []>} : vector<32x32xf32>, vector<32x16xf32>, vector<32x16xf32> -> vector<32x16xf32>
    %67 = vector.extract_strided_slice %54 {offsets = [1, 0, 0], sizes = [1, 32, 16], strides = [1, 1, 1]} : vector<3x32x16xf32> to vector<1x32x16xf32>
    %68 = vector.shape_cast %67 : vector<1x32x16xf32> to vector<32x16xf32>
    %cst_26 = arith.constant dense<0.000000e+00> : vector<32x16xf32>
    %69 = tpu.matmul %62, %68, %cst_26 {dimension_numbers = #tpu.dot_dimension_numbers<[1], [0], [0], [1], [0, 0, 1, 1], [], []>} : vector<32x32xf32>, vector<32x16xf32>, vector<32x16xf32> -> vector<32x16xf32>
    %70 = arith.addf %66, %69 : vector<32x16xf32>
    %71 = vector.extract_strided_slice %54 {offsets = [2, 0, 0], sizes = [1, 32, 16], strides = [1, 1, 1]} : vector<3x32x16xf32> to vector<1x32x16xf32>
    %72 = vector.shape_cast %71 : vector<1x32x16xf32> to vector<32x16xf32>
    %cst_27 = arith.constant dense<0.000000e+00> : vector<32x16xf32>
    %73 = tpu.matmul %63, %72, %cst_27 {dimension_numbers = #tpu.dot_dimension_numbers<[1], [0], [0], [1], [0, 0, 1, 1], [], []>} : vector<32x32xf32>, vector<32x16xf32>, vector<32x16xf32> -> vector<32x16xf32>
    %74 = arith.addf %70, %73 : vector<32x16xf32>
    %75 = vector.broadcast %55 : vector<1x16xf32> to vector<32x16xf32>
    %76 = arith.addf %74, %75 : vector<32x16xf32>
    %cst_28 = arith.constant 0.000000e+00 : f32
    %77 = vector.broadcast %cst_28 : f32 to vector<32x16xf32>
    %78 = arith.maximumf %76, %77 : vector<32x16xf32>
    %79 = vector.shape_cast %78 : vector<32x16xf32> to vector<2x16x16xf32>
    %c0_29 = arith.constant 0 : index
    %c0_30 = arith.constant 0 : index
    %c0_31 = arith.constant 0 : index
    %80 = vector.load %arg5[%c0_29, %c0_30, %c0_31] : memref<3x16x16xf32, #tpu.memory_space<vmem>>, vector<3x16x16xf32>
    %c0_32 = arith.constant 0 : index
    %c0_33 = arith.constant 0 : index
    %81 = vector.load %arg13[%c0_32, %c0_33] : memref<1x16xf32, #tpu.memory_space<vmem>>, vector<1x16xf32>
    %cst_34 = arith.constant 0.000000e+00 : f32
    %82 = vector.broadcast %cst_34 : f32 to vector<2x1x16xf32>
    %83 = vector.extract_strided_slice %79 {offsets = [0, 0, 0], sizes = [2, 15, 16], strides = [1, 1, 1]} : vector<2x16x16xf32> to vector<2x15x16xf32>
    %84 = tpu.concatenate %82, %83 in 1 : vector<2x1x16xf32>, vector<2x15x16xf32> -> vector<2x16x16xf32>
    %85 = vector.extract_strided_slice %79 {offsets = [0, 1, 0], sizes = [2, 15, 16], strides = [1, 1, 1]} : vector<2x16x16xf32> to vector<2x15x16xf32>
    %86 = tpu.concatenate %85, %82 in 1 : vector<2x15x16xf32>, vector<2x1x16xf32> -> vector<2x16x16xf32>
    %87 = vector.shape_cast %84 : vector<2x16x16xf32> to vector<32x16xf32>
    %88 = vector.shape_cast %79 : vector<2x16x16xf32> to vector<32x16xf32>
    %89 = vector.shape_cast %86 : vector<2x16x16xf32> to vector<32x16xf32>
    %90 = vector.extract_strided_slice %80 {offsets = [0, 0, 0], sizes = [1, 16, 16], strides = [1, 1, 1]} : vector<3x16x16xf32> to vector<1x16x16xf32>
    %91 = vector.shape_cast %90 : vector<1x16x16xf32> to vector<16x16xf32>
    %cst_35 = arith.constant dense<0.000000e+00> : vector<32x16xf32>
    %92 = tpu.matmul %87, %91, %cst_35 {dimension_numbers = #tpu.dot_dimension_numbers<[1], [0], [0], [1], [0, 0, 1, 1], [], []>} : vector<32x16xf32>, vector<16x16xf32>, vector<32x16xf32> -> vector<32x16xf32>
    %93 = vector.extract_strided_slice %80 {offsets = [1, 0, 0], sizes = [1, 16, 16], strides = [1, 1, 1]} : vector<3x16x16xf32> to vector<1x16x16xf32>
    %94 = vector.shape_cast %93 : vector<1x16x16xf32> to vector<16x16xf32>
    %cst_36 = arith.constant dense<0.000000e+00> : vector<32x16xf32>
    %95 = tpu.matmul %88, %94, %cst_36 {dimension_numbers = #tpu.dot_dimension_numbers<[1], [0], [0], [1], [0, 0, 1, 1], [], []>} : vector<32x16xf32>, vector<16x16xf32>, vector<32x16xf32> -> vector<32x16xf32>
    %96 = arith.addf %92, %95 : vector<32x16xf32>
    %97 = vector.extract_strided_slice %80 {offsets = [2, 0, 0], sizes = [1, 16, 16], strides = [1, 1, 1]} : vector<3x16x16xf32> to vector<1x16x16xf32>
    %98 = vector.shape_cast %97 : vector<1x16x16xf32> to vector<16x16xf32>
    %cst_37 = arith.constant dense<0.000000e+00> : vector<32x16xf32>
    %99 = tpu.matmul %89, %98, %cst_37 {dimension_numbers = #tpu.dot_dimension_numbers<[1], [0], [0], [1], [0, 0, 1, 1], [], []>} : vector<32x16xf32>, vector<16x16xf32>, vector<32x16xf32> -> vector<32x16xf32>
    %100 = arith.addf %96, %99 : vector<32x16xf32>
    %101 = vector.broadcast %81 : vector<1x16xf32> to vector<32x16xf32>
    %102 = arith.addf %100, %101 : vector<32x16xf32>
    %103 = vector.shape_cast %102 : vector<32x16xf32> to vector<2x16x16xf32>
    %c0_38 = arith.constant 0 : index
    %c0_39 = arith.constant 0 : index
    %c0_40 = arith.constant 0 : index
    %104 = vector.load %arg6[%c0_38, %c0_39, %c0_40] : memref<3x16x8xf32, #tpu.memory_space<vmem>>, vector<3x16x8xf32>
    %c0_41 = arith.constant 0 : index
    %c0_42 = arith.constant 0 : index
    %105 = vector.load %arg14[%c0_41, %c0_42] : memref<1x8xf32, #tpu.memory_space<vmem>>, vector<1x8xf32>
    %cst_43 = arith.constant 0.000000e+00 : f32
    %106 = vector.broadcast %cst_43 : f32 to vector<2x1x16xf32>
    %107 = vector.extract_strided_slice %103 {offsets = [0, 0, 0], sizes = [2, 15, 16], strides = [1, 1, 1]} : vector<2x16x16xf32> to vector<2x15x16xf32>
    %108 = tpu.concatenate %106, %107 in 1 : vector<2x1x16xf32>, vector<2x15x16xf32> -> vector<2x16x16xf32>
    %109 = vector.extract_strided_slice %103 {offsets = [0, 1, 0], sizes = [2, 15, 16], strides = [1, 1, 1]} : vector<2x16x16xf32> to vector<2x15x16xf32>
    %110 = tpu.concatenate %109, %106 in 1 : vector<2x15x16xf32>, vector<2x1x16xf32> -> vector<2x16x16xf32>
    %111 = vector.shape_cast %108 : vector<2x16x16xf32> to vector<32x16xf32>
    %112 = vector.shape_cast %103 : vector<2x16x16xf32> to vector<32x16xf32>
    %113 = vector.shape_cast %110 : vector<2x16x16xf32> to vector<32x16xf32>
    %114 = vector.extract_strided_slice %104 {offsets = [0, 0, 0], sizes = [1, 16, 8], strides = [1, 1, 1]} : vector<3x16x8xf32> to vector<1x16x8xf32>
    %115 = vector.shape_cast %114 : vector<1x16x8xf32> to vector<16x8xf32>
    %cst_44 = arith.constant dense<0.000000e+00> : vector<32x8xf32>
    %116 = tpu.matmul %111, %115, %cst_44 {dimension_numbers = #tpu.dot_dimension_numbers<[1], [0], [0], [1], [0, 0, 1, 1], [], []>} : vector<32x16xf32>, vector<16x8xf32>, vector<32x8xf32> -> vector<32x8xf32>
    %117 = vector.extract_strided_slice %104 {offsets = [1, 0, 0], sizes = [1, 16, 8], strides = [1, 1, 1]} : vector<3x16x8xf32> to vector<1x16x8xf32>
    %118 = vector.shape_cast %117 : vector<1x16x8xf32> to vector<16x8xf32>
    %cst_45 = arith.constant dense<0.000000e+00> : vector<32x8xf32>
    %119 = tpu.matmul %112, %118, %cst_45 {dimension_numbers = #tpu.dot_dimension_numbers<[1], [0], [0], [1], [0, 0, 1, 1], [], []>} : vector<32x16xf32>, vector<16x8xf32>, vector<32x8xf32> -> vector<32x8xf32>
    %120 = arith.addf %116, %119 : vector<32x8xf32>
    %121 = vector.extract_strided_slice %104 {offsets = [2, 0, 0], sizes = [1, 16, 8], strides = [1, 1, 1]} : vector<3x16x8xf32> to vector<1x16x8xf32>
    %122 = vector.shape_cast %121 : vector<1x16x8xf32> to vector<16x8xf32>
    %cst_46 = arith.constant dense<0.000000e+00> : vector<32x8xf32>
    %123 = tpu.matmul %113, %122, %cst_46 {dimension_numbers = #tpu.dot_dimension_numbers<[1], [0], [0], [1], [0, 0, 1, 1], [], []>} : vector<32x16xf32>, vector<16x8xf32>, vector<32x8xf32> -> vector<32x8xf32>
    %124 = arith.addf %120, %123 : vector<32x8xf32>
    %125 = vector.broadcast %105 : vector<1x8xf32> to vector<32x8xf32>
    %126 = arith.addf %124, %125 : vector<32x8xf32>
    %cst_47 = arith.constant 0.000000e+00 : f32
    %127 = vector.broadcast %cst_47 : f32 to vector<32x8xf32>
    %128 = arith.maximumf %126, %127 : vector<32x8xf32>
    %129 = vector.shape_cast %128 : vector<32x8xf32> to vector<2x16x8xf32>
    %c0_48 = arith.constant 0 : index
    %c0_49 = arith.constant 0 : index
    %c0_50 = arith.constant 0 : index
    %130 = vector.load %arg7[%c0_48, %c0_49, %c0_50] : memref<3x8x8xf32, #tpu.memory_space<vmem>>, vector<3x8x8xf32>
    %c0_51 = arith.constant 0 : index
    %c0_52 = arith.constant 0 : index
    %131 = vector.load %arg15[%c0_51, %c0_52] : memref<1x8xf32, #tpu.memory_space<vmem>>, vector<1x8xf32>
    %cst_53 = arith.constant 0.000000e+00 : f32
    %132 = vector.broadcast %cst_53 : f32 to vector<2x1x8xf32>
    %133 = vector.extract_strided_slice %129 {offsets = [0, 0, 0], sizes = [2, 15, 8], strides = [1, 1, 1]} : vector<2x16x8xf32> to vector<2x15x8xf32>
    %134 = tpu.concatenate %132, %133 in 1 : vector<2x1x8xf32>, vector<2x15x8xf32> -> vector<2x16x8xf32>
    %135 = vector.extract_strided_slice %129 {offsets = [0, 1, 0], sizes = [2, 15, 8], strides = [1, 1, 1]} : vector<2x16x8xf32> to vector<2x15x8xf32>
    %136 = tpu.concatenate %135, %132 in 1 : vector<2x15x8xf32>, vector<2x1x8xf32> -> vector<2x16x8xf32>
    %137 = vector.shape_cast %134 : vector<2x16x8xf32> to vector<32x8xf32>
    %138 = vector.shape_cast %129 : vector<2x16x8xf32> to vector<32x8xf32>
    %139 = vector.shape_cast %136 : vector<2x16x8xf32> to vector<32x8xf32>
    %140 = vector.extract_strided_slice %130 {offsets = [0, 0, 0], sizes = [1, 8, 8], strides = [1, 1, 1]} : vector<3x8x8xf32> to vector<1x8x8xf32>
    %141 = vector.shape_cast %140 : vector<1x8x8xf32> to vector<8x8xf32>
    %cst_54 = arith.constant dense<0.000000e+00> : vector<32x8xf32>
    %142 = tpu.matmul %137, %141, %cst_54 {dimension_numbers = #tpu.dot_dimension_numbers<[1], [0], [0], [1], [0, 0, 1, 1], [], []>} : vector<32x8xf32>, vector<8x8xf32>, vector<32x8xf32> -> vector<32x8xf32>
    %143 = vector.extract_strided_slice %130 {offsets = [1, 0, 0], sizes = [1, 8, 8], strides = [1, 1, 1]} : vector<3x8x8xf32> to vector<1x8x8xf32>
    %144 = vector.shape_cast %143 : vector<1x8x8xf32> to vector<8x8xf32>
    %cst_55 = arith.constant dense<0.000000e+00> : vector<32x8xf32>
    %145 = tpu.matmul %138, %144, %cst_55 {dimension_numbers = #tpu.dot_dimension_numbers<[1], [0], [0], [1], [0, 0, 1, 1], [], []>} : vector<32x8xf32>, vector<8x8xf32>, vector<32x8xf32> -> vector<32x8xf32>
    %146 = arith.addf %142, %145 : vector<32x8xf32>
    %147 = vector.extract_strided_slice %130 {offsets = [2, 0, 0], sizes = [1, 8, 8], strides = [1, 1, 1]} : vector<3x8x8xf32> to vector<1x8x8xf32>
    %148 = vector.shape_cast %147 : vector<1x8x8xf32> to vector<8x8xf32>
    %cst_56 = arith.constant dense<0.000000e+00> : vector<32x8xf32>
    %149 = tpu.matmul %139, %148, %cst_56 {dimension_numbers = #tpu.dot_dimension_numbers<[1], [0], [0], [1], [0, 0, 1, 1], [], []>} : vector<32x8xf32>, vector<8x8xf32>, vector<32x8xf32> -> vector<32x8xf32>
    %150 = arith.addf %146, %149 : vector<32x8xf32>
    %151 = vector.broadcast %131 : vector<1x8xf32> to vector<32x8xf32>
    %152 = arith.addf %150, %151 : vector<32x8xf32>
    %153 = vector.shape_cast %152 : vector<32x8xf32> to vector<2x16x8xf32>
    %c0_57 = arith.constant 0 : index
    %c0_58 = arith.constant 0 : index
    %c0_59 = arith.constant 0 : index
    %154 = vector.load %arg8[%c0_57, %c0_58, %c0_59] : memref<3x8x4xf32, #tpu.memory_space<vmem>>, vector<3x8x4xf32>
    %c0_60 = arith.constant 0 : index
    %c0_61 = arith.constant 0 : index
    %155 = vector.load %arg16[%c0_60, %c0_61] : memref<1x4xf32, #tpu.memory_space<vmem>>, vector<1x4xf32>
    %cst_62 = arith.constant 0.000000e+00 : f32
    %156 = vector.broadcast %cst_62 : f32 to vector<2x1x8xf32>
    %157 = vector.extract_strided_slice %153 {offsets = [0, 0, 0], sizes = [2, 15, 8], strides = [1, 1, 1]} : vector<2x16x8xf32> to vector<2x15x8xf32>
    %158 = tpu.concatenate %156, %157 in 1 : vector<2x1x8xf32>, vector<2x15x8xf32> -> vector<2x16x8xf32>
    %159 = vector.extract_strided_slice %153 {offsets = [0, 1, 0], sizes = [2, 15, 8], strides = [1, 1, 1]} : vector<2x16x8xf32> to vector<2x15x8xf32>
    %160 = tpu.concatenate %159, %156 in 1 : vector<2x15x8xf32>, vector<2x1x8xf32> -> vector<2x16x8xf32>
    %161 = vector.shape_cast %158 : vector<2x16x8xf32> to vector<32x8xf32>
    %162 = vector.shape_cast %153 : vector<2x16x8xf32> to vector<32x8xf32>
    %163 = vector.shape_cast %160 : vector<2x16x8xf32> to vector<32x8xf32>
    %164 = vector.extract_strided_slice %154 {offsets = [0, 0, 0], sizes = [1, 8, 4], strides = [1, 1, 1]} : vector<3x8x4xf32> to vector<1x8x4xf32>
    %165 = vector.shape_cast %164 : vector<1x8x4xf32> to vector<8x4xf32>
    %cst_63 = arith.constant dense<0.000000e+00> : vector<32x4xf32>
    %166 = tpu.matmul %161, %165, %cst_63 {dimension_numbers = #tpu.dot_dimension_numbers<[1], [0], [0], [1], [0, 0, 1, 1], [], []>} : vector<32x8xf32>, vector<8x4xf32>, vector<32x4xf32> -> vector<32x4xf32>
    %167 = vector.extract_strided_slice %154 {offsets = [1, 0, 0], sizes = [1, 8, 4], strides = [1, 1, 1]} : vector<3x8x4xf32> to vector<1x8x4xf32>
    %168 = vector.shape_cast %167 : vector<1x8x4xf32> to vector<8x4xf32>
    %cst_64 = arith.constant dense<0.000000e+00> : vector<32x4xf32>
    %169 = tpu.matmul %162, %168, %cst_64 {dimension_numbers = #tpu.dot_dimension_numbers<[1], [0], [0], [1], [0, 0, 1, 1], [], []>} : vector<32x8xf32>, vector<8x4xf32>, vector<32x4xf32> -> vector<32x4xf32>
    %170 = arith.addf %166, %169 : vector<32x4xf32>
    %171 = vector.extract_strided_slice %154 {offsets = [2, 0, 0], sizes = [1, 8, 4], strides = [1, 1, 1]} : vector<3x8x4xf32> to vector<1x8x4xf32>
    %172 = vector.shape_cast %171 : vector<1x8x4xf32> to vector<8x4xf32>
    %cst_65 = arith.constant dense<0.000000e+00> : vector<32x4xf32>
    %173 = tpu.matmul %163, %172, %cst_65 {dimension_numbers = #tpu.dot_dimension_numbers<[1], [0], [0], [1], [0, 0, 1, 1], [], []>} : vector<32x8xf32>, vector<8x4xf32>, vector<32x4xf32> -> vector<32x4xf32>
    %174 = arith.addf %170, %173 : vector<32x4xf32>
    %175 = vector.broadcast %155 : vector<1x4xf32> to vector<32x4xf32>
    %176 = arith.addf %174, %175 : vector<32x4xf32>
    %cst_66 = arith.constant 0.000000e+00 : f32
    %177 = vector.broadcast %cst_66 : f32 to vector<32x4xf32>
    %178 = arith.maximumf %176, %177 : vector<32x4xf32>
    %179 = vector.shape_cast %178 : vector<32x4xf32> to vector<2x16x4xf32>
    %c0_67 = arith.constant 0 : index
    %c0_68 = arith.constant 0 : index
    %c0_69 = arith.constant 0 : index
    %180 = vector.load %arg9[%c0_67, %c0_68, %c0_69] : memref<3x4x4xf32, #tpu.memory_space<vmem>>, vector<3x4x4xf32>
    %c0_70 = arith.constant 0 : index
    %c0_71 = arith.constant 0 : index
    %181 = vector.load %arg17[%c0_70, %c0_71] : memref<1x4xf32, #tpu.memory_space<vmem>>, vector<1x4xf32>
    %cst_72 = arith.constant 0.000000e+00 : f32
    %182 = vector.broadcast %cst_72 : f32 to vector<2x1x4xf32>
    %183 = vector.extract_strided_slice %179 {offsets = [0, 0, 0], sizes = [2, 15, 4], strides = [1, 1, 1]} : vector<2x16x4xf32> to vector<2x15x4xf32>
    %184 = tpu.concatenate %182, %183 in 1 : vector<2x1x4xf32>, vector<2x15x4xf32> -> vector<2x16x4xf32>
    %185 = vector.extract_strided_slice %179 {offsets = [0, 1, 0], sizes = [2, 15, 4], strides = [1, 1, 1]} : vector<2x16x4xf32> to vector<2x15x4xf32>
    %186 = tpu.concatenate %185, %182 in 1 : vector<2x15x4xf32>, vector<2x1x4xf32> -> vector<2x16x4xf32>
    %187 = vector.shape_cast %184 : vector<2x16x4xf32> to vector<32x4xf32>
    %188 = vector.shape_cast %179 : vector<2x16x4xf32> to vector<32x4xf32>
    %189 = vector.shape_cast %186 : vector<2x16x4xf32> to vector<32x4xf32>
    %190 = vector.extract_strided_slice %180 {offsets = [0, 0, 0], sizes = [1, 4, 4], strides = [1, 1, 1]} : vector<3x4x4xf32> to vector<1x4x4xf32>
    %191 = vector.shape_cast %190 : vector<1x4x4xf32> to vector<4x4xf32>
    %cst_73 = arith.constant dense<0.000000e+00> : vector<32x4xf32>
    %192 = tpu.matmul %187, %191, %cst_73 {dimension_numbers = #tpu.dot_dimension_numbers<[1], [0], [0], [1], [0, 0, 1, 1], [], []>} : vector<32x4xf32>, vector<4x4xf32>, vector<32x4xf32> -> vector<32x4xf32>
    %193 = vector.extract_strided_slice %180 {offsets = [1, 0, 0], sizes = [1, 4, 4], strides = [1, 1, 1]} : vector<3x4x4xf32> to vector<1x4x4xf32>
    %194 = vector.shape_cast %193 : vector<1x4x4xf32> to vector<4x4xf32>
    %cst_74 = arith.constant dense<0.000000e+00> : vector<32x4xf32>
    %195 = tpu.matmul %188, %194, %cst_74 {dimension_numbers = #tpu.dot_dimension_numbers<[1], [0], [0], [1], [0, 0, 1, 1], [], []>} : vector<32x4xf32>, vector<4x4xf32>, vector<32x4xf32> -> vector<32x4xf32>
    %196 = arith.addf %192, %195 : vector<32x4xf32>
    %197 = vector.extract_strided_slice %180 {offsets = [2, 0, 0], sizes = [1, 4, 4], strides = [1, 1, 1]} : vector<3x4x4xf32> to vector<1x4x4xf32>
    %198 = vector.shape_cast %197 : vector<1x4x4xf32> to vector<4x4xf32>
    %cst_75 = arith.constant dense<0.000000e+00> : vector<32x4xf32>
    %199 = tpu.matmul %189, %198, %cst_75 {dimension_numbers = #tpu.dot_dimension_numbers<[1], [0], [0], [1], [0, 0, 1, 1], [], []>} : vector<32x4xf32>, vector<4x4xf32>, vector<32x4xf32> -> vector<32x4xf32>
    %200 = arith.addf %196, %199 : vector<32x4xf32>
    %201 = vector.broadcast %181 : vector<1x4xf32> to vector<32x4xf32>
    %202 = arith.addf %200, %201 : vector<32x4xf32>
    %203 = vector.shape_cast %202 : vector<32x4xf32> to vector<2x16x4xf32>
    %c0_76 = arith.constant 0 : index
    %c0_77 = arith.constant 0 : index
    %c0_78 = arith.constant 0 : index
    %204 = vector.load %arg18[%c0_76, %c0_77, %c0_78] : memref<2x16x4xf32, #tpu.memory_space<vmem>>, vector<2x16x4xf32>
    tpu.vector_store %arg18[%c0_76, %c0_77, %c0_78], %203 {strides = array<i32>} : memref<2x16x4xf32, #tpu.memory_space<vmem>>, vector<2x16x4xf32>,
    return
  }
  func.func @transform_0(%arg0: i32) -> (i32, i32) {
    %c0_i32 = arith.constant 0 : i32
    %c0_i32_0 = arith.constant 0 : i32
    return %arg0, %c0_i32 : i32, i32
  }
  func.func @transform_1(%arg0: i32) -> (i32, i32, i32) {
    %c0_i32 = arith.constant 0 : i32
    %c0_i32_0 = arith.constant 0 : i32
    %c0_i32_1 = arith.constant 0 : i32
    %c0_i32_2 = arith.constant 0 : i32
    return %c0_i32, %c0_i32_0, %c0_i32_1 : i32, i32, i32
  }
  func.func @transform_2(%arg0: i32) -> (i32, i32, i32) {
    %c0_i32 = arith.constant 0 : i32
    %c0_i32_0 = arith.constant 0 : i32
    %c0_i32_1 = arith.constant 0 : i32
    %c0_i32_2 = arith.constant 0 : i32
    return %c0_i32, %c0_i32_0, %c0_i32_1 : i32, i32, i32
  }
  func.func @transform_3(%arg0: i32) -> (i32, i32, i32) {
    %c0_i32 = arith.constant 0 : i32
    %c0_i32_0 = arith.constant 0 : i32
    %c0_i32_1 = arith.constant 0 : i32
    %c0_i32_2 = arith.constant 0 : i32
    return %c0_i32, %c0_i32_0, %c0_i32_1 : i32, i32, i32
  }
  func.func @transform_4(%arg0: i32) -> (i32, i32, i32) {
    %c0_i32 = arith.constant 0 : i32
    %c0_i32_0 = arith.constant 0 : i32
    %c0_i32_1 = arith.constant 0 : i32
    %c0_i32_2 = arith.constant 0 : i32
    return %c0_i32, %c0_i32_0, %c0_i32_1 : i32, i32, i32
  }
  func.func @transform_5(%arg0: i32) -> (i32, i32, i32) {
    %c0_i32 = arith.constant 0 : i32
    %c0_i32_0 = arith.constant 0 : i32
    %c0_i32_1 = arith.constant 0 : i32
    %c0_i32_2 = arith.constant 0 : i32
    return %c0_i32, %c0_i32_0, %c0_i32_1 : i32, i32, i32
  }
  func.func @transform_6(%arg0: i32) -> (i32, i32, i32) {
    %c0_i32 = arith.constant 0 : i32
    %c0_i32_0 = arith.constant 0 : i32
    %c0_i32_1 = arith.constant 0 : i32
    %c0_i32_2 = arith.constant 0 : i32
    return %c0_i32, %c0_i32_0, %c0_i32_1 : i32, i32, i32
  }
  func.func @transform_7(%arg0: i32) -> (i32, i32, i32) {
    %c0_i32 = arith.constant 0 : i32
    %c0_i32_0 = arith.constant 0 : i32
    %c0_i32_1 = arith.constant 0 : i32
    %c0_i32_2 = arith.constant 0 : i32
    return %c0_i32, %c0_i32_0, %c0_i32_1 : i32, i32, i32
  }
  func.func @transform_8(%arg0: i32) -> (i32, i32, i32) {
    %c0_i32 = arith.constant 0 : i32
    %c0_i32_0 = arith.constant 0 : i32
    %c0_i32_1 = arith.constant 0 : i32
    %c0_i32_2 = arith.constant 0 : i32
    return %c0_i32, %c0_i32_0, %c0_i32_1 : i32, i32, i32
  }
  func.func @transform_9(%arg0: i32) -> (i32, i32) {
    %c0_i32 = arith.constant 0 : i32
    %c0_i32_0 = arith.constant 0 : i32
    %c0_i32_1 = arith.constant 0 : i32
    return %c0_i32, %c0_i32_0 : i32, i32
  }
  func.func @transform_10(%arg0: i32) -> (i32, i32) {
    %c0_i32 = arith.constant 0 : i32
    %c0_i32_0 = arith.constant 0 : i32
    %c0_i32_1 = arith.constant 0 : i32
    return %c0_i32, %c0_i32_0 : i32, i32
  }
  func.func @transform_11(%arg0: i32) -> (i32, i32) {
    %c0_i32 = arith.constant 0 : i32
    %c0_i32_0 = arith.constant 0 : i32
    %c0_i32_1 = arith.constant 0 : i32
    return %c0_i32, %c0_i32_0 : i32, i32
  }
  func.func @transform_12(%arg0: i32) -> (i32, i32) {
    %c0_i32 = arith.constant 0 : i32
    %c0_i32_0 = arith.constant 0 : i32
    %c0_i32_1 = arith.constant 0 : i32
    return %c0_i32, %c0_i32_0 : i32, i32
  }
  func.func @transform_13(%arg0: i32) -> (i32, i32) {
    %c0_i32 = arith.constant 0 : i32
    %c0_i32_0 = arith.constant 0 : i32
    %c0_i32_1 = arith.constant 0 : i32
    return %c0_i32, %c0_i32_0 : i32, i32
  }
  func.func @transform_14(%arg0: i32) -> (i32, i32) {
    %c0_i32 = arith.constant 0 : i32
    %c0_i32_0 = arith.constant 0 : i32
    %c0_i32_1 = arith.constant 0 : i32
    return %c0_i32, %c0_i32_0 : i32, i32
  }
  func.func @transform_15(%arg0: i32) -> (i32, i32) {
    %c0_i32 = arith.constant 0 : i32
    %c0_i32_0 = arith.constant 0 : i32
    %c0_i32_1 = arith.constant 0 : i32
    return %c0_i32, %c0_i32_0 : i32, i32
  }
  func.func @transform_16(%arg0: i32) -> (i32, i32) {
    %c0_i32 = arith.constant 0 : i32
    %c0_i32_0 = arith.constant 0 : i32
    %c0_i32_1 = arith.constant 0 : i32
    return %c0_i32, %c0_i32_0 : i32, i32
  }
  func.func @transform_17(%arg0: i32) -> (i32, i32, i32) {
    %c0_i32 = arith.constant 0 : i32
    %c0_i32_0 = arith.constant 0 : i32
    %c0_i32_1 = arith.constant 0 : i32
    return %arg0, %c0_i32, %c0_i32_0 : i32, i32, i32
  }
}

</mosaic_0001>

<llo_original>
// kernel: tpu_custom_call.1
$region0: #{tpu_custom_call.1}
  #allocation0 [shape = 'u32[]', space=smem, size = 0x4, offset = 0x4, fixed_abs, tag = 'smem constant byte address 0x4 - core index']
  #allocation1 [shape = 'u32[144,128]{1,0:T(1,128)}', space=vmem, size = 0x12000, scoped, tag = 'internal scratch']
  %s0 = inlined_call_operand.vmem [shape: f32[2,64], index: 0, kind: input, shape index: {}]
  %s1 = inlined_call_operand.vmem [shape: f32[3,64,32], index: 1, kind: input, shape index: {}]
  %s2 = inlined_call_operand.vmem [shape: f32[3,32,32], index: 2, kind: input, shape index: {}]
  %s3 = inlined_call_operand.vmem [shape: f32[3,32,16], index: 3, kind: input, shape index: {}]
  %s4 = inlined_call_operand.vmem [shape: f32[3,16,16], index: 4, kind: input, shape index: {}]
  %s5 = inlined_call_operand.vmem [shape: f32[3,16,8], index: 5, kind: input, shape index: {}]
  %s6 = inlined_call_operand.vmem [shape: f32[3,8,8], index: 6, kind: input, shape index: {}]
  %s7 = inlined_call_operand.vmem [shape: f32[3,8,4], index: 7, kind: input, shape index: {}]
  %s8 = inlined_call_operand.vmem [shape: f32[3,4,4], index: 8, kind: input, shape index: {}]
  %s9 = inlined_call_operand.vmem [shape: f32[1,32], index: 9, kind: input, shape index: {}]
  %s10 = inlined_call_operand.vmem [shape: f32[1,32], index: 10, kind: input, shape index: {}]
  %s11 = inlined_call_operand.vmem [shape: f32[1,16], index: 11, kind: input, shape index: {}]
  %s12 = inlined_call_operand.vmem [shape: f32[1,16], index: 12, kind: input, shape index: {}]
  %s13 = inlined_call_operand.vmem [shape: f32[1,8], index: 13, kind: input, shape index: {}]
  %s14 = inlined_call_operand.vmem [shape: f32[1,8], index: 14, kind: input, shape index: {}]
  %s15 = inlined_call_operand.vmem [shape: f32[1,4], index: 15, kind: input, shape index: {}]
  %s16 = inlined_call_operand.vmem [shape: f32[1,4], index: 16, kind: input, shape index: {}]
  %s17 = inlined_call_operand.vmem [shape: f32[2,16,4], index: 17, kind: output, shape index: {}]
  %s18 = sld [smem:[#allocation0]]
  $region78: #{tpu_custom_call.1} parent=0
    _
  %s20 = ssub.s32 1, %s18
  %s21 = scalar_select 0, %s20, %s18
  // Predicated region
  $region2: #{tpu_custom_call.1} parent=0 // pred_check
    _
  $region3: #{tpu_custom_call.1} parent=0 // pred_check_branch
    %23 = sbr.rel (0) target = $region5
  $region4: #{tpu_custom_call.1} parent=0 // pred_region
    _
  $region5: #{tpu_custom_call.1} parent=0 // pred_fallthru
    _
  // Predicated region
  $region6: #{tpu_custom_call.1} parent=0 // pred_check
    _
  $region7: #{tpu_custom_call.1} parent=0 // pred_check_branch
    %25 = sbr.rel (0) target = $region9
  $region8: #{tpu_custom_call.1} parent=0 // pred_region
    _
  $region9: #{tpu_custom_call.1} parent=0 // pred_fallthru
    _
  // Predicated region
  $region10: #{tpu_custom_call.1} parent=0 // pred_check
    _
  $region11: #{tpu_custom_call.1} parent=0 // pred_check_branch
    %27 = sbr.rel (0) target = $region13
  $region12: #{tpu_custom_call.1} parent=0 // pred_region
    _
  $region13: #{tpu_custom_call.1} parent=0 // pred_fallthru
    _
  // Predicated region
  $region14: #{tpu_custom_call.1} parent=0 // pred_check
    _
  $region15: #{tpu_custom_call.1} parent=0 // pred_check_branch
    %29 = sbr.rel (0) target = $region17
  $region16: #{tpu_custom_call.1} parent=0 // pred_region
    _
  $region17: #{tpu_custom_call.1} parent=0 // pred_fallthru
    _
  // Predicated region
  $region18: #{tpu_custom_call.1} parent=0 // pred_check
    _
  $region19: #{tpu_custom_call.1} parent=0 // pred_check_branch
    %31 = sbr.rel (0) target = $region21
  $region20: #{tpu_custom_call.1} parent=0 // pred_region
    _
  $region21: #{tpu_custom_call.1} parent=0 // pred_fallthru
    _
  // Predicated region
  $region22: #{tpu_custom_call.1} parent=0 // pred_check
    _
  $region23: #{tpu_custom_call.1} parent=0 // pred_check_branch
    %33 = sbr.rel (0) target = $region25
  $region24: #{tpu_custom_call.1} parent=0 // pred_region
    _
  $region25: #{tpu_custom_call.1} parent=0 // pred_fallthru
    _
  // Predicated region
  $region26: #{tpu_custom_call.1} parent=0 // pred_check
    _
  $region27: #{tpu_custom_call.1} parent=0 // pred_check_branch
    %35 = sbr.rel (0) target = $region29
  $region28: #{tpu_custom_call.1} parent=0 // pred_region
    _
  $region29: #{tpu_custom_call.1} parent=0 // pred_fallthru
    _
  // Predicated region
  $region30: #{tpu_custom_call.1} parent=0 // pred_check
    _
  $region31: #{tpu_custom_call.1} parent=0 // pred_check_branch
    %37 = sbr.rel (0) target = $region33
  $region32: #{tpu_custom_call.1} parent=0 // pred_region
    _
  $region33: #{tpu_custom_call.1} parent=0 // pred_fallthru
    _
  // Predicated region
  $region34: #{tpu_custom_call.1} parent=0 // pred_check
    _
  $region35: #{tpu_custom_call.1} parent=0 // pred_check_branch
    %39 = sbr.rel (0) target = $region37
  $region36: #{tpu_custom_call.1} parent=0 // pred_region
    _
  $region37: #{tpu_custom_call.1} parent=0 // pred_fallthru
    _
  // Predicated region
  $region38: #{tpu_custom_call.1} parent=0 // pred_check
    _
  $region39: #{tpu_custom_call.1} parent=0 // pred_check_branch
    %41 = sbr.rel (0) target = $region41
  $region40: #{tpu_custom_call.1} parent=0 // pred_region
    _
  $region41: #{tpu_custom_call.1} parent=0 // pred_fallthru
    _
  // Predicated region
  $region42: #{tpu_custom_call.1} parent=0 // pred_check
    _
  $region43: #{tpu_custom_call.1} parent=0 // pred_check_branch
    %43 = sbr.rel (0) target = $region45
  $region44: #{tpu_custom_call.1} parent=0 // pred_region
    _
  $region45: #{tpu_custom_call.1} parent=0 // pred_fallthru
    _
  // Predicated region
  $region46: #{tpu_custom_call.1} parent=0 // pred_check
    _
  $region47: #{tpu_custom_call.1} parent=0 // pred_check_branch
    %45 = sbr.rel (0) target = $region49
  $region48: #{tpu_custom_call.1} parent=0 // pred_region
    _
  $region49: #{tpu_custom_call.1} parent=0 // pred_fallthru
    _
  // Predicated region
  $region50: #{tpu_custom_call.1} parent=0 // pred_check
    _
  $region51: #{tpu_custom_call.1} parent=0 // pred_check_branch
    %47 = sbr.rel (0) target = $region53
  $region52: #{tpu_custom_call.1} parent=0 // pred_region
    _
  $region53: #{tpu_custom_call.1} parent=0 // pred_fallthru
    _
  // Predicated region
  $region54: #{tpu_custom_call.1} parent=0 // pred_check
    _
  $region55: #{tpu_custom_call.1} parent=0 // pred_check_branch
    %49 = sbr.rel (0) target = $region57
  $region56: #{tpu_custom_call.1} parent=0 // pred_region
    _
  $region57: #{tpu_custom_call.1} parent=0 // pred_fallthru
    _
  // Predicated region
  $region58: #{tpu_custom_call.1} parent=0 // pred_check
    _
  $region59: #{tpu_custom_call.1} parent=0 // pred_check_branch
    %51 = sbr.rel (0) target = $region61
  $region60: #{tpu_custom_call.1} parent=0 // pred_region
    _
  $region61: #{tpu_custom_call.1} parent=0 // pred_fallthru
    _
  // Predicated region
  $region62: #{tpu_custom_call.1} parent=0 // pred_check
    _
  $region63: #{tpu_custom_call.1} parent=0 // pred_check_branch
    %53 = sbr.rel (0) target = $region65
  $region64: #{tpu_custom_call.1} parent=0 // pred_region
    _
  $region65: #{tpu_custom_call.1} parent=0 // pred_fallthru
    _
  // Predicated region
  $region66: #{tpu_custom_call.1} parent=0 // pred_check
    _
  $region67: #{tpu_custom_call.1} parent=0 // pred_check_branch
    %55 = sbr.rel (0) target = $region69
  $region68: #{tpu_custom_call.1} parent=0 // pred_region
    _
  $region69: #{tpu_custom_call.1} parent=0 // pred_fallthru
    _
  %v56 = vld [vmem:[%s0] sm:$0x3]
  %v59 = vunpack.c.l.s4 1966171168
  %v60 = vunpack.c.0.s8 %v59
  %v61 = vlaneseq
  %v62 = vshrl.u32 %v61, 7
  %v63 = vsub.s32 %v60, %v62
  %v64 = vrot.slane %v56, %v63
  %v65 = vcombine.high %v64, %v64
  %v67 = vunpack.c.l.s4 1966171168
  %v68 = vunpack.c.0.s8 %v67
  %v69 = vlaneseq
  %v70 = vshrl.u32 %v69, 7
  %v71 = vsub.s32 %v68, %v70
  %v72 = vrot.slane %v64, %v71
  %v74 = vunpack.c.l.s4 1966171168
  %v75 = vunpack.c.0.s8 %v74
  %v76 = vlaneseq
  %v77 = vshrl.u32 %v76, 7
  %v78 = vsub.s32 %v75, %v77
  %v79 = vrot.slane %v65, %v78
  %v80 = vlaneseq
  %v81 = vshrl.u32 %v80, 7
  %v82 = vsub.s32 0, %v81
  %v83 = vrot.slane %v72, %v82
  %v84 = vlaneseq
  %v85 = vshrl.u32 %v84, 7
  %v86 = vsub.s32 0, %v85
  %v87 = vrot.slane %v79, %v86
  %v88 = vld [vmem:[%s1] sm:$0xff]
  %v89 = vld [vmem:[%s1 + $0x8] sm:$0xff]
  %v90 = vld [vmem:[%s1 + $0x10] sm:$0xff]
  %v91 = vld [vmem:[%s1 + $0x18] sm:$0xff]
  %v92 = vld [vmem:[%s1 + $0x20] sm:$0xff]
  %v93 = vld [vmem:[%s1 + $0x28] sm:$0xff]
  %v94 = vld [vmem:[%s1 + $0x30] sm:$0xff]
  %v95 = vld [vmem:[%s1 + $0x38] sm:$0xff]
  %v96 = vld [vmem:[%s1 + $0x40] sm:$0xff]
  %v97 = vld [vmem:[%s1 + $0x48] sm:$0xff]
  %v98 = vld [vmem:[%s1 + $0x50] sm:$0xff]
  %v99 = vld [vmem:[%s1 + $0x58] sm:$0xff]
  %v100 = vld [vmem:[%s1 + $0x60] sm:$0xff]
  %v101 = vld [vmem:[%s1 + $0x68] sm:$0xff]
  %v102 = vld [vmem:[%s1 + $0x70] sm:$0xff]
  %v103 = vld [vmem:[%s1 + $0x78] sm:$0xff]
  %v104 = vld [vmem:[%s1 + $0x80] sm:$0xff]
  %v105 = vld [vmem:[%s1 + $0x88] sm:$0xff]
  %v106 = vld [vmem:[%s1 + $0x90] sm:$0xff]
  %v107 = vld [vmem:[%s1 + $0x98] sm:$0xff]
  %v108 = vld [vmem:[%s1 + $0xa0] sm:$0xff]
  %v109 = vld [vmem:[%s1 + $0xa8] sm:$0xff]
  %v110 = vld [vmem:[%s1 + $0xb0] sm:$0xff]
  %v111 = vld [vmem:[%s1 + $0xb8] sm:$0xff]
  %v112 = vld [vmem:[%s9] sm:$0x1]
  %vm115 = vcmask 1040384
  %v116 = vsel %vm115, 0.0, %v83
  %v117 = vsel %vm115, 0.0, %v87
  %vm118 = vcmask 1046528
  %v119 = vsel %vm118, %v83, 0.0
  %v120 = vsel %vm118, %v87, 0.0
  %vm121 = vcmask 523264
  %v122 = vsel %vm121, %v83, 0
  %v124 = vsel %vm121, %v87, 0
  %126 = vmatprep.subr.mxu0 0.0
  %127 = vmatpush1.msra.mxu0 %v96
  %128 = vmatprep.subr.mxu0 0.0
  %129 = vmatpush1.msra.mxu0 %v97
  %130 = vmatprep.subr.mxu0 0.0
  %131 = vmatpush1.msra.mxu0 %v98
  %132 = vmatprep.subr.mxu0 0.0
  %133 = vmatpush1.msra.mxu0 %v99
  %134 = vmatprep.subr.mxu0 0.0
  %135 = vmatpush1.msra.mxu0 %v100
  %136 = vmatprep.subr.mxu0 0.0
  %137 = vmatpush1.msra.mxu0 %v101
  %138 = vmatprep.subr.mxu0 0.0
  %139 = vmatpush1.msra.mxu0 %v102
  %140 = vmatprep.subr.mxu0 0.0
  %141 = vmatpush1.msra.mxu0 %v103
  %142 = vmatprep.subr.mxu0 0.0
  %143 = vmatpush1.msra.mxu0 0.0
  %144 = vmatprep.subr.mxu0 0.0
  %145 = vmatpush1.msra.mxu0 0.0
  %146 = vmatprep.subr.mxu0 0.0
  %147 = vmatpush1.msra.mxu0 0.0
  %148 = vmatprep.subr.mxu0 0.0
  %149 = vmatpush1.msra.mxu0 0.0
  %150 = vmatprep.subr.mxu0 0.0
  %151 = vmatpush1.msra.mxu0 0.0
  %152 = vmatprep.subr.mxu0 0.0
  %153 = vmatpush1.msra.mxu0 0.0
  %154 = vmatprep.subr.mxu0 0.0
  %155 = vmatpush1.msra.mxu0 0.0
  %156 = vmatprep.subr.mxu0 0.0
  %157 = vmatpush1.msra.mxu0 0.0
  %158 = vmatprep.subr.mxu0 0.0
  %159 = vmatpush1.msra.mxu0 0.0
  %160 = vmatprep.subr.mxu0 0.0
  %161 = vmatpush1.msra.mxu0 0.0
  %162 = vmatprep.subr.mxu0 0.0
  %163 = vmatpush1.msra.mxu0 0.0
  %164 = vmatprep.subr.mxu0 0.0
  %165 = vmatpush1.msra.mxu0 0.0
  %166 = vmatprep.subr.mxu0 0.0
  %167 = vmatpush1.msra.mxu0 0.0
  %168 = vmatprep.subr.mxu0 0.0
  %169 = vmatpush1.msra.mxu0 0.0
  %170 = vmatprep.subr.mxu0 0.0
  %171 = vmatpush1.msra.mxu0 0.0
  %172 = vmatprep.subr.mxu0 0.0
  %173 = vmatpush1.msra.mxu0 0.0
  %174 = vmatprep.subr.mxu0 0.0
  %175 = vmatpush1.msra.mxu0 0.0
  %176 = vmatprep.subr.mxu0 0.0
  %177 = vmatpush1.msra.mxu0 0.0
  %178 = vmatprep.subr.mxu0 0.0
  %179 = vmatpush1.msra.mxu0 0.0
  %180 = vmatprep.subr.mxu0 0.0
  %181 = vmatpush1.msra.mxu0 0.0
  %182 = vmatprep.subr.mxu0 0.0
  %183 = vmatpush1.msra.mxu0 0.0
  %184 = vmatprep.subr.mxu0 0.0
  %185 = vmatpush1.msra.mxu0 0.0
  %186 = vmatprep.subr.mxu0 0.0
  %187 = vmatpush1.msra.mxu0 0.0
  %188 = vmatprep.subr.mxu0 0.0
  %189 = vmatpush1.msra.mxu0 0.0
  %190 = vmatprep.mubr.f32.mxu0 0.0
  %191 = vmatmul.mubr.f32.gmra.mrb[0].mxu0 %v122
  %v192 = vpop.f32.mrb[0].mxu0
  %v193 = vadd.f32 0.0, %v192
  %v194 = vpop.f32.mrb[0].mxu0
  %195 = vmatprep.mubr.f32.mxu0 0.0
  %196 = vmatmul.mubr.f32.gmra.mrb[0].mxu0 %v122
  %v197 = vpop.f32.mrb[0].mxu0
  %v198 = vadd.f32 0.0, %v197
  %v199 = vpop.f32.mrb[0].mxu0
  %200 = vmatprep.mubr.f32.mxu0 0.0
  %201 = vmatmul.mubr.f32.gmra.mrb[0].mxu0 %v124
  %v202 = vpop.f32.mrb[0].mxu0
  %v203 = vadd.f32 0.0, %v202
  %v204 = vpop.f32.mrb[0].mxu0
  %205 = vmatprep.mubr.f32.mxu0 0.0
  %206 = vmatmul.mubr.f32.gmra.mrb[0].mxu0 %v124
  %v207 = vpop.f32.mrb[0].mxu0
  %v208 = vadd.f32 0.0, %v207
  %v209 = vpop.f32.mrb[0].mxu0
  %210 = vdwg.mxu0
  %v212 = vsel %vm121, %v116, 0
  %v215 = vsel %vm121, %v117, 0
  %217 = vmatprep.subr.mxu0 0.0
  %218 = vmatpush1.msra.mxu0 %v88
  %219 = vmatprep.subr.mxu0 0.0
  %220 = vmatpush1.msra.mxu0 %v89
  %221 = vmatprep.subr.mxu0 0.0
  %222 = vmatpush1.msra.mxu0 %v90
  %223 = vmatprep.subr.mxu0 0.0
  %224 = vmatpush1.msra.mxu0 %v91
  %225 = vmatprep.subr.mxu0 0.0
  %226 = vmatpush1.msra.mxu0 %v92
  %227 = vmatprep.subr.mxu0 0.0
  %228 = vmatpush1.msra.mxu0 %v93
  %229 = vmatprep.subr.mxu0 0.0
  %230 = vmatpush1.msra.mxu0 %v94
  %231 = vmatprep.subr.mxu0 0.0
  %232 = vmatpush1.msra.mxu0 %v95
  %233 = vmatprep.subr.mxu0 0.0
  %234 = vmatpush1.msra.mxu0 0.0
  %235 = vmatprep.subr.mxu0 0.0
  %236 = vmatpush1.msra.mxu0 0.0
  %237 = vmatprep.subr.mxu0 0.0
  %238 = vmatpush1.msra.mxu0 0.0
  %239 = vmatprep.subr.mxu0 0.0
  %240 = vmatpush1.msra.mxu0 0.0
  %241 = vmatprep.subr.mxu0 0.0
  %242 = vmatpush1.msra.mxu0 0.0
  %243 = vmatprep.subr.mxu0 0.0
  %244 = vmatpush1.msra.mxu0 0.0
  %245 = vmatprep.subr.mxu0 0.0
  %246 = vmatpush1.msra.mxu0 0.0
  %247 = vmatprep.subr.mxu0 0.0
  %248 = vmatpush1.msra.mxu0 0.0
  %249 = vmatprep.subr.mxu0 0.0
  %250 = vmatpush1.msra.mxu0 0.0
  %251 = vmatprep.subr.mxu0 0.0
  %252 = vmatpush1.msra.mxu0 0.0
  %253 = vmatprep.subr.mxu0 0.0
  %254 = vmatpush1.msra.mxu0 0.0
  %255 = vmatprep.subr.mxu0 0.0
  %256 = vmatpush1.msra.mxu0 0.0
  %257 = vmatprep.subr.mxu0 0.0
  %258 = vmatpush1.msra.mxu0 0.0
  %259 = vmatprep.subr.mxu0 0.0
  %260 = vmatpush1.msra.mxu0 0.0
  %261 = vmatprep.subr.mxu0 0.0
  %262 = vmatpush1.msra.mxu0 0.0
  %263 = vmatprep.subr.mxu0 0.0
  %264 = vmatpush1.msra.mxu0 0.0
  %265 = vmatprep.subr.mxu0 0.0
  %266 = vmatpush1.msra.mxu0 0.0
  %267 = vmatprep.subr.mxu0 0.0
  %268 = vmatpush1.msra.mxu0 0.0
  %269 = vmatprep.subr.mxu0 0.0
  %270 = vmatpush1.msra.mxu0 0.0
  %271 = vmatprep.subr.mxu0 0.0
  %272 = vmatpush1.msra.mxu0 0.0
  %273 = vmatprep.subr.mxu0 0.0
  %274 = vmatpush1.msra.mxu0 0.0
  %275 = vmatprep.subr.mxu0 0.0
  %276 = vmatpush1.msra.mxu0 0.0
  %277 = vmatprep.subr.mxu0 0.0
  %278 = vmatpush1.msra.mxu0 0.0
  %279 = vmatprep.subr.mxu0 0.0
  %280 = vmatpush1.msra.mxu0 0.0
  %281 = vmatprep.mubr.f32.mxu0 0.0
  %282 = vmatmul.mubr.f32.gmra.mrb[0].mxu0 %v212
  %v283 = vpop.f32.mrb[0].mxu0
  %v284 = vadd.f32 %v193, %v283
  %v285 = vpop.f32.mrb[0].mxu0
  %286 = vmatprep.mubr.f32.mxu0 0.0
  %287 = vmatmul.mubr.f32.gmra.mrb[0].mxu0 %v122
  %v288 = vpop.f32.mrb[0].mxu0
  %v289 = vadd.f32 %v198, %v288
  %v290 = vpop.f32.mrb[0].mxu0
  %291 = vmatprep.mubr.f32.mxu0 0.0
  %292 = vmatmul.mubr.f32.gmra.mrb[0].mxu0 %v215
  %v293 = vpop.f32.mrb[0].mxu0
  %v294 = vadd.f32 %v203, %v293
  %v295 = vpop.f32.mrb[0].mxu0
  %296 = vmatprep.mubr.f32.mxu0 0.0
  %297 = vmatmul.mubr.f32.gmra.mrb[0].mxu0 %v124
  %v298 = vpop.f32.mrb[0].mxu0
  %v299 = vadd.f32 %v208, %v298
  %v300 = vpop.f32.mrb[0].mxu0
  %301 = vdwg.mxu0
  %v303 = vsel %vm121, %v119, 0
  %v306 = vsel %vm121, %v120, 0
  %308 = vmatprep.subr.mxu0 0.0
  %309 = vmatpush1.msra.mxu0 %v104
  %310 = vmatprep.subr.mxu0 0.0
  %311 = vmatpush1.msra.mxu0 %v105
  %312 = vmatprep.subr.mxu0 0.0
  %313 = vmatpush1.msra.mxu0 %v106
  %314 = vmatprep.subr.mxu0 0.0
  %315 = vmatpush1.msra.mxu0 %v107
  %316 = vmatprep.subr.mxu0 0.0
  %317 = vmatpush1.msra.mxu0 %v108
  %318 = vmatprep.subr.mxu0 0.0
  %319 = vmatpush1.msra.mxu0 %v109
  %320 = vmatprep.subr.mxu0 0.0
  %321 = vmatpush1.msra.mxu0 %v110
  %322 = vmatprep.subr.mxu0 0.0
  %323 = vmatpush1.msra.mxu0 %v111
  %324 = vmatprep.subr.mxu0 0.0
  %325 = vmatpush1.msra.mxu0 0.0
  %326 = vmatprep.subr.mxu0 0.0
  %327 = vmatpush1.msra.mxu0 0.0
  %328 = vmatprep.subr.mxu0 0.0
  %329 = vmatpush1.msra.mxu0 0.0
  %330 = vmatprep.subr.mxu0 0.0
  %331 = vmatpush1.msra.mxu0 0.0
  %332 = vmatprep.subr.mxu0 0.0
  %333 = vmatpush1.msra.mxu0 0.0
  %334 = vmatprep.subr.mxu0 0.0
  %335 = vmatpush1.msra.mxu0 0.0
  %336 = vmatprep.subr.mxu0 0.0
  %337 = vmatpush1.msra.mxu0 0.0
  %338 = vmatprep.subr.mxu0 0.0
  %339 = vmatpush1.msra.mxu0 0.0
  %340 = vmatprep.subr.mxu0 0.0
  %341 = vmatpush1.msra.mxu0 0.0
  %342 = vmatprep.subr.mxu0 0.0
  %343 = vmatpush1.msra.mxu0 0.0
  %344 = vmatprep.subr.mxu0 0.0
  %345 = vmatpush1.msra.mxu0 0.0
  %346 = vmatprep.subr.mxu0 0.0
  %347 = vmatpush1.msra.mxu0 0.0
  %348 = vmatprep.subr.mxu0 0.0
  %349 = vmatpush1.msra.mxu0 0.0
  %350 = vmatprep.subr.mxu0 0.0
  %351 = vmatpush1.msra.mxu0 0.0
  %352 = vmatprep.subr.mxu0 0.0
  %353 = vmatpush1.msra.mxu0 0.0
  %354 = vmatprep.subr.mxu0 0.0
  %355 = vmatpush1.msra.mxu0 0.0
  %356 = vmatprep.subr.mxu0 0.0
  %357 = vmatpush1.msra.mxu0 0.0
  %358 = vmatprep.subr.mxu0 0.0
  %359 = vmatpush1.msra.mxu0 0.0
  %360 = vmatprep.subr.mxu0 0.0
  %361 = vmatpush1.msra.mxu0 0.0
  %362 = vmatprep.subr.mxu0 0.0
  %363 = vmatpush1.msra.mxu0 0.0
  %364 = vmatprep.subr.mxu0 0.0
  %365 = vmatpush1.msra.mxu0 0.0
  %366 = vmatprep.subr.mxu0 0.0
  %367 = vmatpush1.msra.mxu0 0.0
  %368 = vmatprep.subr.mxu0 0.0
  %369 = vmatpush1.msra.mxu0 0.0
  %370 = vmatprep.subr.mxu0 0.0
  %371 = vmatpush1.msra.mxu0 0.0
  %372 = vmatprep.mubr.f32.mxu0 0.0
  %373 = vmatmul.mubr.f32.gmra.mrb[0].mxu0 %v122
  %v374 = vpop.f32.mrb[0].mxu0
  %v375 = vadd.f32 0.0, %v374
  %v376 = vpop.f32.mrb[0].mxu0
  %377 = vmatprep.mubr.f32.mxu0 0.0
  %378 = vmatmul.mubr.f32.gmra.mrb[0].mxu0 %v303
  %v379 = vpop.f32.mrb[0].mxu0
  %v380 = vadd.f32 0.0, %v379
  %v381 = vpop.f32.mrb[0].mxu0
  %382 = vmatprep.mubr.f32.mxu0 0.0
  %383 = vmatmul.mubr.f32.gmra.mrb[0].mxu0 %v124
  %v384 = vpop.f32.mrb[0].mxu0
  %v385 = vadd.f32 0.0, %v384
  %v386 = vpop.f32.mrb[0].mxu0
  %387 = vmatprep.mubr.f32.mxu0 0.0
  %388 = vmatmul.mubr.f32.gmra.mrb[0].mxu0 %v306
  %v389 = vpop.f32.mrb[0].mxu0
  %v390 = vadd.f32 0.0, %v389
  %v391 = vpop.f32.mrb[0].mxu0
  %392 = vdwg.mxu0
  %v393 = vadd.f32 %v284, %v375
  %v394 = vadd.f32 %v289, %v380
  %v395 = vadd.f32 %v294, %v385
  %v396 = vadd.f32 %v299, %v390
  %v398 = vlaneseq
  %v399 = vshrl.u32 %v398, 7
  %v400 = vsub.s32 0, %v399
  %v401 = vrot.slane %v112, %v400
  %v403 = vadd.f32 %v393, %v401
  %v404 = vadd.f32 %v394, %v401
  %v405 = vadd.f32 %v395, %v401
  %v406 = vadd.f32 %v396, %v401
  %v407 = vmax.f32 %v403, 0.0
  %v408 = vmax.f32 %v404, 0.0
  %v409 = vmax.f32 %v405, 0.0
  %v410 = vmax.f32 %v406, 0.0
  %v411 = vld [vmem:[%s2] sm:$0xff]
  %v412 = vld [vmem:[%s2 + $0x8] sm:$0xff]
  %v413 = vld [vmem:[%s2 + $0x10] sm:$0xff]
  %v414 = vld [vmem:[%s2 + $0x18] sm:$0xff]
  %v415 = vld [vmem:[%s2 + $0x20] sm:$0xff]
  %v416 = vld [vmem:[%s2 + $0x28] sm:$0xff]
  %v417 = vld [vmem:[%s2 + $0x30] sm:$0xff]
  %v418 = vld [vmem:[%s2 + $0x38] sm:$0xff]
  %v419 = vld [vmem:[%s2 + $0x40] sm:$0xff]
  %v420 = vld [vmem:[%s2 + $0x48] sm:$0xff]
  %v421 = vld [vmem:[%s2 + $0x50] sm:$0xff]
  %v422 = vld [vmem:[%s2 + $0x58] sm:$0xff]
  %v423 = vld [vmem:[%s10] sm:$0x1]
  %v428 = vrot.slane %v407, 7
  %v429 = vrot.slane %v408, 7
  %v430 = vsel %vm115, %v428, %v429
  %v431 = vrot.slane %v409, 7
  %v432 = vrot.slane %v410, 7
  %v433 = vsel %vm115, %v431, %v432
  %v436 = vsel %vm115, 0.0, %v428
  %v437 = vsel %vm115, 0.0, %v431
  %v438 = vrot.slane %v407, 1
  %v439 = vrot.slane %v408, 1
  %v440 = vsel %vm118, %v438, %v439
  %v441 = vrot.slane %v409, 1
  %v442 = vrot.slane %v410, 1
  %v443 = vsel %vm118, %v441, %v442
  %v446 = vsel %vm118, %v439, 0.0
  %v447 = vsel %vm118, %v442, 0.0
  %vm448 = vcmask 261120
  %v449 = vsel %vm448, %v407, 0
  %v451 = vsel %vm448, %v408, 0
  %v453 = vsel %vm448, %v409, 0
  %v455 = vsel %vm448, %v410, 0
  %457 = vmatprep.subr.mxu0 0.0
  %458 = vmatpush1.msra.mxu0 %v415
  %459 = vmatprep.subr.mxu0 0.0
  %460 = vmatpush1.msra.mxu0 %v416
  %461 = vmatprep.subr.mxu0 0.0
  %462 = vmatpush1.msra.mxu0 %v417
  %463 = vmatprep.subr.mxu0 0.0
  %464 = vmatpush1.msra.mxu0 %v418
  %465 = vmatprep.subr.mxu0 0.0
  %466 = vmatpush1.msra.mxu0 0.0
  %467 = vmatprep.subr.mxu0 0.0
  %468 = vmatpush1.msra.mxu0 0.0
  %469 = vmatprep.subr.mxu0 0.0
  %470 = vmatpush1.msra.mxu0 0.0
  %471 = vmatprep.subr.mxu0 0.0
  %472 = vmatpush1.msra.mxu0 0.0
  %473 = vmatprep.subr.mxu0 0.0
  %474 = vmatpush1.msra.mxu0 0.0
  %475 = vmatprep.subr.mxu0 0.0
  %476 = vmatpush1.msra.mxu0 0.0
  %477 = vmatprep.subr.mxu0 0.0
  %478 = vmatpush1.msra.mxu0 0.0
  %479 = vmatprep.subr.mxu0 0.0
  %480 = vmatpush1.msra.mxu0 0.0
  %481 = vmatprep.subr.mxu0 0.0
  %482 = vmatpush1.msra.mxu0 0.0
  %483 = vmatprep.subr.mxu0 0.0
  %484 = vmatpush1.msra.mxu0 0.0
  %485 = vmatprep.subr.mxu0 0.0
  %486 = vmatpush1.msra.mxu0 0.0
  %487 = vmatprep.subr.mxu0 0.0
  %488 = vmatpush1.msra.mxu0 0.0
  %489 = vmatprep.subr.mxu0 0.0
  %490 = vmatpush1.msra.mxu0 0.0
  %491 = vmatprep.subr.mxu0 0.0
  %492 = vmatpush1.msra.mxu0 0.0
  %493 = vmatprep.subr.mxu0 0.0
  %494 = vmatpush1.msra.mxu0 0.0
  %495 = vmatprep.subr.mxu0 0.0
  %496 = vmatpush1.msra.mxu0 0.0
  %497 = vmatprep.subr.mxu0 0.0
  %498 = vmatpush1.msra.mxu0 0.0
  %499 = vmatprep.subr.mxu0 0.0
  %500 = vmatpush1.msra.mxu0 0.0
  %501 = vmatprep.subr.mxu0 0.0
  %502 = vmatpush1.msra.mxu0 0.0
  %503 = vmatprep.subr.mxu0 0.0
  %504 = vmatpush1.msra.mxu0 0.0
  %505 = vmatprep.subr.mxu0 0.0
  %506 = vmatpush1.msra.mxu0 0.0
  %507 = vmatprep.subr.mxu0 0.0
  %508 = vmatpush1.msra.mxu0 0.0
  %509 = vmatprep.subr.mxu0 0.0
  %510 = vmatpush1.msra.mxu0 0.0
  %511 = vmatprep.subr.mxu0 0.0
  %512 = vmatpush1.msra.mxu0 0.0
  %513 = vmatprep.subr.mxu0 0.0
  %514 = vmatpush1.msra.mxu0 0.0
  %515 = vmatprep.subr.mxu0 0.0
  %516 = vmatpush1.msra.mxu0 0.0
  %517 = vmatprep.subr.mxu0 0.0
  %518 = vmatpush1.msra.mxu0 0.0
  %519 = vmatprep.subr.mxu0 0.0
  %520 = vmatpush1.msra.mxu0 0.0
  %521 = vmatprep.mubr.f32.mxu0 0.0
  %522 = vmatmul.mubr.f32.gmra.mrb[0].mxu0 %v449
  %v523 = vpop.f32.mrb[0].mxu0
  %v524 = vadd.f32 0.0, %v523
  %v525 = vpop.f32.mrb[0].mxu0
  %526 = vmatprep.mubr.f32.mxu0 0.0
  %527 = vmatmul.mubr.f32.gmra.mrb[0].mxu0 %v451
  %v528 = vpop.f32.mrb[0].mxu0
  %v529 = vadd.f32 0.0, %v528
  %v530 = vpop.f32.mrb[0].mxu0
  %531 = vmatprep.mubr.f32.mxu0 0.0
  %532 = vmatmul.mubr.f32.gmra.mrb[0].mxu0 %v453
  %v533 = vpop.f32.mrb[0].mxu0
  %v534 = vadd.f32 0.0, %v533
  %v535 = vpop.f32.mrb[0].mxu0
  %536 = vmatprep.mubr.f32.mxu0 0.0
  %537 = vmatmul.mubr.f32.gmra.mrb[0].mxu0 %v455
  %v538 = vpop.f32.mrb[0].mxu0
  %v539 = vadd.f32 0.0, %v538
  %v540 = vpop.f32.mrb[0].mxu0
  %541 = vdwg.mxu0
  %v543 = vsel %vm448, %v436, 0
  %v545 = vsel %vm448, %v430, 0
  %v548 = vsel %vm448, %v437, 0
  %v550 = vsel %vm448, %v433, 0
  %552 = vmatprep.subr.mxu0 0.0
  %553 = vmatpush1.msra.mxu0 %v411
  %554 = vmatprep.subr.mxu0 0.0
  %555 = vmatpush1.msra.mxu0 %v412
  %556 = vmatprep.subr.mxu0 0.0
  %557 = vmatpush1.msra.mxu0 %v413
  %558 = vmatprep.subr.mxu0 0.0
  %559 = vmatpush1.msra.mxu0 %v414
  %560 = vmatprep.subr.mxu0 0.0
  %561 = vmatpush1.msra.mxu0 0.0
  %562 = vmatprep.subr.mxu0 0.0
  %563 = vmatpush1.msra.mxu0 0.0
  %564 = vmatprep.subr.mxu0 0.0
  %565 = vmatpush1.msra.mxu0 0.0
  %566 = vmatprep.subr.mxu0 0.0
  %567 = vmatpush1.msra.mxu0 0.0
  %568 = vmatprep.subr.mxu0 0.0
  %569 = vmatpush1.msra.mxu0 0.0
  %570 = vmatprep.subr.mxu0 0.0
  %571 = vmatpush1.msra.mxu0 0.0
  %572 = vmatprep.subr.mxu0 0.0
  %573 = vmatpush1.msra.mxu0 0.0
  %574 = vmatprep.subr.mxu0 0.0
  %575 = vmatpush1.msra.mxu0 0.0
  %576 = vmatprep.subr.mxu0 0.0
  %577 = vmatpush1.msra.mxu0 0.0
  %578 = vmatprep.subr.mxu0 0.0
  %579 = vmatpush1.msra.mxu0 0.0
  %580 = vmatprep.subr.mxu0 0.0
  %581 = vmatpush1.msra.mxu0 0.0
  %582 = vmatprep.subr.mxu0 0.0
  %583 = vmatpush1.msra.mxu0 0.0
  %584 = vmatprep.subr.mxu0 0.0
  %585 = vmatpush1.msra.mxu0 0.0
  %586 = vmatprep.subr.mxu0 0.0
  %587 = vmatpush1.msra.mxu0 0.0
  %588 = vmatprep.subr.mxu0 0.0
  %589 = vmatpush1.msra.mxu0 0.0
  %590 = vmatprep.subr.mxu0 0.0
  %591 = vmatpush1.msra.mxu0 0.0
  %592 = vmatprep.subr.mxu0 0.0
  %593 = vmatpush1.msra.mxu0 0.0
  %594 = vmatprep.subr.mxu0 0.0
  %595 = vmatpush1.msra.mxu0 0.0
  %596 = vmatprep.subr.mxu0 0.0
  %597 = vmatpush1.msra.mxu0 0.0
  %598 = vmatprep.subr.mxu0 0.0
  %599 = vmatpush1.msra.mxu0 0.0
  %600 = vmatprep.subr.mxu0 0.0
  %601 = vmatpush1.msra.mxu0 0.0
  %602 = vmatprep.subr.mxu0 0.0
  %603 = vmatpush1.msra.mxu0 0.0
  %604 = vmatprep.subr.mxu0 0.0
  %605 = vmatpush1.msra.mxu0 0.0
  %606 = vmatprep.subr.mxu0 0.0
  %607 = vmatpush1.msra.mxu0 0.0
  %608 = vmatprep.subr.mxu0 0.0
  %609 = vmatpush1.msra.mxu0 0.0
  %610 = vmatprep.subr.mxu0 0.0
  %611 = vmatpush1.msra.mxu0 0.0
  %612 = vmatprep.subr.mxu0 0.0
  %613 = vmatpush1.msra.mxu0 0.0
  %614 = vmatprep.subr.mxu0 0.0
  %615 = vmatpush1.msra.mxu0 0.0
  %616 = vmatprep.mubr.f32.mxu0 0.0
  %617 = vmatmul.mubr.f32.gmra.mrb[0].mxu0 %v543
  %v618 = vpop.f32.mrb[0].mxu0
  %v619 = vadd.f32 %v524, %v618
  %v620 = vpop.f32.mrb[0].mxu0
  %621 = vmatprep.mubr.f32.mxu0 0.0
  %622 = vmatmul.mubr.f32.gmra.mrb[0].mxu0 %v545
  %v623 = vpop.f32.mrb[0].mxu0
  %v624 = vadd.f32 %v529, %v623
  %v625 = vpop.f32.mrb[0].mxu0
  %626 = vmatprep.mubr.f32.mxu0 0.0
  %627 = vmatmul.mubr.f32.gmra.mrb[0].mxu0 %v548
  %v628 = vpop.f32.mrb[0].mxu0
  %v629 = vadd.f32 %v534, %v628
  %v630 = vpop.f32.mrb[0].mxu0
  %631 = vmatprep.mubr.f32.mxu0 0.0
  %632 = vmatmul.mubr.f32.gmra.mrb[0].mxu0 %v550
  %v633 = vpop.f32.mrb[0].mxu0
  %v634 = vadd.f32 %v539, %v633
  %v635 = vpop.f32.mrb[0].mxu0
  %636 = vdwg.mxu0
  %v637 = vsel %vm448, %v440, 0
  %v640 = vsel %vm448, %v446, 0
  %v642 = vsel %vm448, %v443, 0
  %v645 = vsel %vm448, %v447, 0
  %647 = vmatprep.subr.mxu0 0.0
  %648 = vmatpush1.msra.mxu0 %v419
  %649 = vmatprep.subr.mxu0 0.0
  %650 = vmatpush1.msra.mxu0 %v420
  %651 = vmatprep.subr.mxu0 0.0
  %652 = vmatpush1.msra.mxu0 %v421
  %653 = vmatprep.subr.mxu0 0.0
  %654 = vmatpush1.msra.mxu0 %v422
  %655 = vmatprep.subr.mxu0 0.0
  %656 = vmatpush1.msra.mxu0 0.0
  %657 = vmatprep.subr.mxu0 0.0
  %658 = vmatpush1.msra.mxu0 0.0
  %659 = vmatprep.subr.mxu0 0.0
  %660 = vmatpush1.msra.mxu0 0.0
  %661 = vmatprep.subr.mxu0 0.0
  %662 = vmatpush1.msra.mxu0 0.0
  %663 = vmatprep.subr.mxu0 0.0
  %664 = vmatpush1.msra.mxu0 0.0
  %665 = vmatprep.subr.mxu0 0.0
  %666 = vmatpush1.msra.mxu0 0.0
  %667 = vmatprep.subr.mxu0 0.0
  %668 = vmatpush1.msra.mxu0 0.0
  %669 = vmatprep.subr.mxu0 0.0
  %670 = vmatpush1.msra.mxu0 0.0
  %671 = vmatprep.subr.mxu0 0.0
  %672 = vmatpush1.msra.mxu0 0.0
  %673 = vmatprep.subr.mxu0 0.0
  %674 = vmatpush1.msra.mxu0 0.0
  %675 = vmatprep.subr.mxu0 0.0
  %676 = vmatpush1.msra.mxu0 0.0
  %677 = vmatprep.subr.mxu0 0.0
  %678 = vmatpush1.msra.mxu0 0.0
  %679 = vmatprep.subr.mxu0 0.0
  %680 = vmatpush1.msra.mxu0 0.0
  %681 = vmatprep.subr.mxu0 0.0
  %682 = vmatpush1.msra.mxu0 0.0
  %683 = vmatprep.subr.mxu0 0.0
  %684 = vmatpush1.msra.mxu0 0.0
  %685 = vmatprep.subr.mxu0 0.0
  %686 = vmatpush1.msra.mxu0 0.0
  %687 = vmatprep.subr.mxu0 0.0
  %688 = vmatpush1.msra.mxu0 0.0
  %689 = vmatprep.subr.mxu0 0.0
  %690 = vmatpush1.msra.mxu0 0.0
  %691 = vmatprep.subr.mxu0 0.0
  %692 = vmatpush1.msra.mxu0 0.0
  %693 = vmatprep.subr.mxu0 0.0
  %694 = vmatpush1.msra.mxu0 0.0
  %695 = vmatprep.subr.mxu0 0.0
  %696 = vmatpush1.msra.mxu0 0.0
  %697 = vmatprep.subr.mxu0 0.0
  %698 = vmatpush1.msra.mxu0 0.0
  %699 = vmatprep.subr.mxu0 0.0
  %700 = vmatpush1.msra.mxu0 0.0
  %701 = vmatprep.subr.mxu0 0.0
  %702 = vmatpush1.msra.mxu0 0.0
  %703 = vmatprep.subr.mxu0 0.0
  %704 = vmatpush1.msra.mxu0 0.0
  %705 = vmatprep.subr.mxu0 0.0
  %706 = vmatpush1.msra.mxu0 0.0
  %707 = vmatprep.subr.mxu0 0.0
  %708 = vmatpush1.msra.mxu0 0.0
  %709 = vmatprep.subr.mxu0 0.0
  %710 = vmatpush1.msra.mxu0 0.0
  %711 = vmatprep.mubr.f32.mxu0 0.0
  %712 = vmatmul.mubr.f32.gmra.mrb[0].mxu0 %v637
  %v713 = vpop.f32.mrb[0].mxu0
  %v714 = vadd.f32 0.0, %v713
  %v715 = vpop.f32.mrb[0].mxu0
  %716 = vmatprep.mubr.f32.mxu0 0.0
  %717 = vmatmul.mubr.f32.gmra.mrb[0].mxu0 %v640
  %v718 = vpop.f32.mrb[0].mxu0
  %v719 = vadd.f32 0.0, %v718
  %v720 = vpop.f32.mrb[0].mxu0
  %721 = vmatprep.mubr.f32.mxu0 0.0
  %722 = vmatmul.mubr.f32.gmra.mrb[0].mxu0 %v642
  %v723 = vpop.f32.mrb[0].mxu0
  %v724 = vadd.f32 0.0, %v723
  %v725 = vpop.f32.mrb[0].mxu0
  %726 = vmatprep.mubr.f32.mxu0 0.0
  %727 = vmatmul.mubr.f32.gmra.mrb[0].mxu0 %v645
  %v728 = vpop.f32.mrb[0].mxu0
  %v729 = vadd.f32 0.0, %v728
  %v730 = vpop.f32.mrb[0].mxu0
  %731 = vdwg.mxu0
  %v732 = vadd.f32 %v619, %v714
  %v733 = vadd.f32 %v624, %v719
  %v734 = vadd.f32 %v629, %v724
  %v735 = vadd.f32 %v634, %v729
  %v737 = vlaneseq
  %v738 = vshrl.u32 %v737, 7
  %v739 = vsub.s32 0, %v738
  %v740 = vrot.slane %v423, %v739
  %v742 = vadd.f32 %v732, %v740
  %v743 = vadd.f32 %v733, %v740
  %v744 = vadd.f32 %v734, %v740
  %v745 = vadd.f32 %v735, %v740
  %v746 = vld [vmem:[%s3] sm:$0xff]
  %v747 = vld [vmem:[%s3 + $0x8] sm:$0xff]
  %v748 = vld [vmem:[%s3 + $0x10] sm:$0xff]
  %v749 = vld [vmem:[%s3 + $0x18] sm:$0xff]
  %v750 = vld [vmem:[%s3 + $0x20] sm:$0xff]
  %v751 = vld [vmem:[%s3 + $0x28] sm:$0xff]
  %v752 = vld [vmem:[%s3 + $0x30] sm:$0xff]
  %v753 = vld [vmem:[%s3 + $0x38] sm:$0xff]
  %v754 = vld [vmem:[%s3 + $0x40] sm:$0xff]
  %v755 = vld [vmem:[%s3 + $0x48] sm:$0xff]
  %v756 = vld [vmem:[%s3 + $0x50] sm:$0xff]
  %v757 = vld [vmem:[%s3 + $0x58] sm:$0xff]
  %v758 = vld [vmem:[%s11] sm:$0x1]
  %v763 = vrot.slane %v742, 7
  %v764 = vrot.slane %v743, 7
  %v765 = vsel %vm115, %v763, %v764
  %v766 = vrot.slane %v744, 7
  %v767 = vrot.slane %v745, 7
  %v768 = vsel %vm115, %v766, %v767
  %v771 = vsel %vm115, 0.0, %v763
  %v772 = vsel %vm115, 0.0, %v766
  %v773 = vrot.slane %v742, 1
  %v774 = vrot.slane %v743, 1
  %v775 = vsel %vm118, %v773, %v774
  %v776 = vrot.slane %v744, 1
  %v777 = vrot.slane %v745, 1
  %v778 = vsel %vm118, %v776, %v777
  %v781 = vsel %vm118, %v774, 0.0
  %v782 = vsel %vm118, %v777, 0.0
  %v783 = vsel %vm448, %v742, 0
  %v785 = vsel %vm448, %v743, 0
  %v787 = vsel %vm448, %v744, 0
  %v789 = vsel %vm448, %v745, 0
  %791 = vmatprep.subr.mxu0 0.0
  %792 = vmatpush1.msra.mxu0 %v750
  %793 = vmatprep.subr.mxu0 0.0
  %794 = vmatpush1.msra.mxu0 %v751
  %795 = vmatprep.subr.mxu0 0.0
  %796 = vmatpush1.msra.mxu0 %v752
  %797 = vmatprep.subr.mxu0 0.0
  %798 = vmatpush1.msra.mxu0 %v753
  %799 = vmatprep.subr.mxu0 0.0
  %800 = vmatpush1.msra.mxu0 0.0
  %801 = vmatprep.subr.mxu0 0.0
  %802 = vmatpush1.msra.mxu0 0.0
  %803 = vmatprep.subr.mxu0 0.0
  %804 = vmatpush1.msra.mxu0 0.0
  %805 = vmatprep.subr.mxu0 0.0
  %806 = vmatpush1.msra.mxu0 0.0
  %807 = vmatprep.subr.mxu0 0.0
  %808 = vmatpush1.msra.mxu0 0.0
  %809 = vmatprep.subr.mxu0 0.0
  %810 = vmatpush1.msra.mxu0 0.0
  %811 = vmatprep.subr.mxu0 0.0
  %812 = vmatpush1.msra.mxu0 0.0
  %813 = vmatprep.subr.mxu0 0.0
  %814 = vmatpush1.msra.mxu0 0.0
  %815 = vmatprep.subr.mxu0 0.0
  %816 = vmatpush1.msra.mxu0 0.0
  %817 = vmatprep.subr.mxu0 0.0
  %818 = vmatpush1.msra.mxu0 0.0
  %819 = vmatprep.subr.mxu0 0.0
  %820 = vmatpush1.msra.mxu0 0.0
  %821 = vmatprep.subr.mxu0 0.0
  %822 = vmatpush1.msra.mxu0 0.0
  %823 = vmatprep.subr.mxu0 0.0
  %824 = vmatpush1.msra.mxu0 0.0
  %825 = vmatprep.subr.mxu0 0.0
  %826 = vmatpush1.msra.mxu0 0.0
  %827 = vmatprep.subr.mxu0 0.0
  %828 = vmatpush1.msra.mxu0 0.0
  %829 = vmatprep.subr.mxu0 0.0
  %830 = vmatpush1.msra.mxu0 0.0
  %831 = vmatprep.subr.mxu0 0.0
  %832 = vmatpush1.msra.mxu0 0.0
  %833 = vmatprep.subr.mxu0 0.0
  %834 = vmatpush1.msra.mxu0 0.0
  %835 = vmatprep.subr.mxu0 0.0
  %836 = vmatpush1.msra.mxu0 0.0
  %837 = vmatprep.subr.mxu0 0.0
  %838 = vmatpush1.msra.mxu0 0.0
  %839 = vmatprep.subr.mxu0 0.0
  %840 = vmatpush1.msra.mxu0 0.0
  %841 = vmatprep.subr.mxu0 0.0
  %842 = vmatpush1.msra.mxu0 0.0
  %843 = vmatprep.subr.mxu0 0.0
  %844 = vmatpush1.msra.mxu0 0.0
  %845 = vmatprep.subr.mxu0 0.0
  %846 = vmatpush1.msra.mxu0 0.0
  %847 = vmatprep.subr.mxu0 0.0
  %848 = vmatpush1.msra.mxu0 0.0
  %849 = vmatprep.subr.mxu0 0.0
  %850 = vmatpush1.msra.mxu0 0.0
  %851 = vmatprep.subr.mxu0 0.0
  %852 = vmatpush1.msra.mxu0 0.0
  %853 = vmatprep.subr.mxu0 0.0
  %854 = vmatpush1.msra.mxu0 0.0
  %855 = vmatprep.mubr.f32.mxu0 0.0
  %856 = vmatmul.mubr.f32.gmra.mrb[0].mxu0 %v783
  %v857 = vpop.f32.mrb[0].mxu0
  %v858 = vadd.f32 0.0, %v857
  %v859 = vpop.f32.mrb[0].mxu0
  %860 = vmatprep.mubr.f32.mxu0 0.0
  %861 = vmatmul.mubr.f32.gmra.mrb[0].mxu0 %v785
  %v862 = vpop.f32.mrb[0].mxu0
  %v863 = vadd.f32 0.0, %v862
  %v864 = vpop.f32.mrb[0].mxu0
  %865 = vmatprep.mubr.f32.mxu0 0.0
  %866 = vmatmul.mubr.f32.gmra.mrb[0].mxu0 %v787
  %v867 = vpop.f32.mrb[0].mxu0
  %v868 = vadd.f32 0.0, %v867
  %v869 = vpop.f32.mrb[0].mxu0
  %870 = vmatprep.mubr.f32.mxu0 0.0
  %871 = vmatmul.mubr.f32.gmra.mrb[0].mxu0 %v789
  %v872 = vpop.f32.mrb[0].mxu0
  %v873 = vadd.f32 0.0, %v872
  %v874 = vpop.f32.mrb[0].mxu0
  %875 = vdwg.mxu0
  %v877 = vsel %vm448, %v771, 0
  %v879 = vsel %vm448, %v765, 0
  %v882 = vsel %vm448, %v772, 0
  %v884 = vsel %vm448, %v768, 0
  %886 = vmatprep.subr.mxu0 0.0
  %887 = vmatpush1.msra.mxu0 %v746
  %888 = vmatprep.subr.mxu0 0.0
  %889 = vmatpush1.msra.mxu0 %v747
  %890 = vmatprep.subr.mxu0 0.0
  %891 = vmatpush1.msra.mxu0 %v748
  %892 = vmatprep.subr.mxu0 0.0
  %893 = vmatpush1.msra.mxu0 %v749
  %894 = vmatprep.subr.mxu0 0.0
  %895 = vmatpush1.msra.mxu0 0.0
  %896 = vmatprep.subr.mxu0 0.0
  %897 = vmatpush1.msra.mxu0 0.0
  %898 = vmatprep.subr.mxu0 0.0
  %899 = vmatpush1.msra.mxu0 0.0
  %900 = vmatprep.subr.mxu0 0.0
  %901 = vmatpush1.msra.mxu0 0.0
  %902 = vmatprep.subr.mxu0 0.0
  %903 = vmatpush1.msra.mxu0 0.0
  %904 = vmatprep.subr.mxu0 0.0
  %905 = vmatpush1.msra.mxu0 0.0
  %906 = vmatprep.subr.mxu0 0.0
  %907 = vmatpush1.msra.mxu0 0.0
  %908 = vmatprep.subr.mxu0 0.0
  %909 = vmatpush1.msra.mxu0 0.0
  %910 = vmatprep.subr.mxu0 0.0
  %911 = vmatpush1.msra.mxu0 0.0
  %912 = vmatprep.subr.mxu0 0.0
  %913 = vmatpush1.msra.mxu0 0.0
  %914 = vmatprep.subr.mxu0 0.0
  %915 = vmatpush1.msra.mxu0 0.0
  %916 = vmatprep.subr.mxu0 0.0
  %917 = vmatpush1.msra.mxu0 0.0
  %918 = vmatprep.subr.mxu0 0.0
  %919 = vmatpush1.msra.mxu0 0.0
  %920 = vmatprep.subr.mxu0 0.0
  %921 = vmatpush1.msra.mxu0 0.0
  %922 = vmatprep.subr.mxu0 0.0
  %923 = vmatpush1.msra.mxu0 0.0
  %924 = vmatprep.subr.mxu0 0.0
  %925 = vmatpush1.msra.mxu0 0.0
  %926 = vmatprep.subr.mxu0 0.0
  %927 = vmatpush1.msra.mxu0 0.0
  %928 = vmatprep.subr.mxu0 0.0
  %929 = vmatpush1.msra.mxu0 0.0
  %930 = vmatprep.subr.mxu0 0.0
  %931 = vmatpush1.msra.mxu0 0.0
  %932 = vmatprep.subr.mxu0 0.0
  %933 = vmatpush1.msra.mxu0 0.0
  %934 = vmatprep.subr.mxu0 0.0
  %935 = vmatpush1.msra.mxu0 0.0
  %936 = vmatprep.subr.mxu0 0.0
  %937 = vmatpush1.msra.mxu0 0.0
  %938 = vmatprep.subr.mxu0 0.0
  %939 = vmatpush1.msra.mxu0 0.0
  %940 = vmatprep.subr.mxu0 0.0
  %941 = vmatpush1.msra.mxu0 0.0
  %942 = vmatprep.subr.mxu0 0.0
  %943 = vmatpush1.msra.mxu0 0.0
  %944 = vmatprep.subr.mxu0 0.0
  %945 = vmatpush1.msra.mxu0 0.0
  %946 = vmatprep.subr.mxu0 0.0
  %947 = vmatpush1.msra.mxu0 0.0
  %948 = vmatprep.subr.mxu0 0.0
  %949 = vmatpush1.msra.mxu0 0.0
  %950 = vmatprep.mubr.f32.mxu0 0.0
  %951 = vmatmul.mubr.f32.gmra.mrb[0].mxu0 %v877
  %v952 = vpop.f32.mrb[0].mxu0
  %v953 = vadd.f32 %v858, %v952
  %v954 = vpop.f32.mrb[0].mxu0
  %955 = vmatprep.mubr.f32.mxu0 0.0
  %956 = vmatmul.mubr.f32.gmra.mrb[0].mxu0 %v879
  %v957 = vpop.f32.mrb[0].mxu0
  %v958 = vadd.f32 %v863, %v957
  %v959 = vpop.f32.mrb[0].mxu0
  %960 = vmatprep.mubr.f32.mxu0 0.0
  %961 = vmatmul.mubr.f32.gmra.mrb[0].mxu0 %v882
  %v962 = vpop.f32.mrb[0].mxu0
  %v963 = vadd.f32 %v868, %v962
  %v964 = vpop.f32.mrb[0].mxu0
  %965 = vmatprep.mubr.f32.mxu0 0.0
  %966 = vmatmul.mubr.f32.gmra.mrb[0].mxu0 %v884
  %v967 = vpop.f32.mrb[0].mxu0
  %v968 = vadd.f32 %v873, %v967
  %v969 = vpop.f32.mrb[0].mxu0
  %970 = vdwg.mxu0
  %v971 = vsel %vm448, %v775, 0
  %v974 = vsel %vm448, %v781, 0
  %v976 = vsel %vm448, %v778, 0
  %v979 = vsel %vm448, %v782, 0
  %981 = vmatprep.subr.mxu0 0.0
  %982 = vmatpush1.msra.mxu0 %v754
  %983 = vmatprep.subr.mxu0 0.0
  %984 = vmatpush1.msra.mxu0 %v755
  %985 = vmatprep.subr.mxu0 0.0
  %986 = vmatpush1.msra.mxu0 %v756
  %987 = vmatprep.subr.mxu0 0.0
  %988 = vmatpush1.msra.mxu0 %v757
  %989 = vmatprep.subr.mxu0 0.0
  %990 = vmatpush1.msra.mxu0 0.0
  %991 = vmatprep.subr.mxu0 0.0
  %992 = vmatpush1.msra.mxu0 0.0
  %993 = vmatprep.subr.mxu0 0.0
  %994 = vmatpush1.msra.mxu0 0.0
  %995 = vmatprep.subr.mxu0 0.0
  %996 = vmatpush1.msra.mxu0 0.0
  %997 = vmatprep.subr.mxu0 0.0
  %998 = vmatpush1.msra.mxu0 0.0
  %999 = vmatprep.subr.mxu0 0.0
  %1000 = vmatpush1.msra.mxu0 0.0
  %1001 = vmatprep.subr.mxu0 0.0
  %1002 = vmatpush1.msra.mxu0 0.0
  %1003 = vmatprep.subr.mxu0 0.0
  %1004 = vmatpush1.msra.mxu0 0.0
  %1005 = vmatprep.subr.mxu0 0.0
  %1006 = vmatpush1.msra.mxu0 0.0
  %1007 = vmatprep.subr.mxu0 0.0
  %1008 = vmatpush1.msra.mxu0 0.0
  %1009 = vmatprep.subr.mxu0 0.0
  %1010 = vmatpush1.msra.mxu0 0.0
  %1011 = vmatprep.subr.mxu0 0.0
  %1012 = vmatpush1.msra.mxu0 0.0
  %1013 = vmatprep.subr.mxu0 0.0
  %1014 = vmatpush1.msra.mxu0 0.0
  %1015 = vmatprep.subr.mxu0 0.0
  %1016 = vmatpush1.msra.mxu0 0.0
  %1017 = vmatprep.subr.mxu0 0.0
  %1018 = vmatpush1.msra.mxu0 0.0
  %1019 = vmatprep.subr.mxu0 0.0
  %1020 = vmatpush1.msra.mxu0 0.0
  %1021 = vmatprep.subr.mxu0 0.0
  %1022 = vmatpush1.msra.mxu0 0.0
  %1023 = vmatprep.subr.mxu0 0.0
  %1024 = vmatpush1.msra.mxu0 0.0
  %1025 = vmatprep.subr.mxu0 0.0
  %1026 = vmatpush1.msra.mxu0 0.0
  %1027 = vmatprep.subr.mxu0 0.0
  %1028 = vmatpush1.msra.mxu0 0.0
  %1029 = vmatprep.subr.mxu0 0.0
  %1030 = vmatpush1.msra.mxu0 0.0
  %1031 = vmatprep.subr.mxu0 0.0
  %1032 = vmatpush1.msra.mxu0 0.0
  %1033 = vmatprep.subr.mxu0 0.0
  %1034 = vmatpush1.msra.mxu0 0.0
  %1035 = vmatprep.subr.mxu0 0.0
  %1036 = vmatpush1.msra.mxu0 0.0
  %1037 = vmatprep.subr.mxu0 0.0
  %1038 = vmatpush1.msra.mxu0 0.0
  %1039 = vmatprep.subr.mxu0 0.0
  %1040 = vmatpush1.msra.mxu0 0.0
  %1041 = vmatprep.subr.mxu0 0.0
  %1042 = vmatpush1.msra.mxu0 0.0
  %1043 = vmatprep.subr.mxu0 0.0
  %1044 = vmatpush1.msra.mxu0 0.0
  %1045 = vmatprep.mubr.f32.mxu0 0.0
  %1046 = vmatmul.mubr.f32.gmra.mrb[0].mxu0 %v971
  %v1047 = vpop.f32.mrb[0].mxu0
  %v1048 = vadd.f32 0.0, %v1047
  %v1049 = vpop.f32.mrb[0].mxu0
  %1050 = vmatprep.mubr.f32.mxu0 0.0
  %1051 = vmatmul.mubr.f32.gmra.mrb[0].mxu0 %v974
  %v1052 = vpop.f32.mrb[0].mxu0
  %v1053 = vadd.f32 0.0, %v1052
  %v1054 = vpop.f32.mrb[0].mxu0
  %1055 = vmatprep.mubr.f32.mxu0 0.0
  %1056 = vmatmul.mubr.f32.gmra.mrb[0].mxu0 %v976
  %v1057 = vpop.f32.mrb[0].mxu0
  %v1058 = vadd.f32 0.0, %v1057
  %v1059 = vpop.f32.mrb[0].mxu0
  %1060 = vmatprep.mubr.f32.mxu0 0.0
  %1061 = vmatmul.mubr.f32.gmra.mrb[0].mxu0 %v979
  %v1062 = vpop.f32.mrb[0].mxu0
  %v1063 = vadd.f32 0.0, %v1062
  %v1064 = vpop.f32.mrb[0].mxu0
  %1065 = vdwg.mxu0
  %v1066 = vadd.f32 %v953, %v1048
  %v1067 = vadd.f32 %v958, %v1053
  %v1068 = vadd.f32 %v963, %v1058
  %v1069 = vadd.f32 %v968, %v1063
  %v1071 = vlaneseq
  %v1072 = vshrl.u32 %v1071, 7
  %v1073 = vsub.s32 0, %v1072
  %v1074 = vrot.slane %v758, %v1073
  %v1076 = vadd.f32 %v1066, %v1074
  %v1077 = vadd.f32 %v1067, %v1074
  %v1078 = vadd.f32 %v1068, %v1074
  %v1079 = vadd.f32 %v1069, %v1074
  %v1080 = vmax.f32 %v1076, 0.0
  %v1081 = vmax.f32 %v1077, 0.0
  %v1082 = vmax.f32 %v1078, 0.0
  %v1083 = vmax.f32 %v1079, 0.0
  %v1084 = vld [vmem:[%s4] sm:$0xff]
  %v1085 = vld [vmem:[%s4 + $0x8] sm:$0xff]
  %v1086 = vld [vmem:[%s4 + $0x10] sm:$0xff]
  %v1087 = vld [vmem:[%s4 + $0x18] sm:$0xff]
  %v1088 = vld [vmem:[%s4 + $0x20] sm:$0xff]
  %v1089 = vld [vmem:[%s4 + $0x28] sm:$0xff]
  %v1090 = vld [vmem:[%s12] sm:$0x1]
  %v1095 = vrot.slane %v1080, 7
  %v1096 = vrot.slane %v1081, 7
  %v1097 = vsel %vm115, %v1095, %v1096
  %v1098 = vrot.slane %v1082, 7
  %v1099 = vrot.slane %v1083, 7
  %v1100 = vsel %vm115, %v1098, %v1099
  %v1103 = vsel %vm115, 0.0, %v1095
  %v1104 = vsel %vm115, 0.0, %v1098
  %v1105 = vrot.slane %v1080, 1
  %v1106 = vrot.slane %v1081, 1
  %v1107 = vsel %vm118, %v1105, %v1106
  %v1108 = vrot.slane %v1082, 1
  %v1109 = vrot.slane %v1083, 1
  %v1110 = vsel %vm118, %v1108, %v1109
  %v1113 = vsel %vm118, %v1106, 0.0
  %v1114 = vsel %vm118, %v1109, 0.0
  %vm1115 = vcmask 130048
  %v1116 = vsel %vm1115, %v1080, 0
  %v1118 = vsel %vm1115, %v1081, 0
  %v1120 = vsel %vm1115, %v1082, 0
  %v1122 = vsel %vm1115, %v1083, 0
  %1124 = vmatprep.subr.mxu0 0.0
  %1125 = vmatpush1.msra.mxu0 %v1086
  %1126 = vmatprep.subr.mxu0 0.0
  %1127 = vmatpush1.msra.mxu0 %v1087
  %1128 = vmatprep.subr.mxu0 0.0
  %1129 = vmatpush1.msra.mxu0 0.0
  %1130 = vmatprep.subr.mxu0 0.0
  %1131 = vmatpush1.msra.mxu0 0.0
  %1132 = vmatprep.subr.mxu0 0.0
  %1133 = vmatpush1.msra.mxu0 0.0
  %1134 = vmatprep.subr.mxu0 0.0
  %1135 = vmatpush1.msra.mxu0 0.0
  %1136 = vmatprep.subr.mxu0 0.0
  %1137 = vmatpush1.msra.mxu0 0.0
  %1138 = vmatprep.subr.mxu0 0.0
  %1139 = vmatpush1.msra.mxu0 0.0
  %1140 = vmatprep.subr.mxu0 0.0
  %1141 = vmatpush1.msra.mxu0 0.0
  %1142 = vmatprep.subr.mxu0 0.0
  %1143 = vmatpush1.msra.mxu0 0.0
  %1144 = vmatprep.subr.mxu0 0.0
  %1145 = vmatpush1.msra.mxu0 0.0
  %1146 = vmatprep.subr.mxu0 0.0
  %1147 = vmatpush1.msra.mxu0 0.0
  %1148 = vmatprep.subr.mxu0 0.0
  %1149 = vmatpush1.msra.mxu0 0.0
  %1150 = vmatprep.subr.mxu0 0.0
  %1151 = vmatpush1.msra.mxu0 0.0
  %1152 = vmatprep.subr.mxu0 0.0
  %1153 = vmatpush1.msra.mxu0 0.0
  %1154 = vmatprep.subr.mxu0 0.0
  %1155 = vmatpush1.msra.mxu0 0.0
  %1156 = vmatprep.subr.mxu0 0.0
  %1157 = vmatpush1.msra.mxu0 0.0
  %1158 = vmatprep.subr.mxu0 0.0
  %1159 = vmatpush1.msra.mxu0 0.0
  %1160 = vmatprep.subr.mxu0 0.0
  %1161 = vmatpush1.msra.mxu0 0.0
  %1162 = vmatprep.subr.mxu0 0.0
  %1163 = vmatpush1.msra.mxu0 0.0
  %1164 = vmatprep.subr.mxu0 0.0
  %1165 = vmatpush1.msra.mxu0 0.0
  %1166 = vmatprep.subr.mxu0 0.0
  %1167 = vmatpush1.msra.mxu0 0.0
  %1168 = vmatprep.subr.mxu0 0.0
  %1169 = vmatpush1.msra.mxu0 0.0
  %1170 = vmatprep.subr.mxu0 0.0
  %1171 = vmatpush1.msra.mxu0 0.0
  %1172 = vmatprep.subr.mxu0 0.0
  %1173 = vmatpush1.msra.mxu0 0.0
  %1174 = vmatprep.subr.mxu0 0.0
  %1175 = vmatpush1.msra.mxu0 0.0
  %1176 = vmatprep.subr.mxu0 0.0
  %1177 = vmatpush1.msra.mxu0 0.0
  %1178 = vmatprep.subr.mxu0 0.0
  %1179 = vmatpush1.msra.mxu0 0.0
  %1180 = vmatprep.subr.mxu0 0.0
  %1181 = vmatpush1.msra.mxu0 0.0
  %1182 = vmatprep.subr.mxu0 0.0
  %1183 = vmatpush1.msra.mxu0 0.0
  %1184 = vmatprep.subr.mxu0 0.0
  %1185 = vmatpush1.msra.mxu0 0.0
  %1186 = vmatprep.subr.mxu0 0.0
  %1187 = vmatpush1.msra.mxu0 0.0
  %1188 = vmatprep.mubr.f32.mxu0 0.0
  %1189 = vmatmul.mubr.f32.gmra.mrb[0].mxu0 %v1116
  %v1190 = vpop.f32.mrb[0].mxu0
  %v1191 = vadd.f32 0.0, %v1190
  %v1192 = vpop.f32.mrb[0].mxu0
  %1193 = vmatprep.mubr.f32.mxu0 0.0
  %1194 = vmatmul.mubr.f32.gmra.mrb[0].mxu0 %v1118
  %v1195 = vpop.f32.mrb[0].mxu0
  %v1196 = vadd.f32 0.0, %v1195
  %v1197 = vpop.f32.mrb[0].mxu0
  %1198 = vmatprep.mubr.f32.mxu0 0.0
  %1199 = vmatmul.mubr.f32.gmra.mrb[0].mxu0 %v1120
  %v1200 = vpop.f32.mrb[0].mxu0
  %v1201 = vadd.f32 0.0, %v1200
  %v1202 = vpop.f32.mrb[0].mxu0
  %1203 = vmatprep.mubr.f32.mxu0 0.0
  %1204 = vmatmul.mubr.f32.gmra.mrb[0].mxu0 %v1122
  %v1205 = vpop.f32.mrb[0].mxu0
  %v1206 = vadd.f32 0.0, %v1205
  %v1207 = vpop.f32.mrb[0].mxu0
  %1208 = vdwg.mxu0
  %v1210 = vsel %vm1115, %v1103, 0
  %v1212 = vsel %vm1115, %v1097, 0
  %v1215 = vsel %vm1115, %v1104, 0
  %v1217 = vsel %vm1115, %v1100, 0
  %1219 = vmatprep.subr.mxu0 0.0
  %1220 = vmatpush1.msra.mxu0 %v1084
  %1221 = vmatprep.subr.mxu0 0.0
  %1222 = vmatpush1.msra.mxu0 %v1085
  %1223 = vmatprep.subr.mxu0 0.0
  %1224 = vmatpush1.msra.mxu0 0.0
  %1225 = vmatprep.subr.mxu0 0.0
  %1226 = vmatpush1.msra.mxu0 0.0
  %1227 = vmatprep.subr.mxu0 0.0
  %1228 = vmatpush1.msra.mxu0 0.0
  %1229 = vmatprep.subr.mxu0 0.0
  %1230 = vmatpush1.msra.mxu0 0.0
  %1231 = vmatprep.subr.mxu0 0.0
  %1232 = vmatpush1.msra.mxu0 0.0
  %1233 = vmatprep.subr.mxu0 0.0
  %1234 = vmatpush1.msra.mxu0 0.0
  %1235 = vmatprep.subr.mxu0 0.0
  %1236 = vmatpush1.msra.mxu0 0.0
  %1237 = vmatprep.subr.mxu0 0.0
  %1238 = vmatpush1.msra.mxu0 0.0
  %1239 = vmatprep.subr.mxu0 0.0
  %1240 = vmatpush1.msra.mxu0 0.0
  %1241 = vmatprep.subr.mxu0 0.0
  %1242 = vmatpush1.msra.mxu0 0.0
  %1243 = vmatprep.subr.mxu0 0.0
  %1244 = vmatpush1.msra.mxu0 0.0
  %1245 = vmatprep.subr.mxu0 0.0
  %1246 = vmatpush1.msra.mxu0 0.0
  %1247 = vmatprep.subr.mxu0 0.0
  %1248 = vmatpush1.msra.mxu0 0.0
  %1249 = vmatprep.subr.mxu0 0.0
  %1250 = vmatpush1.msra.mxu0 0.0
  %1251 = vmatprep.subr.mxu0 0.0
  %1252 = vmatpush1.msra.mxu0 0.0
  %1253 = vmatprep.subr.mxu0 0.0
  %1254 = vmatpush1.msra.mxu0 0.0
  %1255 = vmatprep.subr.mxu0 0.0
  %1256 = vmatpush1.msra.mxu0 0.0
  %1257 = vmatprep.subr.mxu0 0.0
  %1258 = vmatpush1.msra.mxu0 0.0
  %1259 = vmatprep.subr.mxu0 0.0
  %1260 = vmatpush1.msra.mxu0 0.0
  %1261 = vmatprep.subr.mxu0 0.0
  %1262 = vmatpush1.msra.mxu0 0.0
  %1263 = vmatprep.subr.mxu0 0.0
  %1264 = vmatpush1.msra.mxu0 0.0
  %1265 = vmatprep.subr.mxu0 0.0
  %1266 = vmatpush1.msra.mxu0 0.0
  %1267 = vmatprep.subr.mxu0 0.0
  %1268 = vmatpush1.msra.mxu0 0.0
  %1269 = vmatprep.subr.mxu0 0.0
  %1270 = vmatpush1.msra.mxu0 0.0
  %1271 = vmatprep.subr.mxu0 0.0
  %1272 = vmatpush1.msra.mxu0 0.0
  %1273 = vmatprep.subr.mxu0 0.0
  %1274 = vmatpush1.msra.mxu0 0.0
  %1275 = vmatprep.subr.mxu0 0.0
  %1276 = vmatpush1.msra.mxu0 0.0
  %1277 = vmatprep.subr.mxu0 0.0
  %1278 = vmatpush1.msra.mxu0 0.0
  %1279 = vmatprep.subr.mxu0 0.0
  %1280 = vmatpush1.msra.mxu0 0.0
  %1281 = vmatprep.subr.mxu0 0.0
  %1282 = vmatpush1.msra.mxu0 0.0
  %1283 = vmatprep.mubr.f32.mxu0 0.0
  %1284 = vmatmul.mubr.f32.gmra.mrb[0].mxu0 %v1210
  %v1285 = vpop.f32.mrb[0].mxu0
  %v1286 = vadd.f32 %v1191, %v1285
  %v1287 = vpop.f32.mrb[0].mxu0
  %1288 = vmatprep.mubr.f32.mxu0 0.0
  %1289 = vmatmul.mubr.f32.gmra.mrb[0].mxu0 %v1212
  %v1290 = vpop.f32.mrb[0].mxu0
  %v1291 = vadd.f32 %v1196, %v1290
  %v1292 = vpop.f32.mrb[0].mxu0
  %1293 = vmatprep.mubr.f32.mxu0 0.0
  %1294 = vmatmul.mubr.f32.gmra.mrb[0].mxu0 %v1215
  %v1295 = vpop.f32.mrb[0].mxu0
  %v1296 = vadd.f32 %v1201, %v1295
  %v1297 = vpop.f32.mrb[0].mxu0
  %1298 = vmatprep.mubr.f32.mxu0 0.0
  %1299 = vmatmul.mubr.f32.gmra.mrb[0].mxu0 %v1217
  %v1300 = vpop.f32.mrb[0].mxu0
  %v1301 = vadd.f32 %v1206, %v1300
  %v1302 = vpop.f32.mrb[0].mxu0
  %1303 = vdwg.mxu0
  %v1304 = vsel %vm1115, %v1107, 0
  %v1307 = vsel %vm1115, %v1113, 0
  %v1309 = vsel %vm1115, %v1110, 0
  %v1312 = vsel %vm1115, %v1114, 0
  %1314 = vmatprep.subr.mxu0 0.0
  %1315 = vmatpush1.msra.mxu0 %v1088
  %1316 = vmatprep.subr.mxu0 0.0
  %1317 = vmatpush1.msra.mxu0 %v1089
  %1318 = vmatprep.subr.mxu0 0.0
  %1319 = vmatpush1.msra.mxu0 0.0
  %1320 = vmatprep.subr.mxu0 0.0
  %1321 = vmatpush1.msra.mxu0 0.0
  %1322 = vmatprep.subr.mxu0 0.0
  %1323 = vmatpush1.msra.mxu0 0.0
  %1324 = vmatprep.subr.mxu0 0.0
  %1325 = vmatpush1.msra.mxu0 0.0
  %1326 = vmatprep.subr.mxu0 0.0
  %1327 = vmatpush1.msra.mxu0 0.0
  %1328 = vmatprep.subr.mxu0 0.0
  %1329 = vmatpush1.msra.mxu0 0.0
  %1330 = vmatprep.subr.mxu0 0.0
  %1331 = vmatpush1.msra.mxu0 0.0
  %1332 = vmatprep.subr.mxu0 0.0
  %1333 = vmatpush1.msra.mxu0 0.0
  %1334 = vmatprep.subr.mxu0 0.0
  %1335 = vmatpush1.msra.mxu0 0.0
  %1336 = vmatprep.subr.mxu0 0.0
  %1337 = vmatpush1.msra.mxu0 0.0
  %1338 = vmatprep.subr.mxu0 0.0
  %1339 = vmatpush1.msra.mxu0 0.0
  %1340 = vmatprep.subr.mxu0 0.0
  %1341 = vmatpush1.msra.mxu0 0.0
  %1342 = vmatprep.subr.mxu0 0.0
  %1343 = vmatpush1.msra.mxu0 0.0
  %1344 = vmatprep.subr.mxu0 0.0
  %1345 = vmatpush1.msra.mxu0 0.0
  %1346 = vmatprep.subr.mxu0 0.0
  %1347 = vmatpush1.msra.mxu0 0.0
  %1348 = vmatprep.subr.mxu0 0.0
  %1349 = vmatpush1.msra.mxu0 0.0
  %1350 = vmatprep.subr.mxu0 0.0
  %1351 = vmatpush1.msra.mxu0 0.0
  %1352 = vmatprep.subr.mxu0 0.0
  %1353 = vmatpush1.msra.mxu0 0.0
  %1354 = vmatprep.subr.mxu0 0.0
  %1355 = vmatpush1.msra.mxu0 0.0
  %1356 = vmatprep.subr.mxu0 0.0
  %1357 = vmatpush1.msra.mxu0 0.0
  %1358 = vmatprep.subr.mxu0 0.0
  %1359 = vmatpush1.msra.mxu0 0.0
  %1360 = vmatprep.subr.mxu0 0.0
  %1361 = vmatpush1.msra.mxu0 0.0
  %1362 = vmatprep.subr.mxu0 0.0
  %1363 = vmatpush1.msra.mxu0 0.0
  %1364 = vmatprep.subr.mxu0 0.0
  %1365 = vmatpush1.msra.mxu0 0.0
  %1366 = vmatprep.subr.mxu0 0.0
  %1367 = vmatpush1.msra.mxu0 0.0
  %1368 = vmatprep.subr.mxu0 0.0
  %1369 = vmatpush1.msra.mxu0 0.0
  %1370 = vmatprep.subr.mxu0 0.0
  %1371 = vmatpush1.msra.mxu0 0.0
  %1372 = vmatprep.subr.mxu0 0.0
  %1373 = vmatpush1.msra.mxu0 0.0
  %1374 = vmatprep.subr.mxu0 0.0
  %1375 = vmatpush1.msra.mxu0 0.0
  %1376 = vmatprep.subr.mxu0 0.0
  %1377 = vmatpush1.msra.mxu0 0.0
  %1378 = vmatprep.mubr.f32.mxu0 0.0
  %1379 = vmatmul.mubr.f32.gmra.mrb[0].mxu0 %v1304
  %v1380 = vpop.f32.mrb[0].mxu0
  %v1381 = vadd.f32 0.0, %v1380
  %v1382 = vpop.f32.mrb[0].mxu0
  %1383 = vmatprep.mubr.f32.mxu0 0.0
  %1384 = vmatmul.mubr.f32.gmra.mrb[0].mxu0 %v1307
  %v1385 = vpop.f32.mrb[0].mxu0
  %v1386 = vadd.f32 0.0, %v1385
  %v1387 = vpop.f32.mrb[0].mxu0
  %1388 = vmatprep.mubr.f32.mxu0 0.0
  %1389 = vmatmul.mubr.f32.gmra.mrb[0].mxu0 %v1309
  %v1390 = vpop.f32.mrb[0].mxu0
  %v1391 = vadd.f32 0.0, %v1390
  %v1392 = vpop.f32.mrb[0].mxu0
  %1393 = vmatprep.mubr.f32.mxu0 0.0
  %1394 = vmatmul.mubr.f32.gmra.mrb[0].mxu0 %v1312
  %v1395 = vpop.f32.mrb[0].mxu0
  %v1396 = vadd.f32 0.0, %v1395
  %v1397 = vpop.f32.mrb[0].mxu0
  %1398 = vdwg.mxu0
  %v1399 = vadd.f32 %v1286, %v1381
  %v1400 = vadd.f32 %v1291, %v1386
  %v1401 = vadd.f32 %v1296, %v1391
  %v1402 = vadd.f32 %v1301, %v1396
  %v1404 = vlaneseq
  %v1405 = vshrl.u32 %v1404, 7
  %v1406 = vsub.s32 0, %v1405
  %v1407 = vrot.slane %v1090, %v1406
  %v1409 = vadd.f32 %v1399, %v1407
  %v1410 = vadd.f32 %v1400, %v1407
  %v1411 = vadd.f32 %v1401, %v1407
  %v1412 = vadd.f32 %v1402, %v1407
  %v1413 = vld [vmem:[%s5] sm:$0xff]
  %v1414 = vld [vmem:[%s5 + $0x8] sm:$0xff]
  %v1415 = vld [vmem:[%s5 + $0x10] sm:$0xff]
  %v1416 = vld [vmem:[%s5 + $0x18] sm:$0xff]
  %v1417 = vld [vmem:[%s5 + $0x20] sm:$0xff]
  %v1418 = vld [vmem:[%s5 + $0x28] sm:$0xff]
  %v1419 = vld [vmem:[%s13] sm:$0x1]
  %v1424 = vrot.slane %v1409, 7
  %v1425 = vrot.slane %v1410, 7
  %v1426 = vsel %vm115, %v1424, %v1425
  %v1427 = vrot.slane %v1411, 7
  %v1428 = vrot.slane %v1412, 7
  %v1429 = vsel %vm115, %v1427, %v1428
  %v1432 = vsel %vm115, 0.0, %v1424
  %v1433 = vsel %vm115, 0.0, %v1427
  %v1434 = vrot.slane %v1409, 1
  %v1435 = vrot.slane %v1410, 1
  %v1436 = vsel %vm118, %v1434, %v1435
  %v1437 = vrot.slane %v1411, 1
  %v1438 = vrot.slane %v1412, 1
  %v1439 = vsel %vm118, %v1437, %v1438
  %v1442 = vsel %vm118, %v1435, 0.0
  %v1443 = vsel %vm118, %v1438, 0.0
  %v1444 = vsel %vm1115, %v1409, 0
  %v1446 = vsel %vm1115, %v1410, 0
  %v1448 = vsel %vm1115, %v1411, 0
  %v1450 = vsel %vm1115, %v1412, 0
  %1452 = vmatprep.subr.mxu0 0.0
  %1453 = vmatpush1.msra.mxu0 %v1415
  %1454 = vmatprep.subr.mxu0 0.0
  %1455 = vmatpush1.msra.mxu0 %v1416
  %1456 = vmatprep.subr.mxu0 0.0
  %1457 = vmatpush1.msra.mxu0 0.0
  %1458 = vmatprep.subr.mxu0 0.0
  %1459 = vmatpush1.msra.mxu0 0.0
  %1460 = vmatprep.subr.mxu0 0.0
  %1461 = vmatpush1.msra.mxu0 0.0
  %1462 = vmatprep.subr.mxu0 0.0
  %1463 = vmatpush1.msra.mxu0 0.0
  %1464 = vmatprep.subr.mxu0 0.0
  %1465 = vmatpush1.msra.mxu0 0.0
  %1466 = vmatprep.subr.mxu0 0.0
  %1467 = vmatpush1.msra.mxu0 0.0
  %1468 = vmatprep.subr.mxu0 0.0
  %1469 = vmatpush1.msra.mxu0 0.0
  %1470 = vmatprep.subr.mxu0 0.0
  %1471 = vmatpush1.msra.mxu0 0.0
  %1472 = vmatprep.subr.mxu0 0.0
  %1473 = vmatpush1.msra.mxu0 0.0
  %1474 = vmatprep.subr.mxu0 0.0
  %1475 = vmatpush1.msra.mxu0 0.0
  %1476 = vmatprep.subr.mxu0 0.0
  %1477 = vmatpush1.msra.mxu0 0.0
  %1478 = vmatprep.subr.mxu0 0.0
  %1479 = vmatpush1.msra.mxu0 0.0
  %1480 = vmatprep.subr.mxu0 0.0
  %1481 = vmatpush1.msra.mxu0 0.0
  %1482 = vmatprep.subr.mxu0 0.0
  %1483 = vmatpush1.msra.mxu0 0.0
  %1484 = vmatprep.subr.mxu0 0.0
  %1485 = vmatpush1.msra.mxu0 0.0
  %1486 = vmatprep.subr.mxu0 0.0
  %1487 = vmatpush1.msra.mxu0 0.0
  %1488 = vmatprep.subr.mxu0 0.0
  %1489 = vmatpush1.msra.mxu0 0.0
  %1490 = vmatprep.subr.mxu0 0.0
  %1491 = vmatpush1.msra.mxu0 0.0
  %1492 = vmatprep.subr.mxu0 0.0
  %1493 = vmatpush1.msra.mxu0 0.0
  %1494 = vmatprep.subr.mxu0 0.0
  %1495 = vmatpush1.msra.mxu0 0.0
  %1496 = vmatprep.subr.mxu0 0.0
  %1497 = vmatpush1.msra.mxu0 0.0
  %1498 = vmatprep.subr.mxu0 0.0
  %1499 = vmatpush1.msra.mxu0 0.0
  %1500 = vmatprep.subr.mxu0 0.0
  %1501 = vmatpush1.msra.mxu0 0.0
  %1502 = vmatprep.subr.mxu0 0.0
  %1503 = vmatpush1.msra.mxu0 0.0
  %1504 = vmatprep.subr.mxu0 0.0
  %1505 = vmatpush1.msra.mxu0 0.0
  %1506 = vmatprep.subr.mxu0 0.0
  %1507 = vmatpush1.msra.mxu0 0.0
  %1508 = vmatprep.subr.mxu0 0.0
  %1509 = vmatpush1.msra.mxu0 0.0
  %1510 = vmatprep.subr.mxu0 0.0
  %1511 = vmatpush1.msra.mxu0 0.0
  %1512 = vmatprep.subr.mxu0 0.0
  %1513 = vmatpush1.msra.mxu0 0.0
  %1514 = vmatprep.subr.mxu0 0.0
  %1515 = vmatpush1.msra.mxu0 0.0
  %1516 = vmatprep.mubr.f32.mxu0 0.0
  %1517 = vmatmul.mubr.f32.gmra.mrb[0].mxu0 %v1444
  %v1518 = vpop.f32.mrb[0].mxu0
  %v1519 = vadd.f32 0.0, %v1518
  %v1520 = vpop.f32.mrb[0].mxu0
  %1521 = vmatprep.mubr.f32.mxu0 0.0
  %1522 = vmatmul.mubr.f32.gmra.mrb[0].mxu0 %v1446
  %v1523 = vpop.f32.mrb[0].mxu0
  %v1524 = vadd.f32 0.0, %v1523
  %v1525 = vpop.f32.mrb[0].mxu0
  %1526 = vmatprep.mubr.f32.mxu0 0.0
  %1527 = vmatmul.mubr.f32.gmra.mrb[0].mxu0 %v1448
  %v1528 = vpop.f32.mrb[0].mxu0
  %v1529 = vadd.f32 0.0, %v1528
  %v1530 = vpop.f32.mrb[0].mxu0
  %1531 = vmatprep.mubr.f32.mxu0 0.0
  %1532 = vmatmul.mubr.f32.gmra.mrb[0].mxu0 %v1450
  %v1533 = vpop.f32.mrb[0].mxu0
  %v1534 = vadd.f32 0.0, %v1533
  %v1535 = vpop.f32.mrb[0].mxu0
  %1536 = vdwg.mxu0
  %v1538 = vsel %vm1115, %v1432, 0
  %v1540 = vsel %vm1115, %v1426, 0
  %v1543 = vsel %vm1115, %v1433, 0
  %v1545 = vsel %vm1115, %v1429, 0
  %1547 = vmatprep.subr.mxu0 0.0
  %1548 = vmatpush1.msra.mxu0 %v1413
  %1549 = vmatprep.subr.mxu0 0.0
  %1550 = vmatpush1.msra.mxu0 %v1414
  %1551 = vmatprep.subr.mxu0 0.0
  %1552 = vmatpush1.msra.mxu0 0.0
  %1553 = vmatprep.subr.mxu0 0.0
  %1554 = vmatpush1.msra.mxu0 0.0
  %1555 = vmatprep.subr.mxu0 0.0
  %1556 = vmatpush1.msra.mxu0 0.0
  %1557 = vmatprep.subr.mxu0 0.0
  %1558 = vmatpush1.msra.mxu0 0.0
  %1559 = vmatprep.subr.mxu0 0.0
  %1560 = vmatpush1.msra.mxu0 0.0
  %1561 = vmatprep.subr.mxu0 0.0
  %1562 = vmatpush1.msra.mxu0 0.0
  %1563 = vmatprep.subr.mxu0 0.0
  %1564 = vmatpush1.msra.mxu0 0.0
  %1565 = vmatprep.subr.mxu0 0.0
  %1566 = vmatpush1.msra.mxu0 0.0
  %1567 = vmatprep.subr.mxu0 0.0
  %1568 = vmatpush1.msra.mxu0 0.0
  %1569 = vmatprep.subr.mxu0 0.0
  %1570 = vmatpush1.msra.mxu0 0.0
  %1571 = vmatprep.subr.mxu0 0.0
  %1572 = vmatpush1.msra.mxu0 0.0
  %1573 = vmatprep.subr.mxu0 0.0
  %1574 = vmatpush1.msra.mxu0 0.0
  %1575 = vmatprep.subr.mxu0 0.0
  %1576 = vmatpush1.msra.mxu0 0.0
  %1577 = vmatprep.subr.mxu0 0.0
  %1578 = vmatpush1.msra.mxu0 0.0
  %1579 = vmatprep.subr.mxu0 0.0
  %1580 = vmatpush1.msra.mxu0 0.0
  %1581 = vmatprep.subr.mxu0 0.0
  %1582 = vmatpush1.msra.mxu0 0.0
  %1583 = vmatprep.subr.mxu0 0.0
  %1584 = vmatpush1.msra.mxu0 0.0
  %1585 = vmatprep.subr.mxu0 0.0
  %1586 = vmatpush1.msra.mxu0 0.0
  %1587 = vmatprep.subr.mxu0 0.0
  %1588 = vmatpush1.msra.mxu0 0.0
  %1589 = vmatprep.subr.mxu0 0.0
  %1590 = vmatpush1.msra.mxu0 0.0
  %1591 = vmatprep.subr.mxu0 0.0
  %1592 = vmatpush1.msra.mxu0 0.0
  %1593 = vmatprep.subr.mxu0 0.0
  %1594 = vmatpush1.msra.mxu0 0.0
  %1595 = vmatprep.subr.mxu0 0.0
  %1596 = vmatpush1.msra.mxu0 0.0
  %1597 = vmatprep.subr.mxu0 0.0
  %1598 = vmatpush1.msra.mxu0 0.0
  %1599 = vmatprep.subr.mxu0 0.0
  %1600 = vmatpush1.msra.mxu0 0.0
  %1601 = vmatprep.subr.mxu0 0.0
  %1602 = vmatpush1.msra.mxu0 0.0
  %1603 = vmatprep.subr.mxu0 0.0
  %1604 = vmatpush1.msra.mxu0 0.0
  %1605 = vmatprep.subr.mxu0 0.0
  %1606 = vmatpush1.msra.mxu0 0.0
  %1607 = vmatprep.subr.mxu0 0.0
  %1608 = vmatpush1.msra.mxu0 0.0
  %1609 = vmatprep.subr.mxu0 0.0
  %1610 = vmatpush1.msra.mxu0 0.0
  %1611 = vmatprep.mubr.f32.mxu0 0.0
  %1612 = vmatmul.mubr.f32.gmra.mrb[0].mxu0 %v1538
  %v1613 = vpop.f32.mrb[0].mxu0
  %v1614 = vadd.f32 %v1519, %v1613
  %v1615 = vpop.f32.mrb[0].mxu0
  %1616 = vmatprep.mubr.f32.mxu0 0.0
  %1617 = vmatmul.mubr.f32.gmra.mrb[0].mxu0 %v1540
  %v1618 = vpop.f32.mrb[0].mxu0
  %v1619 = vadd.f32 %v1524, %v1618
  %v1620 = vpop.f32.mrb[0].mxu0
  %1621 = vmatprep.mubr.f32.mxu0 0.0
  %1622 = vmatmul.mubr.f32.gmra.mrb[0].mxu0 %v1543
  %v1623 = vpop.f32.mrb[0].mxu0
  %v1624 = vadd.f32 %v1529, %v1623
  %v1625 = vpop.f32.mrb[0].mxu0
  %1626 = vmatprep.mubr.f32.mxu0 0.0
  %1627 = vmatmul.mubr.f32.gmra.mrb[0].mxu0 %v1545
  %v1628 = vpop.f32.mrb[0].mxu0
  %v1629 = vadd.f32 %v1534, %v1628
  %v1630 = vpop.f32.mrb[0].mxu0
  %1631 = vdwg.mxu0
  %v1632 = vsel %vm1115, %v1436, 0
  %v1635 = vsel %vm1115, %v1442, 0
  %v1637 = vsel %vm1115, %v1439, 0
  %v1640 = vsel %vm1115, %v1443, 0
  %1642 = vmatprep.subr.mxu0 0.0
  %1643 = vmatpush1.msra.mxu0 %v1417
  %1644 = vmatprep.subr.mxu0 0.0
  %1645 = vmatpush1.msra.mxu0 %v1418
  %1646 = vmatprep.subr.mxu0 0.0
  %1647 = vmatpush1.msra.mxu0 0.0
  %1648 = vmatprep.subr.mxu0 0.0
  %1649 = vmatpush1.msra.mxu0 0.0
  %1650 = vmatprep.subr.mxu0 0.0
  %1651 = vmatpush1.msra.mxu0 0.0
  %1652 = vmatprep.subr.mxu0 0.0
  %1653 = vmatpush1.msra.mxu0 0.0
  %1654 = vmatprep.subr.mxu0 0.0
  %1655 = vmatpush1.msra.mxu0 0.0
  %1656 = vmatprep.subr.mxu0 0.0
  %1657 = vmatpush1.msra.mxu0 0.0
  %1658 = vmatprep.subr.mxu0 0.0
  %1659 = vmatpush1.msra.mxu0 0.0
  %1660 = vmatprep.subr.mxu0 0.0
  %1661 = vmatpush1.msra.mxu0 0.0
  %1662 = vmatprep.subr.mxu0 0.0
  %1663 = vmatpush1.msra.mxu0 0.0
  %1664 = vmatprep.subr.mxu0 0.0
  %1665 = vmatpush1.msra.mxu0 0.0
  %1666 = vmatprep.subr.mxu0 0.0
  %1667 = vmatpush1.msra.mxu0 0.0
  %1668 = vmatprep.subr.mxu0 0.0
  %1669 = vmatpush1.msra.mxu0 0.0
  %1670 = vmatprep.subr.mxu0 0.0
  %1671 = vmatpush1.msra.mxu0 0.0
  %1672 = vmatprep.subr.mxu0 0.0
  %1673 = vmatpush1.msra.mxu0 0.0
  %1674 = vmatprep.subr.mxu0 0.0
  %1675 = vmatpush1.msra.mxu0 0.0
  %1676 = vmatprep.subr.mxu0 0.0
  %1677 = vmatpush1.msra.mxu0 0.0
  %1678 = vmatprep.subr.mxu0 0.0
  %1679 = vmatpush1.msra.mxu0 0.0
  %1680 = vmatprep.subr.mxu0 0.0
  %1681 = vmatpush1.msra.mxu0 0.0
  %1682 = vmatprep.subr.mxu0 0.0
  %1683 = vmatpush1.msra.mxu0 0.0
  %1684 = vmatprep.subr.mxu0 0.0
  %1685 = vmatpush1.msra.mxu0 0.0
  %1686 = vmatprep.subr.mxu0 0.0
  %1687 = vmatpush1.msra.mxu0 0.0
  %1688 = vmatprep.subr.mxu0 0.0
  %1689 = vmatpush1.msra.mxu0 0.0
  %1690 = vmatprep.subr.mxu0 0.0
  %1691 = vmatpush1.msra.mxu0 0.0
  %1692 = vmatprep.subr.mxu0 0.0
  %1693 = vmatpush1.msra.mxu0 0.0
  %1694 = vmatprep.subr.mxu0 0.0
  %1695 = vmatpush1.msra.mxu0 0.0
  %1696 = vmatprep.subr.mxu0 0.0
  %1697 = vmatpush1.msra.mxu0 0.0
  %1698 = vmatprep.subr.mxu0 0.0
  %1699 = vmatpush1.msra.mxu0 0.0
  %1700 = vmatprep.subr.mxu0 0.0
  %1701 = vmatpush1.msra.mxu0 0.0
  %1702 = vmatprep.subr.mxu0 0.0
  %1703 = vmatpush1.msra.mxu0 0.0
  %1704 = vmatprep.subr.mxu0 0.0
  %1705 = vmatpush1.msra.mxu0 0.0
  %1706 = vmatprep.mubr.f32.mxu0 0.0
  %1707 = vmatmul.mubr.f32.gmra.mrb[0].mxu0 %v1632
  %v1708 = vpop.f32.mrb[0].mxu0
  %v1709 = vadd.f32 0.0, %v1708
  %v1710 = vpop.f32.mrb[0].mxu0
  %1711 = vmatprep.mubr.f32.mxu0 0.0
  %1712 = vmatmul.mubr.f32.gmra.mrb[0].mxu0 %v1635
  %v1713 = vpop.f32.mrb[0].mxu0
  %v1714 = vadd.f32 0.0, %v1713
  %v1715 = vpop.f32.mrb[0].mxu0
  %1716 = vmatprep.mubr.f32.mxu0 0.0
  %1717 = vmatmul.mubr.f32.gmra.mrb[0].mxu0 %v1637
  %v1718 = vpop.f32.mrb[0].mxu0
  %v1719 = vadd.f32 0.0, %v1718
  %v1720 = vpop.f32.mrb[0].mxu0
  %1721 = vmatprep.mubr.f32.mxu0 0.0
  %1722 = vmatmul.mubr.f32.gmra.mrb[0].mxu0 %v1640
  %v1723 = vpop.f32.mrb[0].mxu0
  %v1724 = vadd.f32 0.0, %v1723
  %v1725 = vpop.f32.mrb[0].mxu0
  %1726 = vdwg.mxu0
  %v1727 = vadd.f32 %v1614, %v1709
  %v1728 = vadd.f32 %v1619, %v1714
  %v1729 = vadd.f32 %v1624, %v1719
  %v1730 = vadd.f32 %v1629, %v1724
  %v1732 = vlaneseq
  %v1733 = vshrl.u32 %v1732, 7
  %v1734 = vsub.s32 0, %v1733
  %v1735 = vrot.slane %v1419, %v1734
  %v1737 = vadd.f32 %v1727, %v1735
  %v1738 = vadd.f32 %v1728, %v1735
  %v1739 = vadd.f32 %v1729, %v1735
  %v1740 = vadd.f32 %v1730, %v1735
  %v1741 = vmax.f32 %v1737, 0.0
  %v1742 = vmax.f32 %v1738, 0.0
  %v1743 = vmax.f32 %v1739, 0.0
  %v1744 = vmax.f32 %v1740, 0.0
  %v1745 = vld [vmem:[%s6] sm:$0xff]
  %v1746 = vld [vmem:[%s6 + $0x8] sm:$0xff]
  %v1747 = vld [vmem:[%s6 + $0x10] sm:$0xff]
  %v1748 = vld [vmem:[%s14] sm:$0x1]
  %v1753 = vrot.slane %v1741, 7
  %v1754 = vrot.slane %v1742, 7
  %v1755 = vsel %vm115, %v1753, %v1754
  %v1756 = vrot.slane %v1743, 7
  %v1757 = vrot.slane %v1744, 7
  %v1758 = vsel %vm115, %v1756, %v1757
  %v1761 = vsel %vm115, 0.0, %v1753
  %v1762 = vsel %vm115, 0.0, %v1756
  %v1763 = vrot.slane %v1741, 1
  %v1764 = vrot.slane %v1742, 1
  %v1765 = vsel %vm118, %v1763, %v1764
  %v1766 = vrot.slane %v1743, 1
  %v1767 = vrot.slane %v1744, 1
  %v1768 = vsel %vm118, %v1766, %v1767
  %v1771 = vsel %vm118, %v1764, 0.0
  %v1772 = vsel %vm118, %v1767, 0.0
  %vm1773 = vcmask 64512
  %v1774 = vsel %vm1773, %v1741, 0
  %v1776 = vsel %vm1773, %v1742, 0
  %v1778 = vsel %vm1773, %v1743, 0
  %v1780 = vsel %vm1773, %v1744, 0
  %1782 = vmatprep.subr.mxu0 0.0
  %1783 = vmatpush1.msra.mxu0 %v1746
  %1784 = vmatprep.subr.mxu0 0.0
  %1785 = vmatpush1.msra.mxu0 0.0
  %1786 = vmatprep.subr.mxu0 0.0
  %1787 = vmatpush1.msra.mxu0 0.0
  %1788 = vmatprep.subr.mxu0 0.0
  %1789 = vmatpush1.msra.mxu0 0.0
  %1790 = vmatprep.subr.mxu0 0.0
  %1791 = vmatpush1.msra.mxu0 0.0
  %1792 = vmatprep.subr.mxu0 0.0
  %1793 = vmatpush1.msra.mxu0 0.0
  %1794 = vmatprep.subr.mxu0 0.0
  %1795 = vmatpush1.msra.mxu0 0.0
  %1796 = vmatprep.subr.mxu0 0.0
  %1797 = vmatpush1.msra.mxu0 0.0
  %1798 = vmatprep.subr.mxu0 0.0
  %1799 = vmatpush1.msra.mxu0 0.0
  %1800 = vmatprep.subr.mxu0 0.0
  %1801 = vmatpush1.msra.mxu0 0.0
  %1802 = vmatprep.subr.mxu0 0.0
  %1803 = vmatpush1.msra.mxu0 0.0
  %1804 = vmatprep.subr.mxu0 0.0
  %1805 = vmatpush1.msra.mxu0 0.0
  %1806 = vmatprep.subr.mxu0 0.0
  %1807 = vmatpush1.msra.mxu0 0.0
  %1808 = vmatprep.subr.mxu0 0.0
  %1809 = vmatpush1.msra.mxu0 0.0
  %1810 = vmatprep.subr.mxu0 0.0
  %1811 = vmatpush1.msra.mxu0 0.0
  %1812 = vmatprep.subr.mxu0 0.0
  %1813 = vmatpush1.msra.mxu0 0.0
  %1814 = vmatprep.subr.mxu0 0.0
  %1815 = vmatpush1.msra.mxu0 0.0
  %1816 = vmatprep.subr.mxu0 0.0
  %1817 = vmatpush1.msra.mxu0 0.0
  %1818 = vmatprep.subr.mxu0 0.0
  %1819 = vmatpush1.msra.mxu0 0.0
  %1820 = vmatprep.subr.mxu0 0.0
  %1821 = vmatpush1.msra.mxu0 0.0
  %1822 = vmatprep.subr.mxu0 0.0
  %1823 = vmatpush1.msra.mxu0 0.0
  %1824 = vmatprep.subr.mxu0 0.0
  %1825 = vmatpush1.msra.mxu0 0.0
  %1826 = vmatprep.subr.mxu0 0.0
  %1827 = vmatpush1.msra.mxu0 0.0
  %1828 = vmatprep.subr.mxu0 0.0
  %1829 = vmatpush1.msra.mxu0 0.0
  %1830 = vmatprep.subr.mxu0 0.0
  %1831 = vmatpush1.msra.mxu0 0.0
  %1832 = vmatprep.subr.mxu0 0.0
  %1833 = vmatpush1.msra.mxu0 0.0
  %1834 = vmatprep.subr.mxu0 0.0
  %1835 = vmatpush1.msra.mxu0 0.0
  %1836 = vmatprep.subr.mxu0 0.0
  %1837 = vmatpush1.msra.mxu0 0.0
  %1838 = vmatprep.subr.mxu0 0.0
  %1839 = vmatpush1.msra.mxu0 0.0
  %1840 = vmatprep.subr.mxu0 0.0
  %1841 = vmatpush1.msra.mxu0 0.0
  %1842 = vmatprep.subr.mxu0 0.0
  %1843 = vmatpush1.msra.mxu0 0.0
  %1844 = vmatprep.subr.mxu0 0.0
  %1845 = vmatpush1.msra.mxu0 0.0
  %1846 = vmatprep.mubr.f32.mxu0 0.0
  %1847 = vmatmul.mubr.f32.gmra.mrb[0].mxu0 %v1774
  %v1848 = vpop.f32.mrb[0].mxu0
  %v1849 = vadd.f32 0.0, %v1848
  %v1850 = vpop.f32.mrb[0].mxu0
  %1851 = vmatprep.mubr.f32.mxu0 0.0
  %1852 = vmatmul.mubr.f32.gmra.mrb[0].mxu0 %v1776
  %v1853 = vpop.f32.mrb[0].mxu0
  %v1854 = vadd.f32 0.0, %v1853
  %v1855 = vpop.f32.mrb[0].mxu0
  %1856 = vmatprep.mubr.f32.mxu0 0.0
  %1857 = vmatmul.mubr.f32.gmra.mrb[0].mxu0 %v1778
  %v1858 = vpop.f32.mrb[0].mxu0
  %v1859 = vadd.f32 0.0, %v1858
  %v1860 = vpop.f32.mrb[0].mxu0
  %1861 = vmatprep.mubr.f32.mxu0 0.0
  %1862 = vmatmul.mubr.f32.gmra.mrb[0].mxu0 %v1780
  %v1863 = vpop.f32.mrb[0].mxu0
  %v1864 = vadd.f32 0.0, %v1863
  %v1865 = vpop.f32.mrb[0].mxu0
  %1866 = vdwg.mxu0
  %v1868 = vsel %vm1773, %v1761, 0
  %v1870 = vsel %vm1773, %v1755, 0
  %v1873 = vsel %vm1773, %v1762, 0
  %v1875 = vsel %vm1773, %v1758, 0
  %1877 = vmatprep.subr.mxu0 0.0
  %1878 = vmatpush1.msra.mxu0 %v1745
  %1879 = vmatprep.subr.mxu0 0.0
  %1880 = vmatpush1.msra.mxu0 0.0
  %1881 = vmatprep.subr.mxu0 0.0
  %1882 = vmatpush1.msra.mxu0 0.0
  %1883 = vmatprep.subr.mxu0 0.0
  %1884 = vmatpush1.msra.mxu0 0.0
  %1885 = vmatprep.subr.mxu0 0.0
  %1886 = vmatpush1.msra.mxu0 0.0
  %1887 = vmatprep.subr.mxu0 0.0
  %1888 = vmatpush1.msra.mxu0 0.0
  %1889 = vmatprep.subr.mxu0 0.0
  %1890 = vmatpush1.msra.mxu0 0.0
  %1891 = vmatprep.subr.mxu0 0.0
  %1892 = vmatpush1.msra.mxu0 0.0
  %1893 = vmatprep.subr.mxu0 0.0
  %1894 = vmatpush1.msra.mxu0 0.0
  %1895 = vmatprep.subr.mxu0 0.0
  %1896 = vmatpush1.msra.mxu0 0.0
  %1897 = vmatprep.subr.mxu0 0.0
  %1898 = vmatpush1.msra.mxu0 0.0
  %1899 = vmatprep.subr.mxu0 0.0
  %1900 = vmatpush1.msra.mxu0 0.0
  %1901 = vmatprep.subr.mxu0 0.0
  %1902 = vmatpush1.msra.mxu0 0.0
  %1903 = vmatprep.subr.mxu0 0.0
  %1904 = vmatpush1.msra.mxu0 0.0
  %1905 = vmatprep.subr.mxu0 0.0
  %1906 = vmatpush1.msra.mxu0 0.0
  %1907 = vmatprep.subr.mxu0 0.0
  %1908 = vmatpush1.msra.mxu0 0.0
  %1909 = vmatprep.subr.mxu0 0.0
  %1910 = vmatpush1.msra.mxu0 0.0
  %1911 = vmatprep.subr.mxu0 0.0
  %1912 = vmatpush1.msra.mxu0 0.0
  %1913 = vmatprep.subr.mxu0 0.0
  %1914 = vmatpush1.msra.mxu0 0.0
  %1915 = vmatprep.subr.mxu0 0.0
  %1916 = vmatpush1.msra.mxu0 0.0
  %1917 = vmatprep.subr.mxu0 0.0
  %1918 = vmatpush1.msra.mxu0 0.0
  %1919 = vmatprep.subr.mxu0 0.0
  %1920 = vmatpush1.msra.mxu0 0.0
  %1921 = vmatprep.subr.mxu0 0.0
  %1922 = vmatpush1.msra.mxu0 0.0
  %1923 = vmatprep.subr.mxu0 0.0
  %1924 = vmatpush1.msra.mxu0 0.0
  %1925 = vmatprep.subr.mxu0 0.0
  %1926 = vmatpush1.msra.mxu0 0.0
  %1927 = vmatprep.subr.mxu0 0.0
  %1928 = vmatpush1.msra.mxu0 0.0
  %1929 = vmatprep.subr.mxu0 0.0
  %1930 = vmatpush1.msra.mxu0 0.0
  %1931 = vmatprep.subr.mxu0 0.0
  %1932 = vmatpush1.msra.mxu0 0.0
  %1933 = vmatprep.subr.mxu0 0.0
  %1934 = vmatpush1.msra.mxu0 0.0
  %1935 = vmatprep.subr.mxu0 0.0
  %1936 = vmatpush1.msra.mxu0 0.0
  %1937 = vmatprep.subr.mxu0 0.0
  %1938 = vmatpush1.msra.mxu0 0.0
  %1939 = vmatprep.subr.mxu0 0.0
  %1940 = vmatpush1.msra.mxu0 0.0
  %1941 = vmatprep.mubr.f32.mxu0 0.0
  %1942 = vmatmul.mubr.f32.gmra.mrb[0].mxu0 %v1868
  %v1943 = vpop.f32.mrb[0].mxu0
  %v1944 = vadd.f32 %v1849, %v1943
  %v1945 = vpop.f32.mrb[0].mxu0
  %1946 = vmatprep.mubr.f32.mxu0 0.0
  %1947 = vmatmul.mubr.f32.gmra.mrb[0].mxu0 %v1870
  %v1948 = vpop.f32.mrb[0].mxu0
  %v1949 = vadd.f32 %v1854, %v1948
  %v1950 = vpop.f32.mrb[0].mxu0
  %1951 = vmatprep.mubr.f32.mxu0 0.0
  %1952 = vmatmul.mubr.f32.gmra.mrb[0].mxu0 %v1873
  %v1953 = vpop.f32.mrb[0].mxu0
  %v1954 = vadd.f32 %v1859, %v1953
  %v1955 = vpop.f32.mrb[0].mxu0
  %1956 = vmatprep.mubr.f32.mxu0 0.0
  %1957 = vmatmul.mubr.f32.gmra.mrb[0].mxu0 %v1875
  %v1958 = vpop.f32.mrb[0].mxu0
  %v1959 = vadd.f32 %v1864, %v1958
  %v1960 = vpop.f32.mrb[0].mxu0
  %1961 = vdwg.mxu0
  %v1962 = vsel %vm1773, %v1765, 0
  %v1965 = vsel %vm1773, %v1771, 0
  %v1967 = vsel %vm1773, %v1768, 0
  %v1970 = vsel %vm1773, %v1772, 0
  %1972 = vmatprep.subr.mxu0 0.0
  %1973 = vmatpush1.msra.mxu0 %v1747
  %1974 = vmatprep.subr.mxu0 0.0
  %1975 = vmatpush1.msra.mxu0 0.0
  %1976 = vmatprep.subr.mxu0 0.0
  %1977 = vmatpush1.msra.mxu0 0.0
  %1978 = vmatprep.subr.mxu0 0.0
  %1979 = vmatpush1.msra.mxu0 0.0
  %1980 = vmatprep.subr.mxu0 0.0
  %1981 = vmatpush1.msra.mxu0 0.0
  %1982 = vmatprep.subr.mxu0 0.0
  %1983 = vmatpush1.msra.mxu0 0.0
  %1984 = vmatprep.subr.mxu0 0.0
  %1985 = vmatpush1.msra.mxu0 0.0
  %1986 = vmatprep.subr.mxu0 0.0
  %1987 = vmatpush1.msra.mxu0 0.0
  %1988 = vmatprep.subr.mxu0 0.0
  %1989 = vmatpush1.msra.mxu0 0.0
  %1990 = vmatprep.subr.mxu0 0.0
  %1991 = vmatpush1.msra.mxu0 0.0
  %1992 = vmatprep.subr.mxu0 0.0
  %1993 = vmatpush1.msra.mxu0 0.0
  %1994 = vmatprep.subr.mxu0 0.0
  %1995 = vmatpush1.msra.mxu0 0.0
  %1996 = vmatprep.subr.mxu0 0.0
  %1997 = vmatpush1.msra.mxu0 0.0
  %1998 = vmatprep.subr.mxu0 0.0
  %1999 = vmatpush1.msra.mxu0 0.0
  %2000 = vmatprep.subr.mxu0 0.0
  %2001 = vmatpush1.msra.mxu0 0.0
  %2002 = vmatprep.subr.mxu0 0.0
  %2003 = vmatpush1.msra.mxu0 0.0
  %2004 = vmatprep.subr.mxu0 0.0
  %2005 = vmatpush1.msra.mxu0 0.0
  %2006 = vmatprep.subr.mxu0 0.0
  %2007 = vmatpush1.msra.mxu0 0.0
  %2008 = vmatprep.subr.mxu0 0.0
  %2009 = vmatpush1.msra.mxu0 0.0
  %2010 = vmatprep.subr.mxu0 0.0
  %2011 = vmatpush1.msra.mxu0 0.0
  %2012 = vmatprep.subr.mxu0 0.0
  %2013 = vmatpush1.msra.mxu0 0.0
  %2014 = vmatprep.subr.mxu0 0.0
  %2015 = vmatpush1.msra.mxu0 0.0
  %2016 = vmatprep.subr.mxu0 0.0
  %2017 = vmatpush1.msra.mxu0 0.0
  %2018 = vmatprep.subr.mxu0 0.0
  %2019 = vmatpush1.msra.mxu0 0.0
  %2020 = vmatprep.subr.mxu0 0.0
  %2021 = vmatpush1.msra.mxu0 0.0
  %2022 = vmatprep.subr.mxu0 0.0
  %2023 = vmatpush1.msra.mxu0 0.0
  %2024 = vmatprep.subr.mxu0 0.0
  %2025 = vmatpush1.msra.mxu0 0.0
  %2026 = vmatprep.subr.mxu0 0.0
  %2027 = vmatpush1.msra.mxu0 0.0
  %2028 = vmatprep.subr.mxu0 0.0
  %2029 = vmatpush1.msra.mxu0 0.0
  %2030 = vmatprep.subr.mxu0 0.0
  %2031 = vmatpush1.msra.mxu0 0.0
  %2032 = vmatprep.subr.mxu0 0.0
  %2033 = vmatpush1.msra.mxu0 0.0
  %2034 = vmatprep.subr.mxu0 0.0
  %2035 = vmatpush1.msra.mxu0 0.0
  %2036 = vmatprep.mubr.f32.mxu0 0.0
  %2037 = vmatmul.mubr.f32.gmra.mrb[0].mxu0 %v1962
  %v2038 = vpop.f32.mrb[0].mxu0
  %v2039 = vadd.f32 0.0, %v2038
  %v2040 = vpop.f32.mrb[0].mxu0
  %2041 = vmatprep.mubr.f32.mxu0 0.0
  %2042 = vmatmul.mubr.f32.gmra.mrb[0].mxu0 %v1965
  %v2043 = vpop.f32.mrb[0].mxu0
  %v2044 = vadd.f32 0.0, %v2043
  %v2045 = vpop.f32.mrb[0].mxu0
  %2046 = vmatprep.mubr.f32.mxu0 0.0
  %2047 = vmatmul.mubr.f32.gmra.mrb[0].mxu0 %v1967
  %v2048 = vpop.f32.mrb[0].mxu0
  %v2049 = vadd.f32 0.0, %v2048
  %v2050 = vpop.f32.mrb[0].mxu0
  %2051 = vmatprep.mubr.f32.mxu0 0.0
  %2052 = vmatmul.mubr.f32.gmra.mrb[0].mxu0 %v1970
  %v2053 = vpop.f32.mrb[0].mxu0
  %v2054 = vadd.f32 0.0, %v2053
  %v2055 = vpop.f32.mrb[0].mxu0
  %2056 = vdwg.mxu0
  %v2057 = vadd.f32 %v1944, %v2039
  %v2058 = vadd.f32 %v1949, %v2044
  %v2059 = vadd.f32 %v1954, %v2049
  %v2060 = vadd.f32 %v1959, %v2054
  %v2062 = vlaneseq
  %v2063 = vshrl.u32 %v2062, 7
  %v2064 = vsub.s32 0, %v2063
  %v2065 = vrot.slane %v1748, %v2064
  %v2067 = vadd.f32 %v2057, %v2065
  %v2068 = vadd.f32 %v2058, %v2065
  %v2069 = vadd.f32 %v2059, %v2065
  %v2070 = vadd.f32 %v2060, %v2065
  %v2071 = vld [vmem:[%s7] sm:$0xff]
  %v2072 = vld [vmem:[%s7 + $0x8] sm:$0xff]
  %v2073 = vld [vmem:[%s7 + $0x10] sm:$0xff]
  %v2074 = vld [vmem:[%s15] sm:$0x1]
  %v2079 = vrot.slane %v2067, 7
  %v2080 = vrot.slane %v2068, 7
  %v2081 = vsel %vm115, %v2079, %v2080
  %v2082 = vrot.slane %v2069, 7
  %v2083 = vrot.slane %v2070, 7
  %v2084 = vsel %vm115, %v2082, %v2083
  %v2087 = vsel %vm115, 0.0, %v2079
  %v2088 = vsel %vm115, 0.0, %v2082
  %v2089 = vrot.slane %v2067, 1
  %v2090 = vrot.slane %v2068, 1
  %v2091 = vsel %vm118, %v2089, %v2090
  %v2092 = vrot.slane %v2069, 1
  %v2093 = vrot.slane %v2070, 1
  %v2094 = vsel %vm118, %v2092, %v2093
  %v2097 = vsel %vm118, %v2090, 0.0
  %v2098 = vsel %vm118, %v2093, 0.0
  %v2099 = vsel %vm1773, %v2067, 0
  %v2101 = vsel %vm1773, %v2068, 0
  %v2103 = vsel %vm1773, %v2069, 0
  %v2105 = vsel %vm1773, %v2070, 0
  %2107 = vmatprep.subr.mxu0 0.0
  %2108 = vmatpush1.msra.mxu0 %v2072
  %2109 = vmatprep.subr.mxu0 0.0
  %2110 = vmatpush1.msra.mxu0 0.0
  %2111 = vmatprep.subr.mxu0 0.0
  %2112 = vmatpush1.msra.mxu0 0.0
  %2113 = vmatprep.subr.mxu0 0.0
  %2114 = vmatpush1.msra.mxu0 0.0
  %2115 = vmatprep.subr.mxu0 0.0
  %2116 = vmatpush1.msra.mxu0 0.0
  %2117 = vmatprep.subr.mxu0 0.0
  %2118 = vmatpush1.msra.mxu0 0.0
  %2119 = vmatprep.subr.mxu0 0.0
  %2120 = vmatpush1.msra.mxu0 0.0
  %2121 = vmatprep.subr.mxu0 0.0
  %2122 = vmatpush1.msra.mxu0 0.0
  %2123 = vmatprep.subr.mxu0 0.0
  %2124 = vmatpush1.msra.mxu0 0.0
  %2125 = vmatprep.subr.mxu0 0.0
  %2126 = vmatpush1.msra.mxu0 0.0
  %2127 = vmatprep.subr.mxu0 0.0
  %2128 = vmatpush1.msra.mxu0 0.0
  %2129 = vmatprep.subr.mxu0 0.0
  %2130 = vmatpush1.msra.mxu0 0.0
  %2131 = vmatprep.subr.mxu0 0.0
  %2132 = vmatpush1.msra.mxu0 0.0
  %2133 = vmatprep.subr.mxu0 0.0
  %2134 = vmatpush1.msra.mxu0 0.0
  %2135 = vmatprep.subr.mxu0 0.0
  %2136 = vmatpush1.msra.mxu0 0.0
  %2137 = vmatprep.subr.mxu0 0.0
  %2138 = vmatpush1.msra.mxu0 0.0
  %2139 = vmatprep.subr.mxu0 0.0
  %2140 = vmatpush1.msra.mxu0 0.0
  %2141 = vmatprep.subr.mxu0 0.0
  %2142 = vmatpush1.msra.mxu0 0.0
  %2143 = vmatprep.subr.mxu0 0.0
  %2144 = vmatpush1.msra.mxu0 0.0
  %2145 = vmatprep.subr.mxu0 0.0
  %2146 = vmatpush1.msra.mxu0 0.0
  %2147 = vmatprep.subr.mxu0 0.0
  %2148 = vmatpush1.msra.mxu0 0.0
  %2149 = vmatprep.subr.mxu0 0.0
  %2150 = vmatpush1.msra.mxu0 0.0
  %2151 = vmatprep.subr.mxu0 0.0
  %2152 = vmatpush1.msra.mxu0 0.0
  %2153 = vmatprep.subr.mxu0 0.0
  %2154 = vmatpush1.msra.mxu0 0.0
  %2155 = vmatprep.subr.mxu0 0.0
  %2156 = vmatpush1.msra.mxu0 0.0
  %2157 = vmatprep.subr.mxu0 0.0
  %2158 = vmatpush1.msra.mxu0 0.0
  %2159 = vmatprep.subr.mxu0 0.0
  %2160 = vmatpush1.msra.mxu0 0.0
  %2161 = vmatprep.subr.mxu0 0.0
  %2162 = vmatpush1.msra.mxu0 0.0
  %2163 = vmatprep.subr.mxu0 0.0
  %2164 = vmatpush1.msra.mxu0 0.0
  %2165 = vmatprep.subr.mxu0 0.0
  %2166 = vmatpush1.msra.mxu0 0.0
  %2167 = vmatprep.subr.mxu0 0.0
  %2168 = vmatpush1.msra.mxu0 0.0
  %2169 = vmatprep.subr.mxu0 0.0
  %2170 = vmatpush1.msra.mxu0 0.0
  %2171 = vmatprep.mubr.f32.mxu0 0.0
  %2172 = vmatmul.mubr.f32.gmra.mrb[0].mxu0 %v2099
  %v2173 = vpop.f32.mrb[0].mxu0
  %v2174 = vadd.f32 0.0, %v2173
  %v2175 = vpop.f32.mrb[0].mxu0
  %2176 = vmatprep.mubr.f32.mxu0 0.0
  %2177 = vmatmul.mubr.f32.gmra.mrb[0].mxu0 %v2101
  %v2178 = vpop.f32.mrb[0].mxu0
  %v2179 = vadd.f32 0.0, %v2178
  %v2180 = vpop.f32.mrb[0].mxu0
  %2181 = vmatprep.mubr.f32.mxu0 0.0
  %2182 = vmatmul.mubr.f32.gmra.mrb[0].mxu0 %v2103
  %v2183 = vpop.f32.mrb[0].mxu0
  %v2184 = vadd.f32 0.0, %v2183
  %v2185 = vpop.f32.mrb[0].mxu0
  %2186 = vmatprep.mubr.f32.mxu0 0.0
  %2187 = vmatmul.mubr.f32.gmra.mrb[0].mxu0 %v2105
  %v2188 = vpop.f32.mrb[0].mxu0
  %v2189 = vadd.f32 0.0, %v2188
  %v2190 = vpop.f32.mrb[0].mxu0
  %2191 = vdwg.mxu0
  %v2193 = vsel %vm1773, %v2087, 0
  %v2195 = vsel %vm1773, %v2081, 0
  %v2198 = vsel %vm1773, %v2088, 0
  %v2200 = vsel %vm1773, %v2084, 0
  %2202 = vmatprep.subr.mxu0 0.0
  %2203 = vmatpush1.msra.mxu0 %v2071
  %2204 = vmatprep.subr.mxu0 0.0
  %2205 = vmatpush1.msra.mxu0 0.0
  %2206 = vmatprep.subr.mxu0 0.0
  %2207 = vmatpush1.msra.mxu0 0.0
  %2208 = vmatprep.subr.mxu0 0.0
  %2209 = vmatpush1.msra.mxu0 0.0
  %2210 = vmatprep.subr.mxu0 0.0
  %2211 = vmatpush1.msra.mxu0 0.0
  %2212 = vmatprep.subr.mxu0 0.0
  %2213 = vmatpush1.msra.mxu0 0.0
  %2214 = vmatprep.subr.mxu0 0.0
  %2215 = vmatpush1.msra.mxu0 0.0
  %2216 = vmatprep.subr.mxu0 0.0
  %2217 = vmatpush1.msra.mxu0 0.0
  %2218 = vmatprep.subr.mxu0 0.0
  %2219 = vmatpush1.msra.mxu0 0.0
  %2220 = vmatprep.subr.mxu0 0.0
  %2221 = vmatpush1.msra.mxu0 0.0
  %2222 = vmatprep.subr.mxu0 0.0
  %2223 = vmatpush1.msra.mxu0 0.0
  %2224 = vmatprep.subr.mxu0 0.0
  %2225 = vmatpush1.msra.mxu0 0.0
  %2226 = vmatprep.subr.mxu0 0.0
  %2227 = vmatpush1.msra.mxu0 0.0
  %2228 = vmatprep.subr.mxu0 0.0
  %2229 = vmatpush1.msra.mxu0 0.0
  %2230 = vmatprep.subr.mxu0 0.0
  %2231 = vmatpush1.msra.mxu0 0.0
  %2232 = vmatprep.subr.mxu0 0.0
  %2233 = vmatpush1.msra.mxu0 0.0
  %2234 = vmatprep.subr.mxu0 0.0
  %2235 = vmatpush1.msra.mxu0 0.0
  %2236 = vmatprep.subr.mxu0 0.0
  %2237 = vmatpush1.msra.mxu0 0.0
  %2238 = vmatprep.subr.mxu0 0.0
  %2239 = vmatpush1.msra.mxu0 0.0
  %2240 = vmatprep.subr.mxu0 0.0
  %2241 = vmatpush1.msra.mxu0 0.0
  %2242 = vmatprep.subr.mxu0 0.0
  %2243 = vmatpush1.msra.mxu0 0.0
  %2244 = vmatprep.subr.mxu0 0.0
  %2245 = vmatpush1.msra.mxu0 0.0
  %2246 = vmatprep.subr.mxu0 0.0
  %2247 = vmatpush1.msra.mxu0 0.0
  %2248 = vmatprep.subr.mxu0 0.0
  %2249 = vmatpush1.msra.mxu0 0.0
  %2250 = vmatprep.subr.mxu0 0.0
  %2251 = vmatpush1.msra.mxu0 0.0
  %2252 = vmatprep.subr.mxu0 0.0
  %2253 = vmatpush1.msra.mxu0 0.0
  %2254 = vmatprep.subr.mxu0 0.0
  %2255 = vmatpush1.msra.mxu0 0.0
  %2256 = vmatprep.subr.mxu0 0.0
  %2257 = vmatpush1.msra.mxu0 0.0
  %2258 = vmatprep.subr.mxu0 0.0
  %2259 = vmatpush1.msra.mxu0 0.0
  %2260 = vmatprep.subr.mxu0 0.0
  %2261 = vmatpush1.msra.mxu0 0.0
  %2262 = vmatprep.subr.mxu0 0.0
  %2263 = vmatpush1.msra.mxu0 0.0
  %2264 = vmatprep.subr.mxu0 0.0
  %2265 = vmatpush1.msra.mxu0 0.0
  %2266 = vmatprep.mubr.f32.mxu0 0.0
  %2267 = vmatmul.mubr.f32.gmra.mrb[0].mxu0 %v2193
  %v2268 = vpop.f32.mrb[0].mxu0
  %v2269 = vadd.f32 %v2174, %v2268
  %v2270 = vpop.f32.mrb[0].mxu0
  %2271 = vmatprep.mubr.f32.mxu0 0.0
  %2272 = vmatmul.mubr.f32.gmra.mrb[0].mxu0 %v2195
  %v2273 = vpop.f32.mrb[0].mxu0
  %v2274 = vadd.f32 %v2179, %v2273
  %v2275 = vpop.f32.mrb[0].mxu0
  %2276 = vmatprep.mubr.f32.mxu0 0.0
  %2277 = vmatmul.mubr.f32.gmra.mrb[0].mxu0 %v2198
  %v2278 = vpop.f32.mrb[0].mxu0
  %v2279 = vadd.f32 %v2184, %v2278
  %v2280 = vpop.f32.mrb[0].mxu0
  %2281 = vmatprep.mubr.f32.mxu0 0.0
  %2282 = vmatmul.mubr.f32.gmra.mrb[0].mxu0 %v2200
  %v2283 = vpop.f32.mrb[0].mxu0
  %v2284 = vadd.f32 %v2189, %v2283
  %v2285 = vpop.f32.mrb[0].mxu0
  %2286 = vdwg.mxu0
  %v2287 = vsel %vm1773, %v2091, 0
  %v2290 = vsel %vm1773, %v2097, 0
  %v2292 = vsel %vm1773, %v2094, 0
  %v2295 = vsel %vm1773, %v2098, 0
  %2297 = vmatprep.subr.mxu0 0.0
  %2298 = vmatpush1.msra.mxu0 %v2073
  %2299 = vmatprep.subr.mxu0 0.0
  %2300 = vmatpush1.msra.mxu0 0.0
  %2301 = vmatprep.subr.mxu0 0.0
  %2302 = vmatpush1.msra.mxu0 0.0
  %2303 = vmatprep.subr.mxu0 0.0
  %2304 = vmatpush1.msra.mxu0 0.0
  %2305 = vmatprep.subr.mxu0 0.0
  %2306 = vmatpush1.msra.mxu0 0.0
  %2307 = vmatprep.subr.mxu0 0.0
  %2308 = vmatpush1.msra.mxu0 0.0
  %2309 = vmatprep.subr.mxu0 0.0
  %2310 = vmatpush1.msra.mxu0 0.0
  %2311 = vmatprep.subr.mxu0 0.0
  %2312 = vmatpush1.msra.mxu0 0.0
  %2313 = vmatprep.subr.mxu0 0.0
  %2314 = vmatpush1.msra.mxu0 0.0
  %2315 = vmatprep.subr.mxu0 0.0
  %2316 = vmatpush1.msra.mxu0 0.0
  %2317 = vmatprep.subr.mxu0 0.0
  %2318 = vmatpush1.msra.mxu0 0.0
  %2319 = vmatprep.subr.mxu0 0.0
  %2320 = vmatpush1.msra.mxu0 0.0
  %2321 = vmatprep.subr.mxu0 0.0
  %2322 = vmatpush1.msra.mxu0 0.0
  %2323 = vmatprep.subr.mxu0 0.0
  %2324 = vmatpush1.msra.mxu0 0.0
  %2325 = vmatprep.subr.mxu0 0.0
  %2326 = vmatpush1.msra.mxu0 0.0
  %2327 = vmatprep.subr.mxu0 0.0
  %2328 = vmatpush1.msra.mxu0 0.0
  %2329 = vmatprep.subr.mxu0 0.0
  %2330 = vmatpush1.msra.mxu0 0.0
  %2331 = vmatprep.subr.mxu0 0.0
  %2332 = vmatpush1.msra.mxu0 0.0
  %2333 = vmatprep.subr.mxu0 0.0
  %2334 = vmatpush1.msra.mxu0 0.0
  %2335 = vmatprep.subr.mxu0 0.0
  %2336 = vmatpush1.msra.mxu0 0.0
  %2337 = vmatprep.subr.mxu0 0.0
  %2338 = vmatpush1.msra.mxu0 0.0
  %2339 = vmatprep.subr.mxu0 0.0
  %2340 = vmatpush1.msra.mxu0 0.0
  %2341 = vmatprep.subr.mxu0 0.0
  %2342 = vmatpush1.msra.mxu0 0.0
  %2343 = vmatprep.subr.mxu0 0.0
  %2344 = vmatpush1.msra.mxu0 0.0
  %2345 = vmatprep.subr.mxu0 0.0
  %2346 = vmatpush1.msra.mxu0 0.0
  %2347 = vmatprep.subr.mxu0 0.0
  %2348 = vmatpush1.msra.mxu0 0.0
  %2349 = vmatprep.subr.mxu0 0.0
  %2350 = vmatpush1.msra.mxu0 0.0
  %2351 = vmatprep.subr.mxu0 0.0
  %2352 = vmatpush1.msra.mxu0 0.0
  %2353 = vmatprep.subr.mxu0 0.0
  %2354 = vmatpush1.msra.mxu0 0.0
  %2355 = vmatprep.subr.mxu0 0.0
  %2356 = vmatpush1.msra.mxu0 0.0
  %2357 = vmatprep.subr.mxu0 0.0
  %2358 = vmatpush1.msra.mxu0 0.0
  %2359 = vmatprep.subr.mxu0 0.0
  %2360 = vmatpush1.msra.mxu0 0.0
  %2361 = vmatprep.mubr.f32.mxu0 0.0
  %2362 = vmatmul.mubr.f32.gmra.mrb[0].mxu0 %v2287
  %v2363 = vpop.f32.mrb[0].mxu0
  %v2364 = vadd.f32 0.0, %v2363
  %v2365 = vpop.f32.mrb[0].mxu0
  %2366 = vmatprep.mubr.f32.mxu0 0.0
  %2367 = vmatmul.mubr.f32.gmra.mrb[0].mxu0 %v2290
  %v2368 = vpop.f32.mrb[0].mxu0
  %v2369 = vadd.f32 0.0, %v2368
  %v2370 = vpop.f32.mrb[0].mxu0
  %2371 = vmatprep.mubr.f32.mxu0 0.0
  %2372 = vmatmul.mubr.f32.gmra.mrb[0].mxu0 %v2292
  %v2373 = vpop.f32.mrb[0].mxu0
  %v2374 = vadd.f32 0.0, %v2373
  %v2375 = vpop.f32.mrb[0].mxu0
  %2376 = vmatprep.mubr.f32.mxu0 0.0
  %2377 = vmatmul.mubr.f32.gmra.mrb[0].mxu0 %v2295
  %v2378 = vpop.f32.mrb[0].mxu0
  %v2379 = vadd.f32 0.0, %v2378
  %v2380 = vpop.f32.mrb[0].mxu0
  %2381 = vdwg.mxu0
  %v2382 = vadd.f32 %v2269, %v2364
  %v2383 = vadd.f32 %v2274, %v2369
  %v2384 = vadd.f32 %v2279, %v2374
  %v2385 = vadd.f32 %v2284, %v2379
  %v2387 = vlaneseq
  %v2388 = vshrl.u32 %v2387, 7
  %v2389 = vsub.s32 0, %v2388
  %v2390 = vrot.slane %v2074, %v2389
  %v2392 = vadd.f32 %v2382, %v2390
  %v2393 = vadd.f32 %v2383, %v2390
  %v2394 = vadd.f32 %v2384, %v2390
  %v2395 = vadd.f32 %v2385, %v2390
  %v2396 = vmax.f32 %v2392, 0.0
  %v2397 = vmax.f32 %v2393, 0.0
  %v2398 = vmax.f32 %v2394, 0.0
  %v2399 = vmax.f32 %v2395, 0.0
  %v2400 = vld [vmem:[%s8] sm:$0xf]
  %v2401 = vld [vmem:[%s8 + $0x4] sm:$0xf]
  %v2402 = vld [vmem:[%s8 + $0x8] sm:$0xf]
  %v2403 = vld [vmem:[%s16] sm:$0x1]
  %v2408 = vrot.slane %v2396, 7
  %v2409 = vrot.slane %v2397, 7
  %v2410 = vsel %vm115, %v2408, %v2409
  %v2411 = vrot.slane %v2398, 7
  %v2412 = vrot.slane %v2399, 7
  %v2413 = vsel %vm115, %v2411, %v2412
  %v2416 = vsel %vm115, 0.0, %v2408
  %v2417 = vsel %vm115, 0.0, %v2411
  %v2418 = vrot.slane %v2396, 1
  %v2419 = vrot.slane %v2397, 1
  %v2420 = vsel %vm118, %v2418, %v2419
  %v2421 = vrot.slane %v2398, 1
  %v2422 = vrot.slane %v2399, 1
  %v2423 = vsel %vm118, %v2421, %v2422
  %v2426 = vsel %vm118, %v2419, 0.0
  %v2427 = vsel %vm118, %v2422, 0.0
  %vm2428 = vcmask 31744
  %v2429 = vsel %vm2428, %v2396, 0
  %v2431 = vsel %vm2428, %v2397, 0
  %v2433 = vsel %vm2428, %v2398, 0
  %v2435 = vsel %vm2428, %v2399, 0
  %vm2437 = vcmask 1043456
  %v2439 = vsel %vm2437, %v2401, 0
  %2441 = vmatprep.subr.mxu0 0.0
  %2442 = vmatpush1.msra.mxu0 %v2439
  %2443 = vmatprep.subr.mxu0 0.0
  %2444 = vmatpush1.msra.mxu0 0.0
  %2445 = vmatprep.subr.mxu0 0.0
  %2446 = vmatpush1.msra.mxu0 0.0
  %2447 = vmatprep.subr.mxu0 0.0
  %2448 = vmatpush1.msra.mxu0 0.0
  %2449 = vmatprep.subr.mxu0 0.0
  %2450 = vmatpush1.msra.mxu0 0.0
  %2451 = vmatprep.subr.mxu0 0.0
  %2452 = vmatpush1.msra.mxu0 0.0
  %2453 = vmatprep.subr.mxu0 0.0
  %2454 = vmatpush1.msra.mxu0 0.0
  %2455 = vmatprep.subr.mxu0 0.0
  %2456 = vmatpush1.msra.mxu0 0.0
  %2457 = vmatprep.subr.mxu0 0.0
  %2458 = vmatpush1.msra.mxu0 0.0
  %2459 = vmatprep.subr.mxu0 0.0
  %2460 = vmatpush1.msra.mxu0 0.0
  %2461 = vmatprep.subr.mxu0 0.0
  %2462 = vmatpush1.msra.mxu0 0.0
  %2463 = vmatprep.subr.mxu0 0.0
  %2464 = vmatpush1.msra.mxu0 0.0
  %2465 = vmatprep.subr.mxu0 0.0
  %2466 = vmatpush1.msra.mxu0 0.0
  %2467 = vmatprep.subr.mxu0 0.0
  %2468 = vmatpush1.msra.mxu0 0.0
  %2469 = vmatprep.subr.mxu0 0.0
  %2470 = vmatpush1.msra.mxu0 0.0
  %2471 = vmatprep.subr.mxu0 0.0
  %2472 = vmatpush1.msra.mxu0 0.0
  %2473 = vmatprep.subr.mxu0 0.0
  %2474 = vmatpush1.msra.mxu0 0.0
  %2475 = vmatprep.subr.mxu0 0.0
  %2476 = vmatpush1.msra.mxu0 0.0
  %2477 = vmatprep.subr.mxu0 0.0
  %2478 = vmatpush1.msra.mxu0 0.0
  %2479 = vmatprep.subr.mxu0 0.0
  %2480 = vmatpush1.msra.mxu0 0.0
  %2481 = vmatprep.subr.mxu0 0.0
  %2482 = vmatpush1.msra.mxu0 0.0
  %2483 = vmatprep.subr.mxu0 0.0
  %2484 = vmatpush1.msra.mxu0 0.0
  %2485 = vmatprep.subr.mxu0 0.0
  %2486 = vmatpush1.msra.mxu0 0.0
  %2487 = vmatprep.subr.mxu0 0.0
  %2488 = vmatpush1.msra.mxu0 0.0
  %2489 = vmatprep.subr.mxu0 0.0
  %2490 = vmatpush1.msra.mxu0 0.0
  %2491 = vmatprep.subr.mxu0 0.0
  %2492 = vmatpush1.msra.mxu0 0.0
  %2493 = vmatprep.subr.mxu0 0.0
  %2494 = vmatpush1.msra.mxu0 0.0
  %2495 = vmatprep.subr.mxu0 0.0
  %2496 = vmatpush1.msra.mxu0 0.0
  %2497 = vmatprep.subr.mxu0 0.0
  %2498 = vmatpush1.msra.mxu0 0.0
  %2499 = vmatprep.subr.mxu0 0.0
  %2500 = vmatpush1.msra.mxu0 0.0
  %2501 = vmatprep.subr.mxu0 0.0
  %2502 = vmatpush1.msra.mxu0 0.0
  %2503 = vmatprep.subr.mxu0 0.0
  %2504 = vmatpush1.msra.mxu0 0.0
  %2505 = vmatprep.mubr.f32.mxu0 0.0
  %2506 = vmatmul.mubr.f32.gmra.mrb[0].mxu0 %v2429
  %v2507 = vpop.f32.mrb[0].mxu0
  %v2508 = vadd.f32 0.0, %v2507
  %v2509 = vpop.f32.mrb[0].mxu0
  %2510 = vmatprep.mubr.f32.mxu0 0.0
  %2511 = vmatmul.mubr.f32.gmra.mrb[0].mxu0 %v2431
  %v2512 = vpop.f32.mrb[0].mxu0
  %v2513 = vadd.f32 0.0, %v2512
  %v2514 = vpop.f32.mrb[0].mxu0
  %2515 = vmatprep.mubr.f32.mxu0 0.0
  %2516 = vmatmul.mubr.f32.gmra.mrb[0].mxu0 %v2433
  %v2517 = vpop.f32.mrb[0].mxu0
  %v2518 = vadd.f32 0.0, %v2517
  %v2519 = vpop.f32.mrb[0].mxu0
  %2520 = vmatprep.mubr.f32.mxu0 0.0
  %2521 = vmatmul.mubr.f32.gmra.mrb[0].mxu0 %v2435
  %v2522 = vpop.f32.mrb[0].mxu0
  %v2523 = vadd.f32 0.0, %v2522
  %v2524 = vpop.f32.mrb[0].mxu0
  %2525 = vdwg.mxu0
  %v2527 = vsel %vm2428, %v2416, 0
  %v2529 = vsel %vm2428, %v2410, 0
  %v2532 = vsel %vm2428, %v2417, 0
  %v2534 = vsel %vm2428, %v2413, 0
  %v2537 = vsel %vm2437, %v2400, 0
  %2539 = vmatprep.subr.mxu0 0.0
  %2540 = vmatpush1.msra.mxu0 %v2537
  %2541 = vmatprep.subr.mxu0 0.0
  %2542 = vmatpush1.msra.mxu0 0.0
  %2543 = vmatprep.subr.mxu0 0.0
  %2544 = vmatpush1.msra.mxu0 0.0
  %2545 = vmatprep.subr.mxu0 0.0
  %2546 = vmatpush1.msra.mxu0 0.0
  %2547 = vmatprep.subr.mxu0 0.0
  %2548 = vmatpush1.msra.mxu0 0.0
  %2549 = vmatprep.subr.mxu0 0.0
  %2550 = vmatpush1.msra.mxu0 0.0
  %2551 = vmatprep.subr.mxu0 0.0
  %2552 = vmatpush1.msra.mxu0 0.0
  %2553 = vmatprep.subr.mxu0 0.0
  %2554 = vmatpush1.msra.mxu0 0.0
  %2555 = vmatprep.subr.mxu0 0.0
  %2556 = vmatpush1.msra.mxu0 0.0
  %2557 = vmatprep.subr.mxu0 0.0
  %2558 = vmatpush1.msra.mxu0 0.0
  %2559 = vmatprep.subr.mxu0 0.0
  %2560 = vmatpush1.msra.mxu0 0.0
  %2561 = vmatprep.subr.mxu0 0.0
  %2562 = vmatpush1.msra.mxu0 0.0
  %2563 = vmatprep.subr.mxu0 0.0
  %2564 = vmatpush1.msra.mxu0 0.0
  %2565 = vmatprep.subr.mxu0 0.0
  %2566 = vmatpush1.msra.mxu0 0.0
  %2567 = vmatprep.subr.mxu0 0.0
  %2568 = vmatpush1.msra.mxu0 0.0
  %2569 = vmatprep.subr.mxu0 0.0
  %2570 = vmatpush1.msra.mxu0 0.0
  %2571 = vmatprep.subr.mxu0 0.0
  %2572 = vmatpush1.msra.mxu0 0.0
  %2573 = vmatprep.subr.mxu0 0.0
  %2574 = vmatpush1.msra.mxu0 0.0
  %2575 = vmatprep.subr.mxu0 0.0
  %2576 = vmatpush1.msra.mxu0 0.0
  %2577 = vmatprep.subr.mxu0 0.0
  %2578 = vmatpush1.msra.mxu0 0.0
  %2579 = vmatprep.subr.mxu0 0.0
  %2580 = vmatpush1.msra.mxu0 0.0
  %2581 = vmatprep.subr.mxu0 0.0
  %2582 = vmatpush1.msra.mxu0 0.0
  %2583 = vmatprep.subr.mxu0 0.0
  %2584 = vmatpush1.msra.mxu0 0.0
  %2585 = vmatprep.subr.mxu0 0.0
  %2586 = vmatpush1.msra.mxu0 0.0
  %2587 = vmatprep.subr.mxu0 0.0
  %2588 = vmatpush1.msra.mxu0 0.0
  %2589 = vmatprep.subr.mxu0 0.0
  %2590 = vmatpush1.msra.mxu0 0.0
  %2591 = vmatprep.subr.mxu0 0.0
  %2592 = vmatpush1.msra.mxu0 0.0
  %2593 = vmatprep.subr.mxu0 0.0
  %2594 = vmatpush1.msra.mxu0 0.0
  %2595 = vmatprep.subr.mxu0 0.0
  %2596 = vmatpush1.msra.mxu0 0.0
  %2597 = vmatprep.subr.mxu0 0.0
  %2598 = vmatpush1.msra.mxu0 0.0
  %2599 = vmatprep.subr.mxu0 0.0
  %2600 = vmatpush1.msra.mxu0 0.0
  %2601 = vmatprep.subr.mxu0 0.0
  %2602 = vmatpush1.msra.mxu0 0.0
  %2603 = vmatprep.mubr.f32.mxu0 0.0
  %2604 = vmatmul.mubr.f32.gmra.mrb[0].mxu0 %v2527
  %v2605 = vpop.f32.mrb[0].mxu0
  %v2606 = vadd.f32 %v2508, %v2605
  %v2607 = vpop.f32.mrb[0].mxu0
  %2608 = vmatprep.mubr.f32.mxu0 0.0
  %2609 = vmatmul.mubr.f32.gmra.mrb[0].mxu0 %v2529
  %v2610 = vpop.f32.mrb[0].mxu0
  %v2611 = vadd.f32 %v2513, %v2610
  %v2612 = vpop.f32.mrb[0].mxu0
  %2613 = vmatprep.mubr.f32.mxu0 0.0
  %2614 = vmatmul.mubr.f32.gmra.mrb[0].mxu0 %v2532
  %v2615 = vpop.f32.mrb[0].mxu0
  %v2616 = vadd.f32 %v2518, %v2615
  %v2617 = vpop.f32.mrb[0].mxu0
  %2618 = vmatprep.mubr.f32.mxu0 0.0
  %2619 = vmatmul.mubr.f32.gmra.mrb[0].mxu0 %v2534
  %v2620 = vpop.f32.mrb[0].mxu0
  %v2621 = vadd.f32 %v2523, %v2620
  %v2622 = vpop.f32.mrb[0].mxu0
  %2623 = vdwg.mxu0
  %v2624 = vsel %vm2428, %v2420, 0
  %v2627 = vsel %vm2428, %v2426, 0
  %v2629 = vsel %vm2428, %v2423, 0
  %v2632 = vsel %vm2428, %v2427, 0
  %v2635 = vsel %vm2437, %v2402, 0
  %2637 = vmatprep.subr.mxu0 0.0
  %2638 = vmatpush1.msra.mxu0 %v2635
  %2639 = vmatprep.subr.mxu0 0.0
  %2640 = vmatpush1.msra.mxu0 0.0
  %2641 = vmatprep.subr.mxu0 0.0
  %2642 = vmatpush1.msra.mxu0 0.0
  %2643 = vmatprep.subr.mxu0 0.0
  %2644 = vmatpush1.msra.mxu0 0.0
  %2645 = vmatprep.subr.mxu0 0.0
  %2646 = vmatpush1.msra.mxu0 0.0
  %2647 = vmatprep.subr.mxu0 0.0
  %2648 = vmatpush1.msra.mxu0 0.0
  %2649 = vmatprep.subr.mxu0 0.0
  %2650 = vmatpush1.msra.mxu0 0.0
  %2651 = vmatprep.subr.mxu0 0.0
  %2652 = vmatpush1.msra.mxu0 0.0
  %2653 = vmatprep.subr.mxu0 0.0
  %2654 = vmatpush1.msra.mxu0 0.0
  %2655 = vmatprep.subr.mxu0 0.0
  %2656 = vmatpush1.msra.mxu0 0.0
  %2657 = vmatprep.subr.mxu0 0.0
  %2658 = vmatpush1.msra.mxu0 0.0
  %2659 = vmatprep.subr.mxu0 0.0
  %2660 = vmatpush1.msra.mxu0 0.0
  %2661 = vmatprep.subr.mxu0 0.0
  %2662 = vmatpush1.msra.mxu0 0.0
  %2663 = vmatprep.subr.mxu0 0.0
  %2664 = vmatpush1.msra.mxu0 0.0
  %2665 = vmatprep.subr.mxu0 0.0
  %2666 = vmatpush1.msra.mxu0 0.0
  %2667 = vmatprep.subr.mxu0 0.0
  %2668 = vmatpush1.msra.mxu0 0.0
  %2669 = vmatprep.subr.mxu0 0.0
  %2670 = vmatpush1.msra.mxu0 0.0
  %2671 = vmatprep.subr.mxu0 0.0
  %2672 = vmatpush1.msra.mxu0 0.0
  %2673 = vmatprep.subr.mxu0 0.0
  %2674 = vmatpush1.msra.mxu0 0.0
  %2675 = vmatprep.subr.mxu0 0.0
  %2676 = vmatpush1.msra.mxu0 0.0
  %2677 = vmatprep.subr.mxu0 0.0
  %2678 = vmatpush1.msra.mxu0 0.0
  %2679 = vmatprep.subr.mxu0 0.0
  %2680 = vmatpush1.msra.mxu0 0.0
  %2681 = vmatprep.subr.mxu0 0.0
  %2682 = vmatpush1.msra.mxu0 0.0
  %2683 = vmatprep.subr.mxu0 0.0
  %2684 = vmatpush1.msra.mxu0 0.0
  %2685 = vmatprep.subr.mxu0 0.0
  %2686 = vmatpush1.msra.mxu0 0.0
  %2687 = vmatprep.subr.mxu0 0.0
  %2688 = vmatpush1.msra.mxu0 0.0
  %2689 = vmatprep.subr.mxu0 0.0
  %2690 = vmatpush1.msra.mxu0 0.0
  %2691 = vmatprep.subr.mxu0 0.0
  %2692 = vmatpush1.msra.mxu0 0.0
  %2693 = vmatprep.subr.mxu0 0.0
  %2694 = vmatpush1.msra.mxu0 0.0
  %2695 = vmatprep.subr.mxu0 0.0
  %2696 = vmatpush1.msra.mxu0 0.0
  %2697 = vmatprep.subr.mxu0 0.0
  %2698 = vmatpush1.msra.mxu0 0.0
  %2699 = vmatprep.subr.mxu0 0.0
  %2700 = vmatpush1.msra.mxu0 0.0
  %2701 = vmatprep.mubr.f32.mxu0 0.0
  %2702 = vmatmul.mubr.f32.gmra.mrb[0].mxu0 %v2624
  %v2703 = vpop.f32.mrb[0].mxu0
  %v2704 = vadd.f32 0.0, %v2703
  %v2705 = vpop.f32.mrb[0].mxu0
  %2706 = vmatprep.mubr.f32.mxu0 0.0
  %2707 = vmatmul.mubr.f32.gmra.mrb[0].mxu0 %v2627
  %v2708 = vpop.f32.mrb[0].mxu0
  %v2709 = vadd.f32 0.0, %v2708
  %v2710 = vpop.f32.mrb[0].mxu0
  %2711 = vmatprep.mubr.f32.mxu0 0.0
  %2712 = vmatmul.mubr.f32.gmra.mrb[0].mxu0 %v2629
  %v2713 = vpop.f32.mrb[0].mxu0
  %v2714 = vadd.f32 0.0, %v2713
  %v2715 = vpop.f32.mrb[0].mxu0
  %2716 = vmatprep.mubr.f32.mxu0 0.0
  %2717 = vmatmul.mubr.f32.gmra.mrb[0].mxu0 %v2632
  %v2718 = vpop.f32.mrb[0].mxu0
  %v2719 = vadd.f32 0.0, %v2718
  %v2720 = vpop.f32.mrb[0].mxu0
  %2721 = vdwg.mxu0
  %v2722 = vadd.f32 %v2606, %v2704
  %v2723 = vadd.f32 %v2611, %v2709
  %v2724 = vadd.f32 %v2616, %v2714
  %v2725 = vadd.f32 %v2621, %v2719
  %v2727 = vlaneseq
  %v2728 = vshrl.u32 %v2727, 7
  %v2729 = vsub.s32 0, %v2728
  %v2730 = vrot.slane %v2403, %v2729
  %v2732 = vadd.f32 %v2722, %v2730
  %v2733 = vadd.f32 %v2723, %v2730
  %v2734 = vadd.f32 %v2724, %v2730
  %v2735 = vadd.f32 %v2725, %v2730
  %2736 = vst.msk [vmem:[%s17] sm:$0xff] %vm2428, %v2732
  %2737 = vst.msk [vmem:[%s17 + $0x8] sm:$0xff] %vm2428, %v2733
  %2738 = vst.msk [vmem:[%s17 + $0x10] sm:$0xff] %vm2428, %v2734
  %2739 = vst.msk [vmem:[%s17 + $0x18] sm:$0xff] %vm2428, %v2735
  // Predicated region
  $region70: #{tpu_custom_call.1} parent=0 // pred_check
    _
  $region71: #{tpu_custom_call.1} parent=0 // pred_check_branch
    %2741 = sbr.rel (0) target = $region73
  $region72: #{tpu_custom_call.1} parent=0 // pred_region
    _
  $region73: #{tpu_custom_call.1} parent=0 // pred_fallthru
    _
  // Predicated region
  $region74: #{tpu_custom_call.1} parent=0 // pred_check
    _
  $region75: #{tpu_custom_call.1} parent=0 // pred_check_branch
    %2743 = sbr.rel (0) target = $region77
  $region76: #{tpu_custom_call.1} parent=0 // pred_region
    _
  $region77: #{tpu_custom_call.1} parent=0 // pred_fallthru
    _

</llo_original>
